<compile_context>
chip_gen: v6e
topology: v6e:2x2x1
jax: 0.10.0
libtpu: 0.0.40
codegen_flags: <defaults>
</compile_context>

<pallas_src>
import math
import functools

import jax
import jax.numpy as jnp
from jax import lax
from jax.experimental import pallas as pl
from jax.experimental.pallas import tpu as pltpu

EPS = 1e-5        # ScaleNorm clamp epsilon
NEG_INF = -1e9    # additive mask value (equivalent to masked_fill(-inf) pre-softmax)


# ----------------------------------------------------------------------------
# Pallas kernel: one (batch, query-tile) block of the decoder layer per step.
# ----------------------------------------------------------------------------
def decoder_layer_kernel(src_ref, tgtq_ref, tgtkv_ref, tbias_ref, sbias_ref,
                         wsa_ref, bsa_ref, wca_ref, bca_ref,
                         w1_ref, b1_ref, w2_ref, b2_ref, g_ref,
                         out_ref, kv_self, kv_cross, attn_o,
                         *, num_heads, ff_chunk):
    D = tgtq_ref.shape[-1]
    H = num_heads
    dh = D // H
    inv_sqrt_dh = 1.0 / math.sqrt(dh)
    bf = jnp.bfloat16

    def mm(a, b):
        # bf16 operands, f32 accumulation on the MXU (astype is a no-op if already bf16).
        return jnp.dot(a.astype(bf), b.astype(bf), preferred_element_type=jnp.float32)

    def scalenorm(x, g):
        # g * x / max(||x||, eps) == g * x * rsqrt(max(||x||^2, eps^2))  (EUP rsqrt)
        ss = jnp.sum(x * x, axis=-1, keepdims=True)
        return (g * x) * lax.rsqrt(jnp.maximum(ss, EPS * EPS))

    g0, g1, g2 = g_ref[0], g_ref[1], g_ref[2]

    # ---- per-batch K/V caches: built once on the first query tile of each batch ----
    @pl.when(pl.program_id(1) == 0)
    def _build_kv_caches():
        # self-attn K/V come from scalenorm(full ORIGINAL tgt, g0) (pre-norm layer)
        x_kv = tgtkv_ref[0].astype(jnp.float32)                       # (T, D)
        xn_kv = scalenorm(x_kv, g0).astype(bf)
        kv_self[0] = (mm(xn_kv, wsa_ref[1]) + bsa_ref[1:2, :]).astype(bf)
        kv_self[1] = (mm(xn_kv, wsa_ref[2]) + bsa_ref[2:3, :]).astype(bf)
        # cross-attn K/V come from the raw (un-normalized) src encodings
        src = src_ref[0]                                              # (S, D) bf16
        kv_cross[0] = (mm(src, wca_ref[1]) + bca_ref[1:2, :]).astype(bf)
        kv_cross[1] = (mm(src, wca_ref[2]) + bca_ref[2:3, :]).astype(bf)

    def attention(q_f32, kv_ref, wo, bo, bias):
        # q_f32: (TQ, D) f32 projected queries (bias already added).
        # kv_ref: (2, Skv, D) bf16 cached K / V.
        qb = (q_f32 * inv_sqrt_dh).astype(bf)      # fold 1/sqrt(dh); single bf16 cast
        k = kv_ref[0]
        v = kv_ref[1]
        Tq, Skv = qb.shape[0], k.shape[0]
        bias_f = jnp.broadcast_to(bias.astype(jnp.float32), (Tq, Skv))  # hoisted once
        # TODO(synk): for dh < 128, group heads into >=128-lane contractions / a
        # batched dot_general (and lane-dense attn_o stores); kept as a static
        # per-head loop here for lowering robustness at small dh.
        # TODO(synk): exploit causal structure (skip fully-masked KV blocks) with a
        # flash-style inner KV loop; the mask here is treated as arbitrary.
        for h in range(H):
            sl = slice(h * dh, (h + 1) * dh)
            # Contract the last dims of both operands: no explicit K transpose.
            s = lax.dot_general(qb[:, sl], k[:, sl], (((1,), (1,)), ((), ())),
                                preferred_element_type=jnp.float32)
            s = s + bias_f                                   # additive mask bias
            m = jnp.max(s, axis=-1, keepdims=True)           # stable softmax (f32)
            p = jnp.exp(s - m)
            a = p * pl.reciprocal(jnp.sum(p, axis=-1, keepdims=True), approx=True)
            oh = jnp.dot(a.astype(bf), v[:, sl], preferred_element_type=jnp.float32)
            # Static lane-slice store into scratch: avoids lane-concat shuffles.
            attn_o[:, sl] = oh.astype(attn_o.dtype)
        return mm(attn_o[...], wo) + bo

    x = tgtq_ref[0].astype(jnp.float32)          # (TQ, D) query tile / residual stream

    # sublayer 0: x + self_attn(norm(x); cached K/V)        (dropout = identity)
    q = mm(scalenorm(x, g0), wsa_ref[0]) + bsa_ref[0:1, :]
    x = x + attention(q, kv_self, wsa_ref[3], bsa_ref[3:4, :], tbias_ref[...])

    # sublayer 1: x + cross_attn(norm(x), src, src; cached K/V)
    q = mm(scalenorm(x, g1), wca_ref[0]) + bca_ref[0:1, :]
    x = x + attention(q, kv_cross, wca_ref[3], bca_ref[3:4, :], sbias_ref[0])

    # sublayer 2: x + FF(norm(x)),  FF = Linear -> ReLU -> Linear.
    # Hidden dim chunked to bound the live (TQ, F) f32 intermediate.
    xn = scalenorm(x, g2).astype(bf)
    F = w1_ref.shape[1]
    acc = jnp.zeros_like(x)
    for f0 in range(0, F, ff_chunk):
        f1 = min(f0 + ff_chunk, F)
        h1 = jnp.maximum(mm(xn, w1_ref[:, f0:f1]) + b1_ref[:, f0:f1], 0.0)
        acc = acc + mm(h1, w2_ref[f0:f1, :])
    x = x + acc + b2_ref[...]

    out_ref[0] = x.astype(out_ref.dtype)


# ----------------------------------------------------------------------------
# Wrapper
# ----------------------------------------------------------------------------
def _device_kind():
    try:
        return jax.devices()[0].device_kind.lower()
    except Exception:
        return ""


def decoder_layer(src_encs, tgt_encs, src_mask, tgt_mask, params, num_heads,
                  *, q_tile=None, ff_chunk=512):
    B, S, D = src_encs.shape
    _, T, _ = tgt_encs.shape
    assert D % num_heads == 0, "embed_dim must be divisible by num_heads"

    kind = _device_kind()
    is_v7 = "v7" in kind
    is_v6 = "v6" in kind

    # Generation-aware knobs.
    if q_tile is None:
        q_tile = 256 if is_v6 else 128          # v6e MXU output rows are 256
    if is_v7:
        vmem_limit = 48 * 1024 * 1024           # 64 MiB physical -> leave headroom
    elif is_v6 or ("v5" in kind):
        vmem_limit = 96 * 1024 * 1024           # 128 MiB physical; default scoped is small
    else:
        vmem_limit = 64 * 1024 * 1024

    # Largest multiple-of-8 divisor of T that is <= q_tile; else use the full T.
    # TODO(synk): no ragged-tile path; T not divisible by any such tile falls back to TQ=T.
    TQ = T
    start = (min(q_tile, T) // 8) * 8
    for cand in range(start, 7, -8):
        if T % cand == 0:
            TQ = cand
            break
    NQ = T // TQ

    # Convert boolean masks to additive float biases (masked_fill semantics).
    tgt_bias = jnp.where(tgt_mask, 0.0, NEG_INF).astype(jnp.float32)   # (T, T)
    src_bias = jnp.where(src_mask, 0.0, NEG_INF).astype(jnp.float32)   # (B, 1, S)

    bf = jnp.bfloat16
    src_bf = src_encs.astype(bf)       # cross-attn K/V source (only a matmul operand)
    tgt_kv_bf = tgt_encs.astype(bf)    # self-attn K/V source (bf16: halves residency/DMA)
    w_sa, b_sa = params["w_self"].astype(bf), params["b_self"]
    w_ca, b_ca = params["w_cross"].astype(bf), params["b_cross"]
    w1, b1 = params["w1"].astype(bf), params["b1"]
    w2, b2 = params["w2"].astype(bf), params["b2"]
    gains = params["gains"]
    F = w1.shape[1]
    ff_chunk = min(ff_chunk, F)

    # Weights/biases: whole-array resident in VMEM, single-buffered (constant
    # across the grid -> no pipelining / double-buffering VMEM waste).
    # TODO(synk): for large D/F (>= ~1024/4096) on v7x, stream w1/w2 via a BlockSpec
    # over an F/K grid axis instead of keeping them whole-resident.
    def vmem():
        return pl.BlockSpec(memory_space=pltpu.MemorySpace.VMEM)

    in_specs = [
        pl.BlockSpec((1, S, D), lambda b, q: (b, 0, 0)),    # src_encs (bf16)
        pl.BlockSpec((1, TQ, D), lambda b, q: (b, q, 0)),   # tgt query tile (f32)
        pl.BlockSpec((1, T, D), lambda b, q: (b, 0, 0)),    # tgt full, K/V path (bf16)
        pl.BlockSpec((TQ, T), lambda b, q: (q, 0)),         # tgt mask bias tile
        pl.BlockSpec((1, 1, S), lambda b, q: (b, 0, 0)),    # src mask bias
        vmem(), vmem(),     # w_self,  b_self
        vmem(), vmem(),     # w_cross, b_cross
        vmem(), vmem(),     # w1, b1
        vmem(), vmem(),     # w2, b2
        pl.BlockSpec(memory_space=pltpu.MemorySpace.SMEM),  # ScaleNorm gains (3,)
    ]

    return pl.pallas_call(
        functools.partial(decoder_layer_kernel, num_heads=num_heads,
                          ff_chunk=ff_chunk),
        out_shape=jax.ShapeDtypeStruct((B, T, D), tgt_encs.dtype),
        grid=(B, NQ),
        in_specs=in_specs,
        out_specs=pl.BlockSpec((1, TQ, D), lambda b, q: (b, q, 0)),
        scratch_shapes=[
            pltpu.VMEM((2, T, D), jnp.bfloat16),   # self-attn K/V cache (per batch)
            pltpu.VMEM((2, S, D), jnp.bfloat16),   # cross-attn K/V cache (per batch)
            pltpu.VMEM((TQ, D), jnp.bfloat16),     # attention head-output buffer
        ],
        compiler_params=pltpu.CompilerParams(
            # q axis carries the per-batch K/V cache -> "arbitrary"; batch stays parallel.
            dimension_semantics=("parallel", "arbitrary"),
            vmem_limit_bytes=vmem_limit),
    )(src_bf, tgt_encs, tgt_kv_bf, tgt_bias, src_bias,
      w_sa, b_sa, w_ca, b_ca, w1, b1, w2, b2, gains)


# ----------------------------------------------------------------------------
# Pure-JAX reference (mirrors the PyTorch forward in eval mode, with the same
# bf16-operand / f32-accumulate matmul policy as the kernel, including the
# bf16 rounding of the self-attn K/V-path input).
# ----------------------------------------------------------------------------
def reference_decoder_layer(src, tgt, src_mask, tgt_mask, params, num_heads):
    H = num_heads
    D = tgt.shape[-1]
    dh = D // H
    bf = jnp.bfloat16

    def scalenorm(x, g):
        ss = jnp.sum(x * x, axis=-1, keepdims=True)
        return (g * x) * jax.lax.rsqrt(jnp.maximum(ss, EPS * EPS))

    def mha(q_in, kv_in, w, b, bias):
        q = jnp.einsum("btd,de->bte", q_in.astype(bf), w[0].astype(bf),
                       preferred_element_type=jnp.float32) + b[0]
        k = jnp.einsum("bsd,de->bse", kv_in.astype(bf), w[1].astype(bf),
                       preferred_element_type=jnp.float32) + b[1]
        v = jnp.einsum("bsd,de->bse", kv_in.astype(bf), w[2].astype(bf),
                       preferred_element_type=jnp.float32) + b[2]
        q = q / math.sqrt(dh)
        B_, Tq, _ = q.shape
        S_ = k.shape[1]
        qh = q.reshape(B_, Tq, H, dh).transpose(0, 2, 1, 3)
        kh = k.reshape(B_, S_, H, dh).transpose(0, 2, 1, 3)
        vh = v.reshape(B_, S_, H, dh).transpose(0, 2, 1, 3)
        s = jnp.einsum("bhtd,bhsd->bhts", qh.astype(bf), kh.astype(bf),
                       preferred_element_type=jnp.float32) + bias
        a = jax.nn.softmax(s, axis=-1)
        o = jnp.einsum("bhts,bhsd->bhtd", a.astype(bf), vh.astype(bf),
                       preferred_element_type=jnp.float32)
        o = o.transpose(0, 2, 1, 3).reshape(B_, Tq, D)
        return jnp.einsum("btd,de->bte", o.astype(bf), w[3].astype(bf),
                          preferred_element_type=jnp.float32) + b[3]

    tgt_bias = jnp.where(tgt_mask, 0.0, NEG_INF)[None, None]   # (1,1,T,T)
    src_bias = jnp.where(src_mask, 0.0, NEG_INF)[:, None]      # (B,1,1,S)
    g = params["gains"]

    x = tgt
    # Kernel numeric policy: the self-attn K/V path reads a bf16 copy of tgt.
    kv_in = scalenorm(tgt.astype(bf).astype(jnp.float32), g[0])
    x = x + mha(scalenorm(x, g[0]), kv_in, params["w_self"], params["b_self"], tgt_bias)
    xn = scalenorm(x, g[1])
    x = x + mha(xn, src, params["w_cross"], params["b_cross"], src_bias)
    xn = scalenorm(x, g[2])
    h1 = jnp.maximum(jnp.einsum("btd,df->btf", xn.astype(bf), params["w1"].astype(bf),
                                preferred_element_type=jnp.float32) + params["b1"], 0.0)
    x = x + jnp.einsum("btf,fd->btd", h1.astype(bf), params["w2"].astype(bf),
                       preferred_element_type=jnp.float32) + params["b2"]
    return x


# ----------------------------------------------------------------------------
# Deterministic parameter init + example run
# ----------------------------------------------------------------------------
def init_params(key, embed_dim, ff_dim):
    ks = jax.random.split(key, 8)
    s = 1.0 / math.sqrt(embed_dim)
    return {
        "w_self":  jax.random.normal(ks[0], (4, embed_dim, embed_dim), jnp.float32) * s,
        "b_self":  jax.random.normal(ks[1], (4, embed_dim), jnp.float32) * 0.01,
        "w_cross": jax.random.normal(ks[2], (4, embed_dim, embed_dim), jnp.float32) * s,
        "b_cross": jax.random.normal(ks[3], (4, embed_dim), jnp.float32) * 0.01,
        "w1": jax.random.normal(ks[4], (embed_dim, ff_dim), jnp.float32) * s,
        "b1": jax.random.normal(ks[5], (1, ff_dim), jnp.float32) * 0.01,
        "w2": jax.random.normal(ks[6], (ff_dim, embed_dim), jnp.float32) / math.sqrt(ff_dim),
        "b2": jax.random.normal(ks[7], (1, embed_dim), jnp.float32) * 0.01,
        # ScaleNorm learnable scale, init = sqrt(embed_dim), one per sublayer
        "gains": jnp.full((3,), math.sqrt(embed_dim), jnp.float32),
    }


def _run_case(key, B, T, S, D, F, H, q_tile):
    k_src, k_tgt, k_param = jax.random.split(key, 3)
    src_encs = jax.random.normal(k_src, (B, S, D), jnp.float32)
    tgt_encs = jax.random.normal(k_tgt, (B, T, D), jnp.float32)

    # Causal target mask (T, T); source mask (B, 1, S) with last position padded
    # for batch element 1, to exercise masking.
    tgt_mask = jnp.tril(jnp.ones((T, T), dtype=bool))
    src_mask = jnp.ones((B, 1, S), dtype=bool).at[1, 0, S - 1].set(False)

    params = init_params(k_param, D, F)

    out = decoder_layer(src_encs, tgt_encs, src_mask, tgt_mask, params,
                        num_heads=H, q_tile=q_tile)
    out = jax.block_until_ready(out)

    ref = reference_decoder_layer(src_encs, tgt_encs, src_mask, tgt_mask, params,
                                  num_heads=H)
    ref = jax.block_until_ready(ref)

    assert out.shape == (B, T, D)
    max_err = float(jnp.max(jnp.abs(out - ref)))
    assert max_err < 2e-2, f"mismatch vs reference: max_err={max_err}"


if __name__ == "__main__":
    key = jax.random.PRNGKey(0)
    k1, k2 = jax.random.split(key)

    # Case 1: single query tile per batch (NQ = 1).
    _run_case(k1, B=2, T=8, S=8, D=32, F=64, H=4, q_tile=None)
    # Case 2: multiple query tiles (NQ = 2) to exercise the per-batch K/V cache reuse.
    _run_case(k2, B=2, T=16, S=8, D=32, F=64, H=4, q_tile=8)

    # TODO(synk): dropout is treated as inference-mode identity (no RNG masking).
    print("KERNEL_OK")
</pallas_src>

<mosaic_0001>
module attributes {stable_mosaic.version = 11 : i64} {
  func.func @decoder_layer_kernel(%arg0: i32, %arg1: i32, %arg2: memref<1x8x32xbf16, #tpu.memory_space<vmem>>, %arg3: memref<1x8x32xf32, #tpu.memory_space<vmem>>, %arg4: memref<1x8x32xbf16, #tpu.memory_space<vmem>>, %arg5: memref<8x8xf32, #tpu.memory_space<vmem>>, %arg6: memref<1x1x8xf32, #tpu.memory_space<vmem>>, %arg7: memref<4x32x32xbf16, #tpu.memory_space<vmem>>, %arg8: memref<4x32xf32, #tpu.memory_space<vmem>>, %arg9: memref<4x32x32xbf16, #tpu.memory_space<vmem>>, %arg10: memref<4x32xf32, #tpu.memory_space<vmem>>, %arg11: memref<32x64xbf16, #tpu.memory_space<vmem>>, %arg12: memref<1x64xf32, #tpu.memory_space<vmem>>, %arg13: memref<64x32xbf16, #tpu.memory_space<vmem>>, %arg14: memref<1x32xf32, #tpu.memory_space<vmem>>, %arg15: memref<3xf32, #tpu.memory_space<smem>>, %arg16: memref<1x8x32xf32, #tpu.memory_space<vmem>>, %arg17: memref<2x8x32xbf16, #tpu.memory_space<vmem>>, %arg18: memref<2x8x32xbf16, #tpu.memory_space<vmem>>, %arg19: memref<8x32xbf16, #tpu.memory_space<vmem>>) attributes {dimension_semantics = [#tpu.dimension_semantics<parallel>, #tpu.dimension_semantics<arbitrary>], iteration_bounds = array<i64: 2, 1>, scalar_prefetch = 0 : i64, scratch_operands = 3 : i64, tpu.core_type = #tpu.core_type<tc>, window_params = [{transform_indices = @transform_0, window_bounds = array<i64: 1, 8, 32>}, {transform_indices = @transform_1, window_bounds = array<i64: 1, 8, 32>}, {transform_indices = @transform_2, window_bounds = array<i64: 1, 8, 32>}, {transform_indices = @transform_3, window_bounds = array<i64: 8, 8>}, {transform_indices = @transform_4, window_bounds = array<i64: 1, 1, 8>}, {pipeline_mode = #tpu.pipeline_mode<synchronous>, transform_indices = @transform_5, window_bounds = array<i64: 4, 32, 32>}, {pipeline_mode = #tpu.pipeline_mode<synchronous>, transform_indices = @transform_6, window_bounds = array<i64: 4, 32>}, {pipeline_mode = #tpu.pipeline_mode<synchronous>, transform_indices = @transform_7, window_bounds = array<i64: 4, 32, 32>}, {pipeline_mode = #tpu.pipeline_mode<synchronous>, transform_indices = @transform_8, window_bounds = array<i64: 4, 32>}, {pipeline_mode = #tpu.pipeline_mode<synchronous>, transform_indices = @transform_9, window_bounds = array<i64: 32, 64>}, {pipeline_mode = #tpu.pipeline_mode<synchronous>, transform_indices = @transform_10, window_bounds = array<i64: 1, 64>}, {pipeline_mode = #tpu.pipeline_mode<synchronous>, transform_indices = @transform_11, window_bounds = array<i64: 64, 32>}, {pipeline_mode = #tpu.pipeline_mode<synchronous>, transform_indices = @transform_12, window_bounds = array<i64: 1, 32>}, {transform_indices = @transform_13, window_bounds = array<i64: 3>}, {transform_indices = @transform_14, window_bounds = array<i64: 1, 8, 32>}]} {
    %c0 = arith.constant 0 : index
    %0 = memref.load %arg15[%c0] : memref<3xf32, #tpu.memory_space<smem>>
    %c1 = arith.constant 1 : index
    %1 = memref.load %arg15[%c1] : memref<3xf32, #tpu.memory_space<smem>>
    %c2 = arith.constant 2 : index
    %2 = memref.load %arg15[%c2] : memref<3xf32, #tpu.memory_space<smem>>
    %c0_i32 = arith.constant 0 : i32
    %3 = arith.cmpi eq, %arg1, %c0_i32 : i32
    %4 = arith.extui %3 : i1 to i32
    %c0_i32_0 = arith.constant 0 : i32
    %5 = arith.cmpi ne, %4, %c0_i32_0 : i32
    scf.if %5 {
      %c0_115 = arith.constant 0 : index
      %c0_116 = arith.constant 0 : index
      %c0_117 = arith.constant 0 : index
      %259 = vector.load %arg4[%c0_115, %c0_116, %c0_117] : memref<1x8x32xbf16, #tpu.memory_space<vmem>>, vector<1x8x32xbf16>
      %260 = vector.shape_cast %259 : vector<1x8x32xbf16> to vector<8x32xbf16>
      %261 = arith.extf %260 : vector<8x32xbf16> to vector<8x32xf32>
      %262 = arith.mulf %261, %261 : vector<8x32xf32>
      %cst_118 = arith.constant dense<0.000000e+00> : vector<8xf32>
      %263 = vector.multi_reduction <add>, %262, %cst_118 [1] : vector<8x32xf32> to vector<8xf32>
      %264 = vector.shape_cast %263 : vector<8xf32> to vector<8x1xf32>
      %265 = vector.broadcast %0 : f32 to vector<8x32xf32>
      %266 = arith.mulf %265, %261 : vector<8x32xf32>
      %cst_119 = arith.constant 1.000000e-10 : f32
      %267 = vector.broadcast %cst_119 : f32 to vector<8x1xf32>
      %268 = arith.maximumf %264, %267 : vector<8x1xf32>
      %269 = math.rsqrt %268 : vector<8x1xf32>
      %270 = vector.broadcast %269 : vector<8x1xf32> to vector<8x32xf32>
      %271 = arith.mulf %266, %270 : vector<8x32xf32>
      %272 = arith.truncf %271 : vector<8x32xf32> to vector<8x32xbf16>
      %c1_120 = arith.constant 1 : index
      %c0_121 = arith.constant 0 : index
      %c0_122 = arith.constant 0 : index
      %273 = vector.load %arg7[%c1_120, %c0_121, %c0_122] : memref<4x32x32xbf16, #tpu.memory_space<vmem>>, vector<1x32x32xbf16>
      %274 = vector.shape_cast %273 : vector<1x32x32xbf16> to vector<32x32xbf16>
      %cst_123 = arith.constant dense<0.000000e+00> : vector<8x32xf32>
      %275 = tpu.matmul %272, %274, %cst_123 {dimension_numbers = #tpu.dot_dimension_numbers<[1], [0], [0], [1], [0, 0, 1, 1], [], []>} : vector<8x32xbf16>, vector<32x32xbf16>, vector<8x32xf32> -> vector<8x32xf32>
      %c1_124 = arith.constant 1 : index
      %c0_125 = arith.constant 0 : index
      %276 = vector.load %arg8[%c1_124, %c0_125] : memref<4x32xf32, #tpu.memory_space<vmem>>, vector<1x32xf32>
      %277 = vector.broadcast %276 : vector<1x32xf32> to vector<8x32xf32>
      %278 = arith.addf %275, %277 : vector<8x32xf32>
      %279 = arith.truncf %278 : vector<8x32xf32> to vector<8x32xbf16>
      %c0_126 = arith.constant 0 : index
      %c0_127 = arith.constant 0 : index
      %c0_128 = arith.constant 0 : index
      %280 = vector.load %arg17[%c0_126, %c0_127, %c0_128] : memref<2x8x32xbf16, #tpu.memory_space<vmem>>, vector<1x8x32xbf16>
      %281 = vector.shape_cast %280 : vector<1x8x32xbf16> to vector<8x32xbf16>
      %282 = vector.shape_cast %279 : vector<8x32xbf16> to vector<1x8x32xbf16>
      tpu.vector_store %arg17[%c0_126, %c0_127, %c0_128], %282 {strides = array<i32>} : memref<2x8x32xbf16, #tpu.memory_space<vmem>>, vector<1x8x32xbf16>,
      %c2_129 = arith.constant 2 : index
      %c0_130 = arith.constant 0 : index
      %c0_131 = arith.constant 0 : index
      %283 = vector.load %arg7[%c2_129, %c0_130, %c0_131] : memref<4x32x32xbf16, #tpu.memory_space<vmem>>, vector<1x32x32xbf16>
      %284 = vector.shape_cast %283 : vector<1x32x32xbf16> to vector<32x32xbf16>
      %cst_132 = arith.constant dense<0.000000e+00> : vector<8x32xf32>
      %285 = tpu.matmul %272, %284, %cst_132 {dimension_numbers = #tpu.dot_dimension_numbers<[1], [0], [0], [1], [0, 0, 1, 1], [], []>} : vector<8x32xbf16>, vector<32x32xbf16>, vector<8x32xf32> -> vector<8x32xf32>
      %c2_133 = arith.constant 2 : index
      %c0_134 = arith.constant 0 : index
      %286 = vector.load %arg8[%c2_133, %c0_134] : memref<4x32xf32, #tpu.memory_space<vmem>>, vector<1x32xf32>
      %287 = vector.broadcast %286 : vector<1x32xf32> to vector<8x32xf32>
      %288 = arith.addf %285, %287 : vector<8x32xf32>
      %289 = arith.truncf %288 : vector<8x32xf32> to vector<8x32xbf16>
      %c1_135 = arith.constant 1 : index
      %c0_136 = arith.constant 0 : index
      %c0_137 = arith.constant 0 : index
      %290 = vector.load %arg17[%c1_135, %c0_136, %c0_137] : memref<2x8x32xbf16, #tpu.memory_space<vmem>>, vector<1x8x32xbf16>
      %291 = vector.shape_cast %290 : vector<1x8x32xbf16> to vector<8x32xbf16>
      %292 = vector.shape_cast %289 : vector<8x32xbf16> to vector<1x8x32xbf16>
      tpu.vector_store %arg17[%c1_135, %c0_136, %c0_137], %292 {strides = array<i32>} : memref<2x8x32xbf16, #tpu.memory_space<vmem>>, vector<1x8x32xbf16>,
      %c0_138 = arith.constant 0 : index
      %c0_139 = arith.constant 0 : index
      %c0_140 = arith.constant 0 : index
      %293 = vector.load %arg2[%c0_138, %c0_139, %c0_140] : memref<1x8x32xbf16, #tpu.memory_space<vmem>>, vector<1x8x32xbf16>
      %294 = vector.shape_cast %293 : vector<1x8x32xbf16> to vector<8x32xbf16>
      %c1_141 = arith.constant 1 : index
      %c0_142 = arith.constant 0 : index
      %c0_143 = arith.constant 0 : index
      %295 = vector.load %arg9[%c1_141, %c0_142, %c0_143] : memref<4x32x32xbf16, #tpu.memory_space<vmem>>, vector<1x32x32xbf16>
      %296 = vector.shape_cast %295 : vector<1x32x32xbf16> to vector<32x32xbf16>
      %cst_144 = arith.constant dense<0.000000e+00> : vector<8x32xf32>
      %297 = tpu.matmul %294, %296, %cst_144 {dimension_numbers = #tpu.dot_dimension_numbers<[1], [0], [0], [1], [0, 0, 1, 1], [], []>} : vector<8x32xbf16>, vector<32x32xbf16>, vector<8x32xf32> -> vector<8x32xf32>
      %c1_145 = arith.constant 1 : index
      %c0_146 = arith.constant 0 : index
      %298 = vector.load %arg10[%c1_145, %c0_146] : memref<4x32xf32, #tpu.memory_space<vmem>>, vector<1x32xf32>
      %299 = vector.broadcast %298 : vector<1x32xf32> to vector<8x32xf32>
      %300 = arith.addf %297, %299 : vector<8x32xf32>
      %301 = arith.truncf %300 : vector<8x32xf32> to vector<8x32xbf16>
      %c0_147 = arith.constant 0 : index
      %c0_148 = arith.constant 0 : index
      %c0_149 = arith.constant 0 : index
      %302 = vector.load %arg18[%c0_147, %c0_148, %c0_149] : memref<2x8x32xbf16, #tpu.memory_space<vmem>>, vector<1x8x32xbf16>
      %303 = vector.shape_cast %302 : vector<1x8x32xbf16> to vector<8x32xbf16>
      %304 = vector.shape_cast %301 : vector<8x32xbf16> to vector<1x8x32xbf16>
      tpu.vector_store %arg18[%c0_147, %c0_148, %c0_149], %304 {strides = array<i32>} : memref<2x8x32xbf16, #tpu.memory_space<vmem>>, vector<1x8x32xbf16>,
      %c2_150 = arith.constant 2 : index
      %c0_151 = arith.constant 0 : index
      %c0_152 = arith.constant 0 : index
      %305 = vector.load %arg9[%c2_150, %c0_151, %c0_152] : memref<4x32x32xbf16, #tpu.memory_space<vmem>>, vector<1x32x32xbf16>
      %306 = vector.shape_cast %305 : vector<1x32x32xbf16> to vector<32x32xbf16>
      %cst_153 = arith.constant dense<0.000000e+00> : vector<8x32xf32>
      %307 = tpu.matmul %294, %306, %cst_153 {dimension_numbers = #tpu.dot_dimension_numbers<[1], [0], [0], [1], [0, 0, 1, 1], [], []>} : vector<8x32xbf16>, vector<32x32xbf16>, vector<8x32xf32> -> vector<8x32xf32>
      %c2_154 = arith.constant 2 : index
      %c0_155 = arith.constant 0 : index
      %308 = vector.load %arg10[%c2_154, %c0_155] : memref<4x32xf32, #tpu.memory_space<vmem>>, vector<1x32xf32>
      %309 = vector.broadcast %308 : vector<1x32xf32> to vector<8x32xf32>
      %310 = arith.addf %307, %309 : vector<8x32xf32>
      %311 = arith.truncf %310 : vector<8x32xf32> to vector<8x32xbf16>
      %c1_156 = arith.constant 1 : index
      %c0_157 = arith.constant 0 : index
      %c0_158 = arith.constant 0 : index
      %312 = vector.load %arg18[%c1_156, %c0_157, %c0_158] : memref<2x8x32xbf16, #tpu.memory_space<vmem>>, vector<1x8x32xbf16>
      %313 = vector.shape_cast %312 : vector<1x8x32xbf16> to vector<8x32xbf16>
      %314 = vector.shape_cast %311 : vector<8x32xbf16> to vector<1x8x32xbf16>
      tpu.vector_store %arg18[%c1_156, %c0_157, %c0_158], %314 {strides = array<i32>} : memref<2x8x32xbf16, #tpu.memory_space<vmem>>, vector<1x8x32xbf16>,
    } else {
    }
    %c0_1 = arith.constant 0 : index
    %c0_2 = arith.constant 0 : index
    %c0_3 = arith.constant 0 : index
    %6 = vector.load %arg3[%c0_1, %c0_2, %c0_3] : memref<1x8x32xf32, #tpu.memory_space<vmem>>, vector<1x8x32xf32>
    %7 = vector.shape_cast %6 : vector<1x8x32xf32> to vector<8x32xf32>
    %8 = arith.mulf %7, %7 : vector<8x32xf32>
    %cst = arith.constant dense<0.000000e+00> : vector<8xf32>
    %9 = vector.multi_reduction <add>, %8, %cst [1] : vector<8x32xf32> to vector<8xf32>
    %10 = vector.shape_cast %9 : vector<8xf32> to vector<8x1xf32>
    %11 = vector.broadcast %0 : f32 to vector<8x32xf32>
    %12 = arith.mulf %11, %7 : vector<8x32xf32>
    %cst_4 = arith.constant 1.000000e-10 : f32
    %13 = vector.broadcast %cst_4 : f32 to vector<8x1xf32>
    %14 = arith.maximumf %10, %13 : vector<8x1xf32>
    %15 = math.rsqrt %14 : vector<8x1xf32>
    %16 = vector.broadcast %15 : vector<8x1xf32> to vector<8x32xf32>
    %17 = arith.mulf %12, %16 : vector<8x32xf32>
    %c0_5 = arith.constant 0 : index
    %c0_6 = arith.constant 0 : index
    %c0_7 = arith.constant 0 : index
    %18 = vector.load %arg7[%c0_5, %c0_6, %c0_7] : memref<4x32x32xbf16, #tpu.memory_space<vmem>>, vector<1x32x32xbf16>
    %19 = vector.shape_cast %18 : vector<1x32x32xbf16> to vector<32x32xbf16>
    %20 = arith.truncf %17 : vector<8x32xf32> to vector<8x32xbf16>
    %cst_8 = arith.constant dense<0.000000e+00> : vector<8x32xf32>
    %21 = tpu.matmul %20, %19, %cst_8 {dimension_numbers = #tpu.dot_dimension_numbers<[1], [0], [0], [1], [0, 0, 1, 1], [], []>} : vector<8x32xbf16>, vector<32x32xbf16>, vector<8x32xf32> -> vector<8x32xf32>
    %c0_9 = arith.constant 0 : index
    %c0_10 = arith.constant 0 : index
    %22 = vector.load %arg8[%c0_9, %c0_10] : memref<4x32xf32, #tpu.memory_space<vmem>>, vector<1x32xf32>
    %23 = vector.broadcast %22 : vector<1x32xf32> to vector<8x32xf32>
    %24 = arith.addf %21, %23 : vector<8x32xf32>
    %c3 = arith.constant 3 : index
    %c0_11 = arith.constant 0 : index
    %c0_12 = arith.constant 0 : index
    %25 = vector.load %arg7[%c3, %c0_11, %c0_12] : memref<4x32x32xbf16, #tpu.memory_space<vmem>>, vector<1x32x32xbf16>
    %26 = vector.shape_cast %25 : vector<1x32x32xbf16> to vector<32x32xbf16>
    %c3_13 = arith.constant 3 : index
    %c0_14 = arith.constant 0 : index
    %27 = vector.load %arg8[%c3_13, %c0_14] : memref<4x32xf32, #tpu.memory_space<vmem>>, vector<1x32xf32>
    %c0_15 = arith.constant 0 : index
    %c0_16 = arith.constant 0 : index
    %28 = vector.load %arg5[%c0_15, %c0_16] : memref<8x8xf32, #tpu.memory_space<vmem>>, vector<8x8xf32>
    %cst_17 = arith.constant 0.353553385 : f32
    %29 = vector.broadcast %cst_17 : f32 to vector<8x32xf32>
    %30 = arith.mulf %24, %29 : vector<8x32xf32>
    %31 = arith.truncf %30 : vector<8x32xf32> to vector<8x32xbf16>
    %c0_18 = arith.constant 0 : index
    %c0_19 = arith.constant 0 : index
    %c0_20 = arith.constant 0 : index
    %32 = vector.load %arg17[%c0_18, %c0_19, %c0_20] : memref<2x8x32xbf16, #tpu.memory_space<vmem>>, vector<1x8x32xbf16>
    %33 = vector.shape_cast %32 : vector<1x8x32xbf16> to vector<8x32xbf16>
    %c1_21 = arith.constant 1 : index
    %c0_22 = arith.constant 0 : index
    %c0_23 = arith.constant 0 : index
    %34 = vector.load %arg17[%c1_21, %c0_22, %c0_23] : memref<2x8x32xbf16, #tpu.memory_space<vmem>>, vector<1x8x32xbf16>
    %35 = vector.shape_cast %34 : vector<1x8x32xbf16> to vector<8x32xbf16>
    %36 = vector.extract_strided_slice %31 {offsets = [0, 0], sizes = [8, 8], strides = [1, 1]} : vector<8x32xbf16> to vector<8x8xbf16>
    %37 = vector.extract_strided_slice %33 {offsets = [0, 0], sizes = [8, 8], strides = [1, 1]} : vector<8x32xbf16> to vector<8x8xbf16>
    %cst_24 = arith.constant dense<0.000000e+00> : vector<8x8xf32>
    %38 = tpu.matmul %36, %37, %cst_24 {dimension_numbers = #tpu.dot_dimension_numbers<[1], [1], [0], [0], [0, 0, 1, 0], [], []>} : vector<8x8xbf16>, vector<8x8xbf16>, vector<8x8xf32> -> vector<8x8xf32>
    %39 = arith.addf %38, %28 : vector<8x8xf32>
    %cst_25 = arith.constant dense<0xFF800000> : vector<8xf32>
    %40 = vector.multi_reduction <maximumf>, %39, %cst_25 [1] : vector<8x8xf32> to vector<8xf32>
    %41 = vector.shape_cast %40 : vector<8xf32> to vector<8x1xf32>
    %42 = vector.broadcast %41 : vector<8x1xf32> to vector<8x8xf32>
    %43 = arith.subf %39, %42 : vector<8x8xf32>
    %44 = math.exp %43 : vector<8x8xf32>
    %cst_26 = arith.constant dense<0.000000e+00> : vector<8xf32>
    %45 = vector.multi_reduction <add>, %44, %cst_26 [1] : vector<8x8xf32> to vector<8xf32>
    %46 = vector.shape_cast %45 : vector<8xf32> to vector<8x1xf32>
    %47 = tpu.reciprocal %46 {approx = true} : vector<8x1xf32> -> vector<8x1xf32>
    %48 = vector.broadcast %47 : vector<8x1xf32> to vector<8x8xf32>
    %49 = arith.mulf %44, %48 : vector<8x8xf32>
    %50 = arith.truncf %49 : vector<8x8xf32> to vector<8x8xbf16>
    %51 = vector.extract_strided_slice %35 {offsets = [0, 0], sizes = [8, 8], strides = [1, 1]} : vector<8x32xbf16> to vector<8x8xbf16>
    %cst_27 = arith.constant dense<0.000000e+00> : vector<8x8xf32>
    %52 = tpu.matmul %50, %51, %cst_27 {dimension_numbers = #tpu.dot_dimension_numbers<[1], [0], [0], [1], [0, 0, 1, 1], [], []>} : vector<8x8xbf16>, vector<8x8xbf16>, vector<8x8xf32> -> vector<8x8xf32>
    %53 = arith.truncf %52 : vector<8x8xf32> to vector<8x8xbf16>
    %c0_28 = arith.constant 0 : index
    %c0_29 = arith.constant 0 : index
    %54 = vector.load %arg19[%c0_28, %c0_29] : memref<8x32xbf16, #tpu.memory_space<vmem>>, vector<8x8xbf16>
    tpu.vector_store %arg19[%c0_28, %c0_29], %53 {strides = array<i32>} : memref<8x32xbf16, #tpu.memory_space<vmem>>, vector<8x8xbf16>,
    %55 = vector.extract_strided_slice %31 {offsets = [0, 8], sizes = [8, 8], strides = [1, 1]} : vector<8x32xbf16> to vector<8x8xbf16>
    %56 = vector.extract_strided_slice %33 {offsets = [0, 8], sizes = [8, 8], strides = [1, 1]} : vector<8x32xbf16> to vector<8x8xbf16>
    %cst_30 = arith.constant dense<0.000000e+00> : vector<8x8xf32>
    %57 = tpu.matmul %55, %56, %cst_30 {dimension_numbers = #tpu.dot_dimension_numbers<[1], [1], [0], [0], [0, 0, 1, 0], [], []>} : vector<8x8xbf16>, vector<8x8xbf16>, vector<8x8xf32> -> vector<8x8xf32>
    %58 = arith.addf %57, %28 : vector<8x8xf32>
    %cst_31 = arith.constant dense<0xFF800000> : vector<8xf32>
    %59 = vector.multi_reduction <maximumf>, %58, %cst_31 [1] : vector<8x8xf32> to vector<8xf32>
    %60 = vector.shape_cast %59 : vector<8xf32> to vector<8x1xf32>
    %61 = vector.broadcast %60 : vector<8x1xf32> to vector<8x8xf32>
    %62 = arith.subf %58, %61 : vector<8x8xf32>
    %63 = math.exp %62 : vector<8x8xf32>
    %cst_32 = arith.constant dense<0.000000e+00> : vector<8xf32>
    %64 = vector.multi_reduction <add>, %63, %cst_32 [1] : vector<8x8xf32> to vector<8xf32>
    %65 = vector.shape_cast %64 : vector<8xf32> to vector<8x1xf32>
    %66 = tpu.reciprocal %65 {approx = true} : vector<8x1xf32> -> vector<8x1xf32>
    %67 = vector.broadcast %66 : vector<8x1xf32> to vector<8x8xf32>
    %68 = arith.mulf %63, %67 : vector<8x8xf32>
    %69 = arith.truncf %68 : vector<8x8xf32> to vector<8x8xbf16>
    %70 = vector.extract_strided_slice %35 {offsets = [0, 8], sizes = [8, 8], strides = [1, 1]} : vector<8x32xbf16> to vector<8x8xbf16>
    %cst_33 = arith.constant dense<0.000000e+00> : vector<8x8xf32>
    %71 = tpu.matmul %69, %70, %cst_33 {dimension_numbers = #tpu.dot_dimension_numbers<[1], [0], [0], [1], [0, 0, 1, 1], [], []>} : vector<8x8xbf16>, vector<8x8xbf16>, vector<8x8xf32> -> vector<8x8xf32>
    %72 = arith.truncf %71 : vector<8x8xf32> to vector<8x8xbf16>
    %c0_34 = arith.constant 0 : index
    %c8 = arith.constant 8 : index
    %73 = vector.load %arg19[%c0_34, %c8] : memref<8x32xbf16, #tpu.memory_space<vmem>>, vector<8x8xbf16>
    tpu.vector_store %arg19[%c0_34, %c8], %72 {strides = array<i32>} : memref<8x32xbf16, #tpu.memory_space<vmem>>, vector<8x8xbf16>,
    %74 = vector.extract_strided_slice %31 {offsets = [0, 16], sizes = [8, 8], strides = [1, 1]} : vector<8x32xbf16> to vector<8x8xbf16>
    %75 = vector.extract_strided_slice %33 {offsets = [0, 16], sizes = [8, 8], strides = [1, 1]} : vector<8x32xbf16> to vector<8x8xbf16>
    %cst_35 = arith.constant dense<0.000000e+00> : vector<8x8xf32>
    %76 = tpu.matmul %74, %75, %cst_35 {dimension_numbers = #tpu.dot_dimension_numbers<[1], [1], [0], [0], [0, 0, 1, 0], [], []>} : vector<8x8xbf16>, vector<8x8xbf16>, vector<8x8xf32> -> vector<8x8xf32>
    %77 = arith.addf %76, %28 : vector<8x8xf32>
    %cst_36 = arith.constant dense<0xFF800000> : vector<8xf32>
    %78 = vector.multi_reduction <maximumf>, %77, %cst_36 [1] : vector<8x8xf32> to vector<8xf32>
    %79 = vector.shape_cast %78 : vector<8xf32> to vector<8x1xf32>
    %80 = vector.broadcast %79 : vector<8x1xf32> to vector<8x8xf32>
    %81 = arith.subf %77, %80 : vector<8x8xf32>
    %82 = math.exp %81 : vector<8x8xf32>
    %cst_37 = arith.constant dense<0.000000e+00> : vector<8xf32>
    %83 = vector.multi_reduction <add>, %82, %cst_37 [1] : vector<8x8xf32> to vector<8xf32>
    %84 = vector.shape_cast %83 : vector<8xf32> to vector<8x1xf32>
    %85 = tpu.reciprocal %84 {approx = true} : vector<8x1xf32> -> vector<8x1xf32>
    %86 = vector.broadcast %85 : vector<8x1xf32> to vector<8x8xf32>
    %87 = arith.mulf %82, %86 : vector<8x8xf32>
    %88 = arith.truncf %87 : vector<8x8xf32> to vector<8x8xbf16>
    %89 = vector.extract_strided_slice %35 {offsets = [0, 16], sizes = [8, 8], strides = [1, 1]} : vector<8x32xbf16> to vector<8x8xbf16>
    %cst_38 = arith.constant dense<0.000000e+00> : vector<8x8xf32>
    %90 = tpu.matmul %88, %89, %cst_38 {dimension_numbers = #tpu.dot_dimension_numbers<[1], [0], [0], [1], [0, 0, 1, 1], [], []>} : vector<8x8xbf16>, vector<8x8xbf16>, vector<8x8xf32> -> vector<8x8xf32>
    %91 = arith.truncf %90 : vector<8x8xf32> to vector<8x8xbf16>
    %c0_39 = arith.constant 0 : index
    %c16 = arith.constant 16 : index
    %92 = vector.load %arg19[%c0_39, %c16] : memref<8x32xbf16, #tpu.memory_space<vmem>>, vector<8x8xbf16>
    tpu.vector_store %arg19[%c0_39, %c16], %91 {strides = array<i32>} : memref<8x32xbf16, #tpu.memory_space<vmem>>, vector<8x8xbf16>,
    %93 = vector.extract_strided_slice %31 {offsets = [0, 24], sizes = [8, 8], strides = [1, 1]} : vector<8x32xbf16> to vector<8x8xbf16>
    %94 = vector.extract_strided_slice %33 {offsets = [0, 24], sizes = [8, 8], strides = [1, 1]} : vector<8x32xbf16> to vector<8x8xbf16>
    %cst_40 = arith.constant dense<0.000000e+00> : vector<8x8xf32>
    %95 = tpu.matmul %93, %94, %cst_40 {dimension_numbers = #tpu.dot_dimension_numbers<[1], [1], [0], [0], [0, 0, 1, 0], [], []>} : vector<8x8xbf16>, vector<8x8xbf16>, vector<8x8xf32> -> vector<8x8xf32>
    %96 = arith.addf %95, %28 : vector<8x8xf32>
    %cst_41 = arith.constant dense<0xFF800000> : vector<8xf32>
    %97 = vector.multi_reduction <maximumf>, %96, %cst_41 [1] : vector<8x8xf32> to vector<8xf32>
    %98 = vector.shape_cast %97 : vector<8xf32> to vector<8x1xf32>
    %99 = vector.broadcast %98 : vector<8x1xf32> to vector<8x8xf32>
    %100 = arith.subf %96, %99 : vector<8x8xf32>
    %101 = math.exp %100 : vector<8x8xf32>
    %cst_42 = arith.constant dense<0.000000e+00> : vector<8xf32>
    %102 = vector.multi_reduction <add>, %101, %cst_42 [1] : vector<8x8xf32> to vector<8xf32>
    %103 = vector.shape_cast %102 : vector<8xf32> to vector<8x1xf32>
    %104 = tpu.reciprocal %103 {approx = true} : vector<8x1xf32> -> vector<8x1xf32>
    %105 = vector.broadcast %104 : vector<8x1xf32> to vector<8x8xf32>
    %106 = arith.mulf %101, %105 : vector<8x8xf32>
    %107 = arith.truncf %106 : vector<8x8xf32> to vector<8x8xbf16>
    %108 = vector.extract_strided_slice %35 {offsets = [0, 24], sizes = [8, 8], strides = [1, 1]} : vector<8x32xbf16> to vector<8x8xbf16>
    %cst_43 = arith.constant dense<0.000000e+00> : vector<8x8xf32>
    %109 = tpu.matmul %107, %108, %cst_43 {dimension_numbers = #tpu.dot_dimension_numbers<[1], [0], [0], [1], [0, 0, 1, 1], [], []>} : vector<8x8xbf16>, vector<8x8xbf16>, vector<8x8xf32> -> vector<8x8xf32>
    %110 = arith.truncf %109 : vector<8x8xf32> to vector<8x8xbf16>
    %c0_44 = arith.constant 0 : index
    %c24 = arith.constant 24 : index
    %111 = vector.load %arg19[%c0_44, %c24] : memref<8x32xbf16, #tpu.memory_space<vmem>>, vector<8x8xbf16>
    tpu.vector_store %arg19[%c0_44, %c24], %110 {strides = array<i32>} : memref<8x32xbf16, #tpu.memory_space<vmem>>, vector<8x8xbf16>,
    %c0_45 = arith.constant 0 : index
    %c0_46 = arith.constant 0 : index
    %112 = vector.load %arg19[%c0_45, %c0_46] : memref<8x32xbf16, #tpu.memory_space<vmem>>, vector<8x32xbf16>
    %cst_47 = arith.constant dense<0.000000e+00> : vector<8x32xf32>
    %113 = tpu.matmul %112, %26, %cst_47 {dimension_numbers = #tpu.dot_dimension_numbers<[1], [0], [0], [1], [0, 0, 1, 1], [], []>} : vector<8x32xbf16>, vector<32x32xbf16>, vector<8x32xf32> -> vector<8x32xf32>
    %114 = vector.broadcast %27 : vector<1x32xf32> to vector<8x32xf32>
    %115 = arith.addf %113, %114 : vector<8x32xf32>
    %116 = arith.addf %7, %115 : vector<8x32xf32>
    %117 = arith.mulf %116, %116 : vector<8x32xf32>
    %cst_48 = arith.constant dense<0.000000e+00> : vector<8xf32>
    %118 = vector.multi_reduction <add>, %117, %cst_48 [1] : vector<8x32xf32> to vector<8xf32>
    %119 = vector.shape_cast %118 : vector<8xf32> to vector<8x1xf32>
    %120 = vector.broadcast %1 : f32 to vector<8x32xf32>
    %121 = arith.mulf %120, %116 : vector<8x32xf32>
    %cst_49 = arith.constant 1.000000e-10 : f32
    %122 = vector.broadcast %cst_49 : f32 to vector<8x1xf32>
    %123 = arith.maximumf %119, %122 : vector<8x1xf32>
    %124 = math.rsqrt %123 : vector<8x1xf32>
    %125 = vector.broadcast %124 : vector<8x1xf32> to vector<8x32xf32>
    %126 = arith.mulf %121, %125 : vector<8x32xf32>
    %c0_50 = arith.constant 0 : index
    %c0_51 = arith.constant 0 : index
    %c0_52 = arith.constant 0 : index
    %127 = vector.load %arg9[%c0_50, %c0_51, %c0_52] : memref<4x32x32xbf16, #tpu.memory_space<vmem>>, vector<1x32x32xbf16>
    %128 = vector.shape_cast %127 : vector<1x32x32xbf16> to vector<32x32xbf16>
    %129 = arith.truncf %126 : vector<8x32xf32> to vector<8x32xbf16>
    %cst_53 = arith.constant dense<0.000000e+00> : vector<8x32xf32>
    %130 = tpu.matmul %129, %128, %cst_53 {dimension_numbers = #tpu.dot_dimension_numbers<[1], [0], [0], [1], [0, 0, 1, 1], [], []>} : vector<8x32xbf16>, vector<32x32xbf16>, vector<8x32xf32> -> vector<8x32xf32>
    %c0_54 = arith.constant 0 : index
    %c0_55 = arith.constant 0 : index
    %131 = vector.load %arg10[%c0_54, %c0_55] : memref<4x32xf32, #tpu.memory_space<vmem>>, vector<1x32xf32>
    %132 = vector.broadcast %131 : vector<1x32xf32> to vector<8x32xf32>
    %133 = arith.addf %130, %132 : vector<8x32xf32>
    %c3_56 = arith.constant 3 : index
    %c0_57 = arith.constant 0 : index
    %c0_58 = arith.constant 0 : index
    %134 = vector.load %arg9[%c3_56, %c0_57, %c0_58] : memref<4x32x32xbf16, #tpu.memory_space<vmem>>, vector<1x32x32xbf16>
    %135 = vector.shape_cast %134 : vector<1x32x32xbf16> to vector<32x32xbf16>
    %c3_59 = arith.constant 3 : index
    %c0_60 = arith.constant 0 : index
    %136 = vector.load %arg10[%c3_59, %c0_60] : memref<4x32xf32, #tpu.memory_space<vmem>>, vector<1x32xf32>
    %c0_61 = arith.constant 0 : index
    %c0_62 = arith.constant 0 : index
    %c0_63 = arith.constant 0 : index
    %137 = vector.load %arg6[%c0_61, %c0_62, %c0_63] : memref<1x1x8xf32, #tpu.memory_space<vmem>>, vector<1x1x8xf32>
    %138 = vector.shape_cast %137 : vector<1x1x8xf32> to vector<1x8xf32>
    %cst_64 = arith.constant 0.353553385 : f32
    %139 = vector.broadcast %cst_64 : f32 to vector<8x32xf32>
    %140 = arith.mulf %133, %139 : vector<8x32xf32>
    %141 = arith.truncf %140 : vector<8x32xf32> to vector<8x32xbf16>
    %c0_65 = arith.constant 0 : index
    %c0_66 = arith.constant 0 : index
    %c0_67 = arith.constant 0 : index
    %142 = vector.load %arg18[%c0_65, %c0_66, %c0_67] : memref<2x8x32xbf16, #tpu.memory_space<vmem>>, vector<1x8x32xbf16>
    %143 = vector.shape_cast %142 : vector<1x8x32xbf16> to vector<8x32xbf16>
    %c1_68 = arith.constant 1 : index
    %c0_69 = arith.constant 0 : index
    %c0_70 = arith.constant 0 : index
    %144 = vector.load %arg18[%c1_68, %c0_69, %c0_70] : memref<2x8x32xbf16, #tpu.memory_space<vmem>>, vector<1x8x32xbf16>
    %145 = vector.shape_cast %144 : vector<1x8x32xbf16> to vector<8x32xbf16>
    %146 = vector.shape_cast %138 : vector<1x8xf32> to vector<1x8xf32>
    %147 = vector.broadcast %146 : vector<1x8xf32> to vector<8x8xf32>
    %148 = vector.extract_strided_slice %141 {offsets = [0, 0], sizes = [8, 8], strides = [1, 1]} : vector<8x32xbf16> to vector<8x8xbf16>
    %149 = vector.extract_strided_slice %143 {offsets = [0, 0], sizes = [8, 8], strides = [1, 1]} : vector<8x32xbf16> to vector<8x8xbf16>
    %cst_71 = arith.constant dense<0.000000e+00> : vector<8x8xf32>
    %150 = tpu.matmul %148, %149, %cst_71 {dimension_numbers = #tpu.dot_dimension_numbers<[1], [1], [0], [0], [0, 0, 1, 0], [], []>} : vector<8x8xbf16>, vector<8x8xbf16>, vector<8x8xf32> -> vector<8x8xf32>
    %151 = arith.addf %150, %147 : vector<8x8xf32>
    %cst_72 = arith.constant dense<0xFF800000> : vector<8xf32>
    %152 = vector.multi_reduction <maximumf>, %151, %cst_72 [1] : vector<8x8xf32> to vector<8xf32>
    %153 = vector.shape_cast %152 : vector<8xf32> to vector<8x1xf32>
    %154 = vector.broadcast %153 : vector<8x1xf32> to vector<8x8xf32>
    %155 = arith.subf %151, %154 : vector<8x8xf32>
    %156 = math.exp %155 : vector<8x8xf32>
    %cst_73 = arith.constant dense<0.000000e+00> : vector<8xf32>
    %157 = vector.multi_reduction <add>, %156, %cst_73 [1] : vector<8x8xf32> to vector<8xf32>
    %158 = vector.shape_cast %157 : vector<8xf32> to vector<8x1xf32>
    %159 = tpu.reciprocal %158 {approx = true} : vector<8x1xf32> -> vector<8x1xf32>
    %160 = vector.broadcast %159 : vector<8x1xf32> to vector<8x8xf32>
    %161 = arith.mulf %156, %160 : vector<8x8xf32>
    %162 = arith.truncf %161 : vector<8x8xf32> to vector<8x8xbf16>
    %163 = vector.extract_strided_slice %145 {offsets = [0, 0], sizes = [8, 8], strides = [1, 1]} : vector<8x32xbf16> to vector<8x8xbf16>
    %cst_74 = arith.constant dense<0.000000e+00> : vector<8x8xf32>
    %164 = tpu.matmul %162, %163, %cst_74 {dimension_numbers = #tpu.dot_dimension_numbers<[1], [0], [0], [1], [0, 0, 1, 1], [], []>} : vector<8x8xbf16>, vector<8x8xbf16>, vector<8x8xf32> -> vector<8x8xf32>
    %165 = arith.truncf %164 : vector<8x8xf32> to vector<8x8xbf16>
    %c0_75 = arith.constant 0 : index
    %c0_76 = arith.constant 0 : index
    %166 = vector.load %arg19[%c0_75, %c0_76] : memref<8x32xbf16, #tpu.memory_space<vmem>>, vector<8x8xbf16>
    tpu.vector_store %arg19[%c0_75, %c0_76], %165 {strides = array<i32>} : memref<8x32xbf16, #tpu.memory_space<vmem>>, vector<8x8xbf16>,
    %167 = vector.extract_strided_slice %141 {offsets = [0, 8], sizes = [8, 8], strides = [1, 1]} : vector<8x32xbf16> to vector<8x8xbf16>
    %168 = vector.extract_strided_slice %143 {offsets = [0, 8], sizes = [8, 8], strides = [1, 1]} : vector<8x32xbf16> to vector<8x8xbf16>
    %cst_77 = arith.constant dense<0.000000e+00> : vector<8x8xf32>
    %169 = tpu.matmul %167, %168, %cst_77 {dimension_numbers = #tpu.dot_dimension_numbers<[1], [1], [0], [0], [0, 0, 1, 0], [], []>} : vector<8x8xbf16>, vector<8x8xbf16>, vector<8x8xf32> -> vector<8x8xf32>
    %170 = arith.addf %169, %147 : vector<8x8xf32>
    %cst_78 = arith.constant dense<0xFF800000> : vector<8xf32>
    %171 = vector.multi_reduction <maximumf>, %170, %cst_78 [1] : vector<8x8xf32> to vector<8xf32>
    %172 = vector.shape_cast %171 : vector<8xf32> to vector<8x1xf32>
    %173 = vector.broadcast %172 : vector<8x1xf32> to vector<8x8xf32>
    %174 = arith.subf %170, %173 : vector<8x8xf32>
    %175 = math.exp %174 : vector<8x8xf32>
    %cst_79 = arith.constant dense<0.000000e+00> : vector<8xf32>
    %176 = vector.multi_reduction <add>, %175, %cst_79 [1] : vector<8x8xf32> to vector<8xf32>
    %177 = vector.shape_cast %176 : vector<8xf32> to vector<8x1xf32>
    %178 = tpu.reciprocal %177 {approx = true} : vector<8x1xf32> -> vector<8x1xf32>
    %179 = vector.broadcast %178 : vector<8x1xf32> to vector<8x8xf32>
    %180 = arith.mulf %175, %179 : vector<8x8xf32>
    %181 = arith.truncf %180 : vector<8x8xf32> to vector<8x8xbf16>
    %182 = vector.extract_strided_slice %145 {offsets = [0, 8], sizes = [8, 8], strides = [1, 1]} : vector<8x32xbf16> to vector<8x8xbf16>
    %cst_80 = arith.constant dense<0.000000e+00> : vector<8x8xf32>
    %183 = tpu.matmul %181, %182, %cst_80 {dimension_numbers = #tpu.dot_dimension_numbers<[1], [0], [0], [1], [0, 0, 1, 1], [], []>} : vector<8x8xbf16>, vector<8x8xbf16>, vector<8x8xf32> -> vector<8x8xf32>
    %184 = arith.truncf %183 : vector<8x8xf32> to vector<8x8xbf16>
    %c0_81 = arith.constant 0 : index
    %c8_82 = arith.constant 8 : index
    %185 = vector.load %arg19[%c0_81, %c8_82] : memref<8x32xbf16, #tpu.memory_space<vmem>>, vector<8x8xbf16>
    tpu.vector_store %arg19[%c0_81, %c8_82], %184 {strides = array<i32>} : memref<8x32xbf16, #tpu.memory_space<vmem>>, vector<8x8xbf16>,
    %186 = vector.extract_strided_slice %141 {offsets = [0, 16], sizes = [8, 8], strides = [1, 1]} : vector<8x32xbf16> to vector<8x8xbf16>
    %187 = vector.extract_strided_slice %143 {offsets = [0, 16], sizes = [8, 8], strides = [1, 1]} : vector<8x32xbf16> to vector<8x8xbf16>
    %cst_83 = arith.constant dense<0.000000e+00> : vector<8x8xf32>
    %188 = tpu.matmul %186, %187, %cst_83 {dimension_numbers = #tpu.dot_dimension_numbers<[1], [1], [0], [0], [0, 0, 1, 0], [], []>} : vector<8x8xbf16>, vector<8x8xbf16>, vector<8x8xf32> -> vector<8x8xf32>
    %189 = arith.addf %188, %147 : vector<8x8xf32>
    %cst_84 = arith.constant dense<0xFF800000> : vector<8xf32>
    %190 = vector.multi_reduction <maximumf>, %189, %cst_84 [1] : vector<8x8xf32> to vector<8xf32>
    %191 = vector.shape_cast %190 : vector<8xf32> to vector<8x1xf32>
    %192 = vector.broadcast %191 : vector<8x1xf32> to vector<8x8xf32>
    %193 = arith.subf %189, %192 : vector<8x8xf32>
    %194 = math.exp %193 : vector<8x8xf32>
    %cst_85 = arith.constant dense<0.000000e+00> : vector<8xf32>
    %195 = vector.multi_reduction <add>, %194, %cst_85 [1] : vector<8x8xf32> to vector<8xf32>
    %196 = vector.shape_cast %195 : vector<8xf32> to vector<8x1xf32>
    %197 = tpu.reciprocal %196 {approx = true} : vector<8x1xf32> -> vector<8x1xf32>
    %198 = vector.broadcast %197 : vector<8x1xf32> to vector<8x8xf32>
    %199 = arith.mulf %194, %198 : vector<8x8xf32>
    %200 = arith.truncf %199 : vector<8x8xf32> to vector<8x8xbf16>
    %201 = vector.extract_strided_slice %145 {offsets = [0, 16], sizes = [8, 8], strides = [1, 1]} : vector<8x32xbf16> to vector<8x8xbf16>
    %cst_86 = arith.constant dense<0.000000e+00> : vector<8x8xf32>
    %202 = tpu.matmul %200, %201, %cst_86 {dimension_numbers = #tpu.dot_dimension_numbers<[1], [0], [0], [1], [0, 0, 1, 1], [], []>} : vector<8x8xbf16>, vector<8x8xbf16>, vector<8x8xf32> -> vector<8x8xf32>
    %203 = arith.truncf %202 : vector<8x8xf32> to vector<8x8xbf16>
    %c0_87 = arith.constant 0 : index
    %c16_88 = arith.constant 16 : index
    %204 = vector.load %arg19[%c0_87, %c16_88] : memref<8x32xbf16, #tpu.memory_space<vmem>>, vector<8x8xbf16>
    tpu.vector_store %arg19[%c0_87, %c16_88], %203 {strides = array<i32>} : memref<8x32xbf16, #tpu.memory_space<vmem>>, vector<8x8xbf16>,
    %205 = vector.extract_strided_slice %141 {offsets = [0, 24], sizes = [8, 8], strides = [1, 1]} : vector<8x32xbf16> to vector<8x8xbf16>
    %206 = vector.extract_strided_slice %143 {offsets = [0, 24], sizes = [8, 8], strides = [1, 1]} : vector<8x32xbf16> to vector<8x8xbf16>
    %cst_89 = arith.constant dense<0.000000e+00> : vector<8x8xf32>
    %207 = tpu.matmul %205, %206, %cst_89 {dimension_numbers = #tpu.dot_dimension_numbers<[1], [1], [0], [0], [0, 0, 1, 0], [], []>} : vector<8x8xbf16>, vector<8x8xbf16>, vector<8x8xf32> -> vector<8x8xf32>
    %208 = arith.addf %207, %147 : vector<8x8xf32>
    %cst_90 = arith.constant dense<0xFF800000> : vector<8xf32>
    %209 = vector.multi_reduction <maximumf>, %208, %cst_90 [1] : vector<8x8xf32> to vector<8xf32>
    %210 = vector.shape_cast %209 : vector<8xf32> to vector<8x1xf32>
    %211 = vector.broadcast %210 : vector<8x1xf32> to vector<8x8xf32>
    %212 = arith.subf %208, %211 : vector<8x8xf32>
    %213 = math.exp %212 : vector<8x8xf32>
    %cst_91 = arith.constant dense<0.000000e+00> : vector<8xf32>
    %214 = vector.multi_reduction <add>, %213, %cst_91 [1] : vector<8x8xf32> to vector<8xf32>
    %215 = vector.shape_cast %214 : vector<8xf32> to vector<8x1xf32>
    %216 = tpu.reciprocal %215 {approx = true} : vector<8x1xf32> -> vector<8x1xf32>
    %217 = vector.broadcast %216 : vector<8x1xf32> to vector<8x8xf32>
    %218 = arith.mulf %213, %217 : vector<8x8xf32>
    %219 = arith.truncf %218 : vector<8x8xf32> to vector<8x8xbf16>
    %220 = vector.extract_strided_slice %145 {offsets = [0, 24], sizes = [8, 8], strides = [1, 1]} : vector<8x32xbf16> to vector<8x8xbf16>
    %cst_92 = arith.constant dense<0.000000e+00> : vector<8x8xf32>
    %221 = tpu.matmul %219, %220, %cst_92 {dimension_numbers = #tpu.dot_dimension_numbers<[1], [0], [0], [1], [0, 0, 1, 1], [], []>} : vector<8x8xbf16>, vector<8x8xbf16>, vector<8x8xf32> -> vector<8x8xf32>
    %222 = arith.truncf %221 : vector<8x8xf32> to vector<8x8xbf16>
    %c0_93 = arith.constant 0 : index
    %c24_94 = arith.constant 24 : index
    %223 = vector.load %arg19[%c0_93, %c24_94] : memref<8x32xbf16, #tpu.memory_space<vmem>>, vector<8x8xbf16>
    tpu.vector_store %arg19[%c0_93, %c24_94], %222 {strides = array<i32>} : memref<8x32xbf16, #tpu.memory_space<vmem>>, vector<8x8xbf16>,
    %c0_95 = arith.constant 0 : index
    %c0_96 = arith.constant 0 : index
    %224 = vector.load %arg19[%c0_95, %c0_96] : memref<8x32xbf16, #tpu.memory_space<vmem>>, vector<8x32xbf16>
    %cst_97 = arith.constant dense<0.000000e+00> : vector<8x32xf32>
    %225 = tpu.matmul %224, %135, %cst_97 {dimension_numbers = #tpu.dot_dimension_numbers<[1], [0], [0], [1], [0, 0, 1, 1], [], []>} : vector<8x32xbf16>, vector<32x32xbf16>, vector<8x32xf32> -> vector<8x32xf32>
    %226 = vector.broadcast %136 : vector<1x32xf32> to vector<8x32xf32>
    %227 = arith.addf %225, %226 : vector<8x32xf32>
    %228 = arith.addf %116, %227 : vector<8x32xf32>
    %229 = arith.mulf %228, %228 : vector<8x32xf32>
    %cst_98 = arith.constant dense<0.000000e+00> : vector<8xf32>
    %230 = vector.multi_reduction <add>, %229, %cst_98 [1] : vector<8x32xf32> to vector<8xf32>
    %231 = vector.shape_cast %230 : vector<8xf32> to vector<8x1xf32>
    %232 = vector.broadcast %2 : f32 to vector<8x32xf32>
    %233 = arith.mulf %232, %228 : vector<8x32xf32>
    %cst_99 = arith.constant 1.000000e-10 : f32
    %234 = vector.broadcast %cst_99 : f32 to vector<8x1xf32>
    %235 = arith.maximumf %231, %234 : vector<8x1xf32>
    %236 = math.rsqrt %235 : vector<8x1xf32>
    %237 = vector.broadcast %236 : vector<8x1xf32> to vector<8x32xf32>
    %238 = arith.mulf %233, %237 : vector<8x32xf32>
    %239 = arith.truncf %238 : vector<8x32xf32> to vector<8x32xbf16>
    %cst_100 = arith.constant 0.000000e+00 : f32
    %240 = vector.broadcast %cst_100 : f32 to vector<8x32xf32>
    %c0_101 = arith.constant 0 : index
    %c0_102 = arith.constant 0 : index
    %241 = vector.load %arg11[%c0_101, %c0_102] : memref<32x64xbf16, #tpu.memory_space<vmem>>, vector<32x64xbf16>
    %cst_103 = arith.constant dense<0.000000e+00> : vector<8x64xf32>
    %242 = tpu.matmul %239, %241, %cst_103 {dimension_numbers = #tpu.dot_dimension_numbers<[1], [0], [0], [1], [0, 0, 1, 1], [], []>} : vector<8x32xbf16>, vector<32x64xbf16>, vector<8x64xf32> -> vector<8x64xf32>
    %c0_104 = arith.constant 0 : index
    %c0_105 = arith.constant 0 : index
    %243 = vector.load %arg12[%c0_104, %c0_105] : memref<1x64xf32, #tpu.memory_space<vmem>>, vector<1x64xf32>
    %244 = vector.broadcast %243 : vector<1x64xf32> to vector<8x64xf32>
    %245 = arith.addf %242, %244 : vector<8x64xf32>
    %cst_106 = arith.constant 0.000000e+00 : f32
    %246 = vector.broadcast %cst_106 : f32 to vector<8x64xf32>
    %247 = arith.maximumf %245, %246 : vector<8x64xf32>
    %c0_107 = arith.constant 0 : index
    %c0_108 = arith.constant 0 : index
    %248 = vector.load %arg13[%c0_107, %c0_108] : memref<64x32xbf16, #tpu.memory_space<vmem>>, vector<64x32xbf16>
    %249 = arith.truncf %247 : vector<8x64xf32> to vector<8x64xbf16>
    %cst_109 = arith.constant dense<0.000000e+00> : vector<8x32xf32>
    %250 = tpu.matmul %249, %248, %cst_109 {dimension_numbers = #tpu.dot_dimension_numbers<[1], [0], [0], [1], [0, 0, 1, 1], [], []>} : vector<8x64xbf16>, vector<64x32xbf16>, vector<8x32xf32> -> vector<8x32xf32>
    %251 = arith.addf %240, %250 : vector<8x32xf32>
    %252 = arith.addf %228, %251 : vector<8x32xf32>
    %c0_110 = arith.constant 0 : index
    %c0_111 = arith.constant 0 : index
    %253 = vector.load %arg14[%c0_110, %c0_111] : memref<1x32xf32, #tpu.memory_space<vmem>>, vector<1x32xf32>
    %254 = vector.broadcast %253 : vector<1x32xf32> to vector<8x32xf32>
    %255 = arith.addf %252, %254 : vector<8x32xf32>
    %c0_112 = arith.constant 0 : index
    %c0_113 = arith.constant 0 : index
    %c0_114 = arith.constant 0 : index
    %256 = vector.load %arg16[%c0_112, %c0_113, %c0_114] : memref<1x8x32xf32, #tpu.memory_space<vmem>>, vector<1x8x32xf32>
    %257 = vector.shape_cast %256 : vector<1x8x32xf32> to vector<8x32xf32>
    %258 = vector.shape_cast %255 : vector<8x32xf32> to vector<1x8x32xf32>
    tpu.vector_store %arg16[%c0_112, %c0_113, %c0_114], %258 {strides = array<i32>} : memref<1x8x32xf32, #tpu.memory_space<vmem>>, vector<1x8x32xf32>,
    return
  }
  func.func @transform_0(%arg0: i32, %arg1: i32) -> (i32, i32, i32) {
    %c0_i32 = arith.constant 0 : i32
    %c0_i32_0 = arith.constant 0 : i32
    %c0_i32_1 = arith.constant 0 : i32
    return %arg0, %c0_i32, %c0_i32_0 : i32, i32, i32
  }
  func.func @transform_1(%arg0: i32, %arg1: i32) -> (i32, i32, i32) {
    %c0_i32 = arith.constant 0 : i32
    %c0_i32_0 = arith.constant 0 : i32
    return %arg0, %arg1, %c0_i32 : i32, i32, i32
  }
  func.func @transform_2(%arg0: i32, %arg1: i32) -> (i32, i32, i32) {
    %c0_i32 = arith.constant 0 : i32
    %c0_i32_0 = arith.constant 0 : i32
    %c0_i32_1 = arith.constant 0 : i32
    return %arg0, %c0_i32, %c0_i32_0 : i32, i32, i32
  }
  func.func @transform_3(%arg0: i32, %arg1: i32) -> (i32, i32) {
    %c0_i32 = arith.constant 0 : i32
    %c0_i32_0 = arith.constant 0 : i32
    return %arg1, %c0_i32 : i32, i32
  }
  func.func @transform_4(%arg0: i32, %arg1: i32) -> (i32, i32, i32) {
    %c0_i32 = arith.constant 0 : i32
    %c0_i32_0 = arith.constant 0 : i32
    %c0_i32_1 = arith.constant 0 : i32
    return %arg0, %c0_i32, %c0_i32_0 : i32, i32, i32
  }
  func.func @transform_5(%arg0: i32, %arg1: i32) -> (i32, i32, i32) {
    %c0_i32 = arith.constant 0 : i32
    %c0_i32_0 = arith.constant 0 : i32
    %c0_i32_1 = arith.constant 0 : i32
    %c0_i32_2 = arith.constant 0 : i32
    return %c0_i32, %c0_i32_0, %c0_i32_1 : i32, i32, i32
  }
  func.func @transform_6(%arg0: i32, %arg1: i32) -> (i32, i32) {
    %c0_i32 = arith.constant 0 : i32
    %c0_i32_0 = arith.constant 0 : i32
    %c0_i32_1 = arith.constant 0 : i32
    return %c0_i32, %c0_i32_0 : i32, i32
  }
  func.func @transform_7(%arg0: i32, %arg1: i32) -> (i32, i32, i32) {
    %c0_i32 = arith.constant 0 : i32
    %c0_i32_0 = arith.constant 0 : i32
    %c0_i32_1 = arith.constant 0 : i32
    %c0_i32_2 = arith.constant 0 : i32
    return %c0_i32, %c0_i32_0, %c0_i32_1 : i32, i32, i32
  }
  func.func @transform_8(%arg0: i32, %arg1: i32) -> (i32, i32) {
    %c0_i32 = arith.constant 0 : i32
    %c0_i32_0 = arith.constant 0 : i32
    %c0_i32_1 = arith.constant 0 : i32
    return %c0_i32, %c0_i32_0 : i32, i32
  }
  func.func @transform_9(%arg0: i32, %arg1: i32) -> (i32, i32) {
    %c0_i32 = arith.constant 0 : i32
    %c0_i32_0 = arith.constant 0 : i32
    %c0_i32_1 = arith.constant 0 : i32
    return %c0_i32, %c0_i32_0 : i32, i32
  }
  func.func @transform_10(%arg0: i32, %arg1: i32) -> (i32, i32) {
    %c0_i32 = arith.constant 0 : i32
    %c0_i32_0 = arith.constant 0 : i32
    %c0_i32_1 = arith.constant 0 : i32
    return %c0_i32, %c0_i32_0 : i32, i32
  }
  func.func @transform_11(%arg0: i32, %arg1: i32) -> (i32, i32) {
    %c0_i32 = arith.constant 0 : i32
    %c0_i32_0 = arith.constant 0 : i32
    %c0_i32_1 = arith.constant 0 : i32
    return %c0_i32, %c0_i32_0 : i32, i32
  }
  func.func @transform_12(%arg0: i32, %arg1: i32) -> (i32, i32) {
    %c0_i32 = arith.constant 0 : i32
    %c0_i32_0 = arith.constant 0 : i32
    %c0_i32_1 = arith.constant 0 : i32
    return %c0_i32, %c0_i32_0 : i32, i32
  }
  func.func @transform_13(%arg0: i32, %arg1: i32) -> i32 {
    %c0_i32 = arith.constant 0 : i32
    %c0_i32_0 = arith.constant 0 : i32
    return %c0_i32 : i32
  }
  func.func @transform_14(%arg0: i32, %arg1: i32) -> (i32, i32, i32) {
    %c0_i32 = arith.constant 0 : i32
    %c0_i32_0 = arith.constant 0 : i32
    return %arg0, %arg1, %c0_i32 : i32, i32, i32
  }
}

</mosaic_0001>

<llo_original>
// kernel: tpu_custom_call.1
$region0: #{tpu_custom_call.1}
  #allocation0 [shape = 'u32[]', space=smem, size = 0x4, offset = 0x4, fixed_abs, tag = 'smem constant byte address 0x4 - core index']
  #allocation1 [shape = 'u32[144,128]{1,0:T(1,128)}', space=vmem, size = 0x12000, scoped, tag = 'internal scratch']
  #allocation2 [shape = 'bf16[2,8,32]{2,1,0:T(8,128)(2,1)}', space=vmem, size = 0x1000, scoped, tag = 'scratch operand']
  #allocation3 [shape = 'bf16[2,8,32]{2,1,0:T(8,128)(2,1)}', space=vmem, size = 0x1000, scoped, tag = 'scratch operand']
  #allocation4 [shape = 'bf16[8,32]{1,0:T(8,128)(2,1)}', space=vmem, size = 0x800, scoped, tag = 'scratch operand']
  %s0 = inlined_call_operand.vmem [shape: bf16[2,8,32], index: 0, kind: input, shape index: {}]
  %s1 = inlined_call_operand.vmem [shape: f32[2,8,32], index: 1, kind: input, shape index: {}]
  %s2 = inlined_call_operand.vmem [shape: bf16[2,8,32], index: 2, kind: input, shape index: {}]
  %s3 = inlined_call_operand.hbm [shape: f32[8,8], index: 3, kind: input, shape index: {}]
  %s4 = inlined_call_operand.hbm [shape: f32[2,1,8], index: 4, kind: input, shape index: {}]
  %s5 = inlined_call_operand.hbm [shape: bf16[4,32,32], index: 5, kind: input, shape index: {}]
  %s6 = inlined_call_operand.vmem [shape: f32[4,32], index: 6, kind: input, shape index: {}]
  %s7 = inlined_call_operand.hbm [shape: bf16[4,32,32], index: 7, kind: input, shape index: {}]
  %s8 = inlined_call_operand.hbm [shape: f32[4,32], index: 8, kind: input, shape index: {}]
  %s9 = inlined_call_operand.vmem [shape: bf16[32,64], index: 9, kind: input, shape index: {}]
  %s10 = inlined_call_operand.hbm [shape: f32[1,64], index: 10, kind: input, shape index: {}]
  %s11 = inlined_call_operand.vmem [shape: bf16[64,32], index: 11, kind: input, shape index: {}]
  %s12 = inlined_call_operand.vmem [shape: f32[1,32], index: 12, kind: input, shape index: {}]
  %s13 = inlined_call_operand.vmem [shape: f32[3], index: 13, kind: input, shape index: {}]
  %s14 = inlined_call_operand.hbm [shape: f32[2,8,32], index: 14, kind: output, shape index: {}]
  %s15 = sld [smem:[#allocation0]]
  $region121: #{tpu_custom_call.1} parent=0
    _
  %s17 = ssub.s32 1, %s15
  %s18 = scalar_select 0, %s17, %s15
  $region1: #{tpu_custom_call.1} parent=0
    #allocation5 [shape = 'u8[4096]{0}', space=vmem, size = 0x1000, scoped, tag = 'input window, operand 3, single buffered']
    #allocation6 [shape = 's32[2]{0}', space=sflag, size = 0x8, scoped, tag = 'scoped memory for tpu_custom_call.1']
    #allocation7 [shape = 's32[2]{0}', space=sflag, size = 0x8, scoped, tag = 'scoped memory for tpu_custom_call.1']
    #allocation8 [shape = 's32[2]{0}', space=sflag, size = 0x8, scoped, tag = 'scoped memory for tpu_custom_call.1']
    #allocation9 [shape = 'u8[1024]{0}', space=vmem, size = 0x400, scoped, tag = 'input window, operand 4']
    #allocation10 [shape = 's32[2]{0}', space=sflag, size = 0x8, scoped, tag = 'scoped memory for tpu_custom_call.1']
    #allocation11 [shape = 'u8[32768]{0}', space=vmem, size = 0x8000, scoped, tag = 'input window, operand 5, single buffered']
    #allocation12 [shape = 'u8[32768]{0}', space=vmem, size = 0x8000, scoped, tag = 'input window, operand 7, single buffered']
    #allocation13 [shape = 's32[1]{0}', space=sflag, size = 0x4, scoped, tag = 'scoped memory for tpu_custom_call.1']
    #allocation14 [shape = 'u8[2048]{0}', space=vmem, size = 0x800, scoped, tag = 'input window, operand 8, single buffered']
    #allocation15 [shape = 'u8[512]{0}', space=vmem, size = 0x400, scoped, tag = 'input window, operand 10, single buffered']
    #allocation16 [shape = 's32[1]{0}', space=sflag, size = 0x4, scoped, tag = 'scoped memory for tpu_custom_call.1']
    #allocation17 [shape = 'u8[512]{0}', space=smem, size = 0x200, scoped, tag = 'input window, operand 13, single buffered']
    #allocation18 [shape = 'u8[8192]{0}', space=vmem, size = 0x2000, scoped, tag = 'output window, operand 0']
    %19 = vsyncpa [#allocation6], 0
    %20 = vsyncpa [#allocation10], 0
    %s21 = scalar_lea.sflag [#allocation10], 1
    %22 = vsyncpa %s21, 0
    %23 = vsyncpa [#allocation13], 0
    %24 = vsyncpa [#allocation16], 0
    %25 = vsyncpa [#allocation8], 0
    %26 = vsyncpa [#allocation7], 0
    %s27 = scalar_lea.sflag [#allocation7], 1
    %28 = vsyncpa %s27, 0
    loop: start=0, step=1, limit=4
    $region2: #{tpu_custom_call.1} parent=1 // loop_pre_header
      _
    $region3: #{tpu_custom_call.1} parent=1 // loop_header
      %s30 = sphi 0, %s34
      %p31 = scmp.ge.s32.totalorder %s30, 4
      %s37 = sphi 0, %s49
      %s38 = sphi 0, %s45
      %s39 = sphi 0, %s37
      %s40 = sphi 0, %s38
      %s41 = sphi 0, %s39
      %s42 = sphi 0, %s40
      %s52 = sphi 0, %s54
      %s55 = sphi 0, %s52
      %s56 = sphi 0, %s55
      %s72 = sphi 0, %s56
      %s80 = sphi 0, %s82
      %s83 = sphi 0, %s80
      %s84 = sphi 0, %s83
      %s100 = sphi 0, %s84
      %s106 = sphi 0, %s108
      %s109 = sphi 0, %s106
      %s110 = sphi 0, %s109
      %s126 = sphi 0, %s110
      %s132 = sphi 0, %s134
      %s135 = sphi 0, %s132
      %s136 = sphi 0, %s135
      %s152 = sphi 0, %s136
      %s158 = sphi 0, %s160
      %s161 = sphi 0, %s158
      %s162 = sphi 0, %s161
      %s178 = sphi 0, %s162
      %s182 = sphi 0, %s182
      %s184 = sphi 0, %s182
      %s185 = sphi 0, %s184
      %s199 = sphi 0, %s185
      %s203 = sphi 0, %s203
      %s205 = sphi 0, %s203
      %s206 = sphi 0, %s205
      %s220 = sphi 0, %s206
      %s224 = sphi 0, %s224
      %s226 = sphi 0, %s224
      %s227 = sphi 0, %s226
      %s241 = sphi 0, %s227
      %s245 = sphi 0, %s245
      %s247 = sphi 0, %s245
      %s248 = sphi 0, %s247
      %s262 = sphi 0, %s248
      %s266 = sphi 0, %s266
      %s268 = sphi 0, %s266
      %s269 = sphi 0, %s268
      %s283 = sphi 0, %s269
      %s287 = sphi 0, %s287
      %s289 = sphi 0, %s287
      %s290 = sphi 0, %s289
      %s304 = sphi 0, %s290
      %s308 = sphi 0, %s308
      %s310 = sphi 0, %s308
      %s311 = sphi 0, %s310
      %s325 = sphi 0, %s311
      %s329 = sphi 0, %s329
      %s331 = sphi 0, %s329
      %s332 = sphi 0, %s331
      %s346 = sphi 0, %s332
      %s350 = sphi 0, %s350
      %s352 = sphi 0, %s350
      %s353 = sphi 0, %s352
      %s367 = sphi 0, %s353
      %s375 = sphi 0, %s377
      %s378 = sphi 0, %s375
      %s379 = sphi 0, %s378
      %s395 = sphi 0, %s379
    $region4: #{tpu_custom_call.1} parent=1 // loop_header_branch
      %33 = sbr.rel (%p31) target = $region8
    $region5: #{tpu_custom_call.1} parent=1 // loop_body
      %s35 = ssub.s32 %s30, 1
      %s36 = ssub.s32 %s30, 2
      %s43 = sadd.s32 1, %s38
      %p44 = scmp.ge.s32.totalorder %s43, 1
      %s45 = scalar_select %p44, 0, %s43
      %s46 = sadd.s32 1, %s37
      %s47 = scalar_select %p44, %s46, %s37
      %p48 = scmp.ge.s32.totalorder %s47, 2
      %s49 = scalar_select %p48, 0, %s47
      %s50 = ssub.s32 %s37, %s49
      %p51 = scmp.eq.s32.totalorder %s50, 0
      %s53 = sadd.s32 %s52, 1
      %s54 = scalar_select %p51, %s52, %s53
      %p57 = pneg %p51
      %p58 = scmp.eq.s32.totalorder %s30, 1
      %p59 = por %p57, %p58
      %p60 = scmp.ne.s32.totalorder %s52, %s55
      %p61 = scmp.eq.s32.totalorder %s30, 0
      %p62 = por %p60, %p61
      %p63 = scmp.ne.s32.totalorder %s52, %s55
      %p64 = scmp.eq.s32.totalorder %s35, 1
      %p65 = por %p63, %p64
      %p66 = scmp.ne.s32.totalorder %s55, %s56
      %p67 = scmp.eq.s32.totalorder %s35, 0
      %p68 = por %p66, %p67
      %p69 = scmp.ne.s32.totalorder %s55, %s56
      %p70 = scmp.eq.s32.totalorder %s36, 1
      %p71 = por %p69, %p70
      %p73 = scmp.ne.s32.totalorder %s56, %s72
      %p74 = scmp.eq.s32.totalorder %s36, 0
      %p75 = por %p73, %p74
      %s76 = ssub.s32 %s37, %s49
      %s77 = ssub.s32 %s38, %s45
      %s78 = sor.u32 %s76, %s77
      %p79 = scmp.eq.s32.totalorder %s78, 0
      %s81 = sadd.s32 %s80, 1
      %s82 = scalar_select %p79, %s80, %s81
      %p85 = pneg %p79
      %p86 = scmp.eq.s32.totalorder %s30, 1
      %p87 = por %p85, %p86
      %p88 = scmp.ne.s32.totalorder %s80, %s83
      %p89 = scmp.eq.s32.totalorder %s30, 0
      %p90 = por %p88, %p89
      %p91 = scmp.ne.s32.totalorder %s80, %s83
      %p92 = scmp.eq.s32.totalorder %s35, 1
      %p93 = por %p91, %p92
      %p94 = scmp.ne.s32.totalorder %s83, %s84
      %p95 = scmp.eq.s32.totalorder %s35, 0
      %p96 = por %p94, %p95
      %p97 = scmp.ne.s32.totalorder %s83, %s84
      %p98 = scmp.eq.s32.totalorder %s36, 1
      %p99 = por %p97, %p98
      %p101 = scmp.ne.s32.totalorder %s84, %s100
      %p102 = scmp.eq.s32.totalorder %s36, 0
      %p103 = por %p101, %p102
      %s104 = ssub.s32 %s37, %s49
      %p105 = scmp.eq.s32.totalorder %s104, 0
      %s107 = sadd.s32 %s106, 1
      %s108 = scalar_select %p105, %s106, %s107
      %p111 = pneg %p105
      %p112 = scmp.eq.s32.totalorder %s30, 1
      %p113 = por %p111, %p112
      %p114 = scmp.ne.s32.totalorder %s106, %s109
      %p115 = scmp.eq.s32.totalorder %s30, 0
      %p116 = por %p114, %p115
      %p117 = scmp.ne.s32.totalorder %s106, %s109
      %p118 = scmp.eq.s32.totalorder %s35, 1
      %p119 = por %p117, %p118
      %p120 = scmp.ne.s32.totalorder %s109, %s110
      %p121 = scmp.eq.s32.totalorder %s35, 0
      %p122 = por %p120, %p121
      %p123 = scmp.ne.s32.totalorder %s109, %s110
      %p124 = scmp.eq.s32.totalorder %s36, 1
      %p125 = por %p123, %p124
      %p127 = scmp.ne.s32.totalorder %s110, %s126
      %p128 = scmp.eq.s32.totalorder %s36, 0
      %p129 = por %p127, %p128
      %s130 = ssub.s32 %s38, %s45
      %p131 = scmp.eq.s32.totalorder %s130, 0
      %s133 = sadd.s32 %s132, 1
      %s134 = scalar_select %p131, %s132, %s133
      %p137 = pneg %p131
      %p138 = scmp.eq.s32.totalorder %s30, 1
      %p139 = por %p137, %p138
      %p140 = scmp.ne.s32.totalorder %s132, %s135
      %p141 = scmp.eq.s32.totalorder %s30, 0
      %p142 = por %p140, %p141
      %p143 = scmp.ne.s32.totalorder %s132, %s135
      %p144 = scmp.eq.s32.totalorder %s35, 1
      %p145 = por %p143, %p144
      %p146 = scmp.ne.s32.totalorder %s135, %s136
      %p147 = scmp.eq.s32.totalorder %s35, 0
      %p148 = por %p146, %p147
      %p149 = scmp.ne.s32.totalorder %s135, %s136
      %p150 = scmp.eq.s32.totalorder %s36, 1
      %p151 = por %p149, %p150
      %p153 = scmp.ne.s32.totalorder %s136, %s152
      %p154 = scmp.eq.s32.totalorder %s36, 0
      %p155 = por %p153, %p154
      %s156 = ssub.s32 %s37, %s49
      %p157 = scmp.eq.s32.totalorder %s156, 0
      %s159 = sadd.s32 %s158, 1
      %s160 = scalar_select %p157, %s158, %s159
      %p163 = pneg %p157
      %p164 = scmp.eq.s32.totalorder %s30, 1
      %p165 = por %p163, %p164
      %p166 = scmp.ne.s32.totalorder %s158, %s161
      %p167 = scmp.eq.s32.totalorder %s30, 0
      %p168 = por %p166, %p167
      %p169 = scmp.ne.s32.totalorder %s158, %s161
      %p170 = scmp.eq.s32.totalorder %s35, 1
      %p171 = por %p169, %p170
      %p172 = scmp.ne.s32.totalorder %s161, %s162
      %p173 = scmp.eq.s32.totalorder %s35, 0
      %p174 = por %p172, %p173
      %p175 = scmp.ne.s32.totalorder %s161, %s162
      %p176 = scmp.eq.s32.totalorder %s36, 1
      %p177 = por %p175, %p176
      %p179 = scmp.ne.s32.totalorder %s162, %s178
      %p180 = scmp.eq.s32.totalorder %s36, 0
      %p181 = por %p179, %p180
      %s183 = sadd.s32 %s182, 1
      %p186 = scmp.eq.s32.totalorder %s30, 1
      %p187 = scmp.ne.s32.totalorder %s182, %s184
      %p188 = scmp.eq.s32.totalorder %s30, 0
      %p189 = por %p187, %p188
      %p190 = scmp.ne.s32.totalorder %s182, %s184
      %p191 = scmp.eq.s32.totalorder %s35, 1
      %p192 = por %p190, %p191
      %p193 = scmp.ne.s32.totalorder %s184, %s185
      %p194 = scmp.eq.s32.totalorder %s35, 0
      %p195 = por %p193, %p194
      %p196 = scmp.ne.s32.totalorder %s184, %s185
      %p197 = scmp.eq.s32.totalorder %s36, 1
      %p198 = por %p196, %p197
      %p200 = scmp.ne.s32.totalorder %s185, %s199
      %p201 = scmp.eq.s32.totalorder %s36, 0
      %p202 = por %p200, %p201
      %s204 = sadd.s32 %s203, 1
      %p207 = scmp.eq.s32.totalorder %s30, 1
      %p208 = scmp.ne.s32.totalorder %s203, %s205
      %p209 = scmp.eq.s32.totalorder %s30, 0
      %p210 = por %p208, %p209
      %p211 = scmp.ne.s32.totalorder %s203, %s205
      %p212 = scmp.eq.s32.totalorder %s35, 1
      %p213 = por %p211, %p212
      %p214 = scmp.ne.s32.totalorder %s205, %s206
      %p215 = scmp.eq.s32.totalorder %s35, 0
      %p216 = por %p214, %p215
      %p217 = scmp.ne.s32.totalorder %s205, %s206
      %p218 = scmp.eq.s32.totalorder %s36, 1
      %p219 = por %p217, %p218
      %p221 = scmp.ne.s32.totalorder %s206, %s220
      %p222 = scmp.eq.s32.totalorder %s36, 0
      %p223 = por %p221, %p222
      %s225 = sadd.s32 %s224, 1
      %p228 = scmp.eq.s32.totalorder %s30, 1
      %p229 = scmp.ne.s32.totalorder %s224, %s226
      %p230 = scmp.eq.s32.totalorder %s30, 0
      %p231 = por %p229, %p230
      %p232 = scmp.ne.s32.totalorder %s224, %s226
      %p233 = scmp.eq.s32.totalorder %s35, 1
      %p234 = por %p232, %p233
      %p235 = scmp.ne.s32.totalorder %s226, %s227
      %p236 = scmp.eq.s32.totalorder %s35, 0
      %p237 = por %p235, %p236
      %p238 = scmp.ne.s32.totalorder %s226, %s227
      %p239 = scmp.eq.s32.totalorder %s36, 1
      %p240 = por %p238, %p239
      %p242 = scmp.ne.s32.totalorder %s227, %s241
      %p243 = scmp.eq.s32.totalorder %s36, 0
      %p244 = por %p242, %p243
      %s246 = sadd.s32 %s245, 1
      %p249 = scmp.eq.s32.totalorder %s30, 1
      %p250 = scmp.ne.s32.totalorder %s245, %s247
      %p251 = scmp.eq.s32.totalorder %s30, 0
      %p252 = por %p250, %p251
      %p253 = scmp.ne.s32.totalorder %s245, %s247
      %p254 = scmp.eq.s32.totalorder %s35, 1
      %p255 = por %p253, %p254
      %p256 = scmp.ne.s32.totalorder %s247, %s248
      %p257 = scmp.eq.s32.totalorder %s35, 0
      %p258 = por %p256, %p257
      %p259 = scmp.ne.s32.totalorder %s247, %s248
      %p260 = scmp.eq.s32.totalorder %s36, 1
      %p261 = por %p259, %p260
      %p263 = scmp.ne.s32.totalorder %s248, %s262
      %p264 = scmp.eq.s32.totalorder %s36, 0
      %p265 = por %p263, %p264
      %s267 = sadd.s32 %s266, 1
      %p270 = scmp.eq.s32.totalorder %s30, 1
      %p271 = scmp.ne.s32.totalorder %s266, %s268
      %p272 = scmp.eq.s32.totalorder %s30, 0
      %p273 = por %p271, %p272
      %p274 = scmp.ne.s32.totalorder %s266, %s268
      %p275 = scmp.eq.s32.totalorder %s35, 1
      %p276 = por %p274, %p275
      %p277 = scmp.ne.s32.totalorder %s268, %s269
      %p278 = scmp.eq.s32.totalorder %s35, 0
      %p279 = por %p277, %p278
      %p280 = scmp.ne.s32.totalorder %s268, %s269
      %p281 = scmp.eq.s32.totalorder %s36, 1
      %p282 = por %p280, %p281
      %p284 = scmp.ne.s32.totalorder %s269, %s283
      %p285 = scmp.eq.s32.totalorder %s36, 0
      %p286 = por %p284, %p285
      %s288 = sadd.s32 %s287, 1
      %p291 = scmp.eq.s32.totalorder %s30, 1
      %p292 = scmp.ne.s32.totalorder %s287, %s289
      %p293 = scmp.eq.s32.totalorder %s30, 0
      %p294 = por %p292, %p293
      %p295 = scmp.ne.s32.totalorder %s287, %s289
      %p296 = scmp.eq.s32.totalorder %s35, 1
      %p297 = por %p295, %p296
      %p298 = scmp.ne.s32.totalorder %s289, %s290
      %p299 = scmp.eq.s32.totalorder %s35, 0
      %p300 = por %p298, %p299
      %p301 = scmp.ne.s32.totalorder %s289, %s290
      %p302 = scmp.eq.s32.totalorder %s36, 1
      %p303 = por %p301, %p302
      %p305 = scmp.ne.s32.totalorder %s290, %s304
      %p306 = scmp.eq.s32.totalorder %s36, 0
      %p307 = por %p305, %p306
      %s309 = sadd.s32 %s308, 1
      %p312 = scmp.eq.s32.totalorder %s30, 1
      %p313 = scmp.ne.s32.totalorder %s308, %s310
      %p314 = scmp.eq.s32.totalorder %s30, 0
      %p315 = por %p313, %p314
      %p316 = scmp.ne.s32.totalorder %s308, %s310
      %p317 = scmp.eq.s32.totalorder %s35, 1
      %p318 = por %p316, %p317
      %p319 = scmp.ne.s32.totalorder %s310, %s311
      %p320 = scmp.eq.s32.totalorder %s35, 0
      %p321 = por %p319, %p320
      %p322 = scmp.ne.s32.totalorder %s310, %s311
      %p323 = scmp.eq.s32.totalorder %s36, 1
      %p324 = por %p322, %p323
      %p326 = scmp.ne.s32.totalorder %s311, %s325
      %p327 = scmp.eq.s32.totalorder %s36, 0
      %p328 = por %p326, %p327
      %s330 = sadd.s32 %s329, 1
      %p333 = scmp.eq.s32.totalorder %s30, 1
      %p334 = scmp.ne.s32.totalorder %s329, %s331
      %p335 = scmp.eq.s32.totalorder %s30, 0
      %p336 = por %p334, %p335
      %p337 = scmp.ne.s32.totalorder %s329, %s331
      %p338 = scmp.eq.s32.totalorder %s35, 1
      %p339 = por %p337, %p338
      %p340 = scmp.ne.s32.totalorder %s331, %s332
      %p341 = scmp.eq.s32.totalorder %s35, 0
      %p342 = por %p340, %p341
      %p343 = scmp.ne.s32.totalorder %s331, %s332
      %p344 = scmp.eq.s32.totalorder %s36, 1
      %p345 = por %p343, %p344
      %p347 = scmp.ne.s32.totalorder %s332, %s346
      %p348 = scmp.eq.s32.totalorder %s36, 0
      %p349 = por %p347, %p348
      %s351 = sadd.s32 %s350, 1
      %p354 = scmp.eq.s32.totalorder %s30, 1
      %p355 = scmp.ne.s32.totalorder %s350, %s352
      %p356 = scmp.eq.s32.totalorder %s30, 0
      %p357 = por %p355, %p356
      %p358 = scmp.ne.s32.totalorder %s350, %s352
      %p359 = scmp.eq.s32.totalorder %s35, 1
      %p360 = por %p358, %p359
      %p361 = scmp.ne.s32.totalorder %s352, %s353
      %p362 = scmp.eq.s32.totalorder %s35, 0
      %p363 = por %p361, %p362
      %p364 = scmp.ne.s32.totalorder %s352, %s353
      %p365 = scmp.eq.s32.totalorder %s36, 1
      %p366 = por %p364, %p365
      %p368 = scmp.ne.s32.totalorder %s353, %s367
      %p369 = scmp.eq.s32.totalorder %s36, 0
      %p370 = por %p368, %p369
      %s371 = ssub.s32 %s37, %s49
      %s372 = ssub.s32 %s38, %s45
      %s373 = sor.u32 %s371, %s372
      %p374 = scmp.eq.s32.totalorder %s373, 0
      %s376 = sadd.s32 %s375, 1
      %s377 = scalar_select %p374, %s375, %s376
      %p380 = pneg %p374
      %p381 = scmp.eq.s32.totalorder %s30, 1
      %p382 = por %p380, %p381
      %p383 = scmp.ne.s32.totalorder %s375, %s378
      %p384 = scmp.eq.s32.totalorder %s30, 0
      %p385 = por %p383, %p384
      %p386 = scmp.ne.s32.totalorder %s375, %s378
      %p387 = scmp.eq.s32.totalorder %s35, 1
      %p388 = por %p386, %p387
      %p389 = scmp.ne.s32.totalorder %s378, %s379
      %p390 = scmp.eq.s32.totalorder %s35, 0
      %p391 = por %p389, %p390
      %p392 = scmp.ne.s32.totalorder %s378, %s379
      %p393 = scmp.eq.s32.totalorder %s36, 1
      %p394 = por %p392, %p393
      %p396 = scmp.ne.s32.totalorder %s379, %s395
      %p397 = scmp.eq.s32.totalorder %s36, 0
      %p398 = por %p396, %p397
      %p399 = scmp.le.s32.totalorder 1, %s30
      %p400 = scmp.lt.s32.totalorder %s30, 3
      %p401 = pnand %p399, %p400
      %p402 = pneg %p401
      // Predicated region
      $region9: #{tpu_custom_call.1} parent=5 // pred_check
        _
      $region10: #{tpu_custom_call.1} parent=5 // pred_check_branch
        %404 = sbr.rel (%p401) target = $region12
      $region11: #{tpu_custom_call.1} parent=5 // pred_region
        %s405 = ssub.s32 %s30, 1
        // Predicated region
        $region13: #{tpu_custom_call.1} parent=11 // pred_check
          %p406 = pneg %p148
        $region14: #{tpu_custom_call.1} parent=11 // pred_check_branch
          %408 = sbr.rel (%p406) target = $region16
        $region15: #{tpu_custom_call.1} parent=11 // pred_region
          %s410 = ssub.s32 128, 128
          %411 = vsyncadd [#allocation6], %s410
          %s412 = smul.addr %s40, 128
          %s413 = scalar_lea.hbm %s3, %s412
          %s415 = sshll.u32 [#allocation5], 4
          %s416 = int_to_ptr.vmem [resolvable:$true] %s415
          %418 = dma.hbm_to_vmem [thread:$0]  %s413, 128, %s416, [#allocation6]
        $region16: #{tpu_custom_call.1} parent=11 // pred_fallthru
          _
        // Predicated region
        $region17: #{tpu_custom_call.1} parent=11 // pred_check
          %p419 = pneg %p195
        $region18: #{tpu_custom_call.1} parent=11 // pred_check_branch
          %421 = sbr.rel (%p419) target = $region20
        $region19: #{tpu_custom_call.1} parent=11 // pred_region
          %s423 = ssub.s32 1024, 1024
          %424 = vsyncadd [#allocation10], %s423
          %s425 = sshll.u32 [#allocation11], 4
          %s426 = int_to_ptr.vmem [resolvable:$true] %s425
          %431 = dma.hbm_to_vmem [thread:$0]  %s5, 1024, %s426, [#allocation10], 64, 64, 4
        $region20: #{tpu_custom_call.1} parent=11 // pred_fallthru
          _
        // Predicated region
        $region21: #{tpu_custom_call.1} parent=11 // pred_check
          %p432 = pneg %p216
        $region22: #{tpu_custom_call.1} parent=11 // pred_check_branch
          %434 = sbr.rel (%p432) target = $region24
        $region23: #{tpu_custom_call.1} parent=11 // pred_region
          _
        $region24: #{tpu_custom_call.1} parent=11 // pred_fallthru
          _
        // Predicated region
        $region25: #{tpu_custom_call.1} parent=11 // pred_check
          %p435 = pneg %p237
        $region26: #{tpu_custom_call.1} parent=11 // pred_check_branch
          %437 = sbr.rel (%p435) target = $region28
        $region27: #{tpu_custom_call.1} parent=11 // pred_region
          %s439 = ssub.s32 1024, 1024
          %440 = vsyncadd [#allocation13], %s439
          %s441 = sshll.u32 [#allocation12], 4
          %s442 = int_to_ptr.vmem [resolvable:$true] %s441
          %447 = dma.hbm_to_vmem [thread:$0]  %s7, 1024, %s442, [#allocation13], 64, 64, 4
        $region28: #{tpu_custom_call.1} parent=11 // pred_fallthru
          _
        // Predicated region
        $region29: #{tpu_custom_call.1} parent=11 // pred_check
          %p448 = pneg %p258
        $region30: #{tpu_custom_call.1} parent=11 // pred_check_branch
          %450 = sbr.rel (%p448) target = $region32
        $region31: #{tpu_custom_call.1} parent=11 // pred_region
          %s452 = ssub.s32 64, 64
          %453 = vsyncadd [#allocation13], %s452
          %s455 = sshll.u32 [#allocation14], 4
          %s456 = int_to_ptr.vmem [resolvable:$true] %s455
          %458 = dma.hbm_to_vmem [thread:$0]  %s8, 64, %s456, [#allocation13]
        $region32: #{tpu_custom_call.1} parent=11 // pred_fallthru
          _
        // Predicated region
        $region33: #{tpu_custom_call.1} parent=11 // pred_check
          %p459 = pneg %p279
        $region34: #{tpu_custom_call.1} parent=11 // pred_check_branch
          %461 = sbr.rel (%p459) target = $region36
        $region35: #{tpu_custom_call.1} parent=11 // pred_region
          _
        $region36: #{tpu_custom_call.1} parent=11 // pred_fallthru
          _
        // Predicated region
        $region37: #{tpu_custom_call.1} parent=11 // pred_check
          %p462 = pneg %p300
        $region38: #{tpu_custom_call.1} parent=11 // pred_check_branch
          %464 = sbr.rel (%p462) target = $region40
        $region39: #{tpu_custom_call.1} parent=11 // pred_region
          %s466 = ssub.s32 16, 16
          %467 = vsyncadd [#allocation16], %s466
          %s469 = sshll.u32 [#allocation15], 4
          %s470 = int_to_ptr.vmem [resolvable:$true] %s469
          %472 = dma.hbm_to_vmem [thread:$0]  %s10, 16, %s470, [#allocation16]
        $region40: #{tpu_custom_call.1} parent=11 // pred_fallthru
          _
        // Predicated region
        $region41: #{tpu_custom_call.1} parent=11 // pred_check
          %p473 = pneg %p321
        $region42: #{tpu_custom_call.1} parent=11 // pred_check_branch
          %475 = sbr.rel (%p473) target = $region44
        $region43: #{tpu_custom_call.1} parent=11 // pred_region
          _
        $region44: #{tpu_custom_call.1} parent=11 // pred_fallthru
          _
        // Predicated region
        $region45: #{tpu_custom_call.1} parent=11 // pred_check
          %p476 = pneg %p342
        $region46: #{tpu_custom_call.1} parent=11 // pred_check_branch
          %478 = sbr.rel (%p476) target = $region48
        $region47: #{tpu_custom_call.1} parent=11 // pred_region
          _
        $region48: #{tpu_custom_call.1} parent=11 // pred_fallthru
          _
        // Predicated region
        $region49: #{tpu_custom_call.1} parent=11 // pred_check
          %p479 = pneg %p363
        $region50: #{tpu_custom_call.1} parent=11 // pred_check_branch
          %481 = sbr.rel (%p479) target = $region52
        $region51: #{tpu_custom_call.1} parent=11 // pred_region
          %s483 = ssub.s32 16, 16
          %484 = vsyncadd [#allocation8], %s483
          %s486 = sshll.u32 %s13, 4
          %s487 = int_to_ptr.vmem [resolvable:$true] %s486
          %489 = dma.vmem_to_smem %s487, 16, [#allocation17], [#allocation8]
        $region52: #{tpu_custom_call.1} parent=11 // pred_fallthru
          _
      $region12: #{tpu_custom_call.1} parent=5 // pred_fallthru
        _
      %p490 = scmp.lt.s32.totalorder %s30, 2
      // Predicated region
      $region53: #{tpu_custom_call.1} parent=5 // pred_check
        %p491 = pneg %p490
      $region54: #{tpu_custom_call.1} parent=5 // pred_check_branch
        %493 = sbr.rel (%p491) target = $region56
      $region55: #{tpu_custom_call.1} parent=5 // pred_region
        // Predicated region
        $region57: #{tpu_custom_call.1} parent=55 // pred_check
          %p494 = pneg %p62
        $region58: #{tpu_custom_call.1} parent=55 // pred_check_branch
          %496 = sbr.rel (%p494) target = $region60
        $region59: #{tpu_custom_call.1} parent=55 // pred_region
          %p497 = scmp.lt.s32.totalorder %s37, 1
          %s498 = scalar_select %p497, %s37, 1
          %s499 = smul.addr %s498, 4
          %s500 = scalar_lea.vmem %s0, %s499
        $region60: #{tpu_custom_call.1} parent=55 // pred_fallthru
          _
        // Predicated region
        $region61: #{tpu_custom_call.1} parent=55 // pred_check
          %p501 = pneg %p90
        $region62: #{tpu_custom_call.1} parent=55 // pred_check_branch
          %503 = sbr.rel (%p501) target = $region64
        $region63: #{tpu_custom_call.1} parent=55 // pred_region
          %p504 = scmp.lt.s32.totalorder %s37, 1
          %s505 = scalar_select %p504, %s37, 1
          %p506 = scmp.lt.s32.totalorder %s38, 0
          %s507 = scalar_select %p506, %s38, 0
          %s508 = sadd.s32 %s507, %s505
          %s509 = smul.addr %s508, 8
          %s510 = scalar_lea.vmem %s1, %s509
        $region64: #{tpu_custom_call.1} parent=55 // pred_fallthru
          _
        // Predicated region
        $region65: #{tpu_custom_call.1} parent=55 // pred_check
          %p511 = pneg %p116
        $region66: #{tpu_custom_call.1} parent=55 // pred_check_branch
          %513 = sbr.rel (%p511) target = $region68
        $region67: #{tpu_custom_call.1} parent=55 // pred_region
          %p514 = scmp.lt.s32.totalorder %s37, 1
          %s515 = scalar_select %p514, %s37, 1
          %s516 = smul.addr %s515, 4
          %s517 = scalar_lea.vmem %s2, %s516
        $region68: #{tpu_custom_call.1} parent=55 // pred_fallthru
          _
        // Predicated region
        $region69: #{tpu_custom_call.1} parent=55 // pred_check
          %p518 = pneg %p168
        $region70: #{tpu_custom_call.1} parent=55 // pred_check_branch
          %520 = sbr.rel (%p518) target = $region72
        $region71: #{tpu_custom_call.1} parent=55 // pred_region
          %s521 = sand.u32 %s30, 1
          %s522 = scalar_lea.sflag [#allocation10], %s521
          %s523 = sand.u32 %s158, 1
          %s524 = scalar_lea.vmem [#allocation9], %s523
          %s526 = ssub.s32 16, 16
          %527 = vsyncadd %s522, %s526
          %s528 = smul.addr %s37, 16
          %s529 = scalar_lea.hbm %s4, %s528
          %s531 = sshll.u32 %s524, 4
          %s532 = int_to_ptr.vmem [resolvable:$true] %s531
          %534 = dma.hbm_to_vmem [thread:$0]  %s529, 16, %s532, %s522
        $region72: #{tpu_custom_call.1} parent=55 // pred_fallthru
          _
      $region56: #{tpu_custom_call.1} parent=5 // pred_fallthru
        _
      %p535 = scmp.le.s32.totalorder 1, %s30
      %p536 = scmp.lt.s32.totalorder %s30, 3
      %p537 = pnand %p535, %p536
      %p538 = pneg %p537
      // Predicated region
      $region73: #{tpu_custom_call.1} parent=5 // pred_check
        _
      $region74: #{tpu_custom_call.1} parent=5 // pred_check_branch
        %540 = sbr.rel (%p537) target = $region76
      $region75: #{tpu_custom_call.1} parent=5 // pred_region
        %s541 = ssub.s32 %s30, 1
        // Predicated region
        $region77: #{tpu_custom_call.1} parent=75 // pred_check
          %p542 = pneg %p148
        $region78: #{tpu_custom_call.1} parent=75 // pred_check_branch
          %544 = sbr.rel (%p542) target = $region80
        $region79: #{tpu_custom_call.1} parent=75 // pred_region
          %545 = dma.done [#allocation6], 128
        $region80: #{tpu_custom_call.1} parent=75 // pred_fallthru
          _
        %s546 = sand.u32 %s35, 1
        %s547 = scalar_lea.sflag [#allocation10], %s546
        %s548 = sand.u32 %s161, 1
        %s549 = scalar_lea.vmem [#allocation9], %s548
        // Predicated region
        $region81: #{tpu_custom_call.1} parent=75 // pred_check
          %p550 = pneg %p174
        $region82: #{tpu_custom_call.1} parent=75 // pred_check_branch
          %552 = sbr.rel (%p550) target = $region84
        $region83: #{tpu_custom_call.1} parent=75 // pred_region
          %553 = dma.done %s547, 16
        $region84: #{tpu_custom_call.1} parent=75 // pred_fallthru
          _
        // Predicated region
        $region85: #{tpu_custom_call.1} parent=75 // pred_check
          %p554 = pneg %p195
        $region86: #{tpu_custom_call.1} parent=75 // pred_check_branch
          %556 = sbr.rel (%p554) target = $region88
        $region87: #{tpu_custom_call.1} parent=75 // pred_region
          %557 = dma.done [#allocation10], 1024
        $region88: #{tpu_custom_call.1} parent=75 // pred_fallthru
          _
        // Predicated region
        $region89: #{tpu_custom_call.1} parent=75 // pred_check
          %p558 = pneg %p237
        $region90: #{tpu_custom_call.1} parent=75 // pred_check_branch
          %560 = sbr.rel (%p558) target = $region92
        $region91: #{tpu_custom_call.1} parent=75 // pred_region
          %561 = dma.done [#allocation13], 1024
        $region92: #{tpu_custom_call.1} parent=75 // pred_fallthru
          _
        // Predicated region
        $region93: #{tpu_custom_call.1} parent=75 // pred_check
          %p562 = pneg %p258
        $region94: #{tpu_custom_call.1} parent=75 // pred_check_branch
          %564 = sbr.rel (%p562) target = $region96
        $region95: #{tpu_custom_call.1} parent=75 // pred_region
          %565 = dma.done [#allocation13], 64
        $region96: #{tpu_custom_call.1} parent=75 // pred_fallthru
          _
        // Predicated region
        $region97: #{tpu_custom_call.1} parent=75 // pred_check
          %p566 = pneg %p300
        $region98: #{tpu_custom_call.1} parent=75 // pred_check_branch
          %568 = sbr.rel (%p566) target = $region100
        $region99: #{tpu_custom_call.1} parent=75 // pred_region
          %569 = dma.done [#allocation16], 16
        $region100: #{tpu_custom_call.1} parent=75 // pred_fallthru
          _
        // Predicated region
        $region101: #{tpu_custom_call.1} parent=75 // pred_check
          %p570 = pneg %p363
        $region102: #{tpu_custom_call.1} parent=75 // pred_check_branch
          %572 = sbr.rel (%p570) target = $region104
        $region103: #{tpu_custom_call.1} parent=75 // pred_region
          %573 = dma.done [#allocation8], 16
        $region104: #{tpu_custom_call.1} parent=75 // pred_fallthru
          _
        %574 = sfence
        %p575 = scmp.lt.s32.totalorder %s39, 1
        %s576 = scalar_select %p575, %s39, 1
        %s577 = smul.addr %s576, 4
        %s578 = scalar_lea.vmem %s0, %s577
        %p579 = pneg %p68
        %p580 = pneg %p65
        %p581 = scmp.lt.s32.totalorder %s39, 1
        %s582 = scalar_select %p581, %s39, 1
        %p583 = scmp.lt.s32.totalorder %s40, 0
        %s584 = scalar_select %p583, %s40, 0
        %s585 = sadd.s32 %s584, %s582
        %s586 = smul.addr %s585, 8
        %s587 = scalar_lea.vmem %s1, %s586
        %p588 = pneg %p96
        %p589 = pneg %p93
        %p590 = scmp.lt.s32.totalorder %s39, 1
        %s591 = scalar_select %p590, %s39, 1
        %s592 = smul.addr %s591, 4
        %s593 = scalar_lea.vmem %s2, %s592
        %p594 = pneg %p122
        %p595 = pneg %p119
        %p596 = pneg %p148
        %p597 = pneg %p145
        %s598 = sand.u32 %s35, 1
        %s599 = scalar_lea.sflag [#allocation10], %s598
        %s600 = sand.u32 %s161, 1
        %s601 = scalar_lea.vmem [#allocation9], %s600
        %p602 = pneg %p174
        %p603 = pneg %p171
        %p604 = pneg %p195
        %p605 = pneg %p192
        %p606 = pneg %p216
        %p607 = pneg %p213
        %p608 = pneg %p237
        %p609 = pneg %p234
        %p610 = pneg %p258
        %p611 = pneg %p255
        %p612 = pneg %p279
        %p613 = pneg %p276
        %p614 = pneg %p300
        %p615 = pneg %p297
        %p616 = pneg %p321
        %p617 = pneg %p318
        %p618 = pneg %p342
        %p619 = pneg %p339
        %p620 = pneg %p363
        %p621 = pneg %p360
        %p622 = pneg %p391
        %p623 = pneg %p388
        %s624 = sand.u32 %s378, 1
        %s625 = scalar_lea.sflag [#allocation7], %s624
        %s626 = sand.u32 %s378, 1
        %s627 = smul.addr %s626, 8
        %s628 = scalar_lea.vmem [#allocation18], %s627
        %p629 = scmp.lt.s32.totalorder %s39, 1
        %s630 = scalar_select %p629, %s39, 1
        %s631 = smul.addr %s630, 4
        %s632 = scalar_lea.vmem %s0, %s631
        %p633 = scmp.lt.s32.totalorder %s39, 1
        %s634 = scalar_select %p633, %s39, 1
        %p635 = scmp.lt.s32.totalorder %s40, 0
        %s636 = scalar_select %p635, %s40, 0
        %s637 = sadd.s32 %s636, %s634
        %s638 = smul.addr %s637, 8
        %s639 = scalar_lea.vmem %s1, %s638
        %p640 = scmp.lt.s32.totalorder %s39, 1
        %s641 = scalar_select %p640, %s39, 1
        %s642 = smul.addr %s641, 4
        %s643 = scalar_lea.vmem %s2, %s642
        %s645 = sld [smem:[#allocation17]]
        %s646 = sld [smem:[#allocation17 + $0x1]]
        %s647 = sld [smem:[#allocation17 + $0x2]]
        %p648 = scmp.eq.s32.totalorder %s40, 0
        // Predicated region
        $region105: #{tpu_custom_call.1} parent=75 // pred_check
          %p649 = pneg %p648
        $region106: #{tpu_custom_call.1} parent=75 // pred_check_branch
          %651 = sbr.rel (%p649) target = $region108
        $region107: #{tpu_custom_call.1} parent=75 // pred_region
          %v652 = vld [vmem:[%s643] sm:$0xf]
          %v653 = vunpack.c.l.bf16 %v652
          %v654 = vmul.f32 %v653, %v653
          %vm655 = vcmask 261120
          %v656 = vsel %vm655, %v654, 0.0
          %657 = vadd.xlane.f32.xlu0 %v656
          %v658 = vpop.xlane.xlu0 %657
          %v659 = vstv %s645
          %v660 = vmul.f32 %v659, %v653
          %v661 = vmax.f32 %v658, 1e-10
          %v662 = vrsqrt.pop %v661
          %v663 = vmul.f32 %v660, %v662
          %v664 = vpack.c.bf16 %v663, %v663
          %s665 = scalar_lea.vmem [#allocation11], 16
          %v666 = vld [vmem:[%s665] sm:$0xf]
          %v667 = vld [vmem:[%s665 + $0x4] sm:$0xf]
          %v668 = vld [vmem:[%s665 + $0x8] sm:$0xf]
          %v669 = vld [vmem:[%s665 + $0xc] sm:$0xf]
          %v670 = vld [vmem:[%s6 + $0x1] sm:$0x1]
          %v671 = vlaneseq
          %v672 = vshrl.u32 %v671, 7
          %v673 = vsub.s32 0, %v672
          %v674 = vrot.slane %v670, %v673
          %v679 = vunpack.c.l.b16 %v666
          %v680 = vunpack.c.l.b16 %v667
          %v681 = vunpack.c.l.b16 %v668
          %v682 = vunpack.c.l.b16 %v669
          %v683 = vpack.c.b16 %v680, %v679
          %v684 = vpack.c.b16 %v682, %v681
          %v688 = vsel %vm655, %v664, 0
          %690 = vmatprep.subr.bf16.mxu0 0
          %691 = vmatpush1.bf16.msra.mxu0 0
          %692 = vmatprep.subr.bf16.mxu0 0
          %693 = vmatpush1.bf16.msra.mxu0 0
          %694 = vmatprep.subr.bf16.mxu0 0
          %695 = vmatpush1.bf16.msra.mxu0 0
          %696 = vmatprep.subr.bf16.mxu0 0
          %697 = vmatpush1.bf16.msra.mxu0 0
          %698 = vmatprep.subr.bf16.mxu0 0
          %699 = vmatpush1.bf16.msra.mxu0 0
          %700 = vmatprep.subr.bf16.mxu0 0
          %701 = vmatpush1.bf16.msra.mxu0 0
          %702 = vmatprep.subr.bf16.mxu0 0
          %703 = vmatpush1.bf16.msra.mxu0 %v684
          %704 = vmatprep.subr.bf16.mxu0 0
          %705 = vmatpush1.bf16.msra.mxu0 %v683
          %706 = vmatprep.subr.bf16.mxu0 0
          %707 = vmatpush2.bf16.msra.mxu0 0
          %708 = vmatprep.subr.bf16.mxu0 0
          %709 = vmatpush2.bf16.msra.mxu0 0
          %710 = vmatprep.subr.bf16.mxu0 0
          %711 = vmatpush2.bf16.msra.mxu0 0
          %712 = vmatprep.subr.bf16.mxu0 0
          %713 = vmatpush2.bf16.msra.mxu0 0
          %714 = vmatprep.subr.bf16.mxu0 0
          %715 = vmatpush2.bf16.msra.mxu0 0
          %716 = vmatprep.subr.bf16.mxu0 0
          %717 = vmatpush2.bf16.msra.mxu0 0
          %718 = vmatprep.subr.bf16.mxu0 0
          %719 = vmatpush2.bf16.msra.mxu0 0
          %720 = vmatprep.subr.bf16.mxu0 0
          %721 = vmatpush2.bf16.msra.mxu0 0
          %722 = vmatprep.mubr.bf16.mxu0 0
          %723 = vmatmul.mubr.bf16.gmra.mxu0 %v688
          %v724 = vpop.f32.mrf.mxu0
          %v725 = vadd.f32 %v674, %v724
          %v726 = vpop.f32.mrf.mxu0
          %v727 = vpop.f32.mrf.mxu0
          %v728 = vpop.f32.mrf.mxu0
          %729 = vdwg.mxu0
          %v730 = vpack.c.bf16 %v725, %v725
          %vm731 = vcmask 257024
          %732 = vst.msk [vmem:[#allocation2] sm:$0xf] %vm731, %v730
          %s733 = scalar_lea.vmem [#allocation11], 32
          %v734 = vld [vmem:[%s733] sm:$0xf]
          %v735 = vld [vmem:[%s733 + $0x4] sm:$0xf]
          %v736 = vld [vmem:[%s733 + $0x8] sm:$0xf]
          %v737 = vld [vmem:[%s733 + $0xc] sm:$0xf]
          %v738 = vld [vmem:[%s6 + $0x2] sm:$0x1]
          %v739 = vlaneseq
          %v740 = vshrl.u32 %v739, 7
          %v741 = vsub.s32 0, %v740
          %v742 = vrot.slane %v738, %v741
          %v747 = vunpack.c.l.b16 %v734
          %v748 = vunpack.c.l.b16 %v735
          %v749 = vunpack.c.l.b16 %v736
          %v750 = vunpack.c.l.b16 %v737
          %v751 = vpack.c.b16 %v748, %v747
          %v752 = vpack.c.b16 %v750, %v749
          %755 = vmatprep.subr.bf16.mxu0 0
          %756 = vmatpush1.bf16.msra.mxu0 0
          %757 = vmatprep.subr.bf16.mxu0 0
          %758 = vmatpush1.bf16.msra.mxu0 0
          %759 = vmatprep.subr.bf16.mxu0 0
          %760 = vmatpush1.bf16.msra.mxu0 0
          %761 = vmatprep.subr.bf16.mxu0 0
          %762 = vmatpush1.bf16.msra.mxu0 0
          %763 = vmatprep.subr.bf16.mxu0 0
          %764 = vmatpush1.bf16.msra.mxu0 0
          %765 = vmatprep.subr.bf16.mxu0 0
          %766 = vmatpush1.bf16.msra.mxu0 0
          %767 = vmatprep.subr.bf16.mxu0 0
          %768 = vmatpush1.bf16.msra.mxu0 %v752
          %769 = vmatprep.subr.bf16.mxu0 0
          %770 = vmatpush1.bf16.msra.mxu0 %v751
          %771 = vmatprep.subr.bf16.mxu0 0
          %772 = vmatpush2.bf16.msra.mxu0 0
          %773 = vmatprep.subr.bf16.mxu0 0
          %774 = vmatpush2.bf16.msra.mxu0 0
          %775 = vmatprep.subr.bf16.mxu0 0
          %776 = vmatpush2.bf16.msra.mxu0 0
          %777 = vmatprep.subr.bf16.mxu0 0
          %778 = vmatpush2.bf16.msra.mxu0 0
          %779 = vmatprep.subr.bf16.mxu0 0
          %780 = vmatpush2.bf16.msra.mxu0 0
          %781 = vmatprep.subr.bf16.mxu0 0
          %782 = vmatpush2.bf16.msra.mxu0 0
          %783 = vmatprep.subr.bf16.mxu0 0
          %784 = vmatpush2.bf16.msra.mxu0 0
          %785 = vmatprep.subr.bf16.mxu0 0
          %786 = vmatpush2.bf16.msra.mxu0 0
          %787 = vmatprep.mubr.bf16.mxu0 0
          %788 = vmatmul.mubr.bf16.gmra.mxu0 %v688
          %v789 = vpop.f32.mrf.mxu0
          %v790 = vadd.f32 %v742, %v789
          %v791 = vpop.f32.mrf.mxu0
          %v792 = vpop.f32.mrf.mxu0
          %v793 = vpop.f32.mrf.mxu0
          %794 = vdwg.mxu0
          %v795 = vpack.c.bf16 %v790, %v790
          %s796 = scalar_lea.vmem [#allocation2], 4
          %797 = vst.msk [vmem:[%s796] sm:$0xf] %vm731, %v795
          %v798 = vld [vmem:[%s632] sm:$0xf]
          %s799 = scalar_lea.vmem [#allocation12], 16
          %v800 = vld [vmem:[%s799] sm:$0xf]
          %v801 = vld [vmem:[%s799 + $0x4] sm:$0xf]
          %v802 = vld [vmem:[%s799 + $0x8] sm:$0xf]
          %v803 = vld [vmem:[%s799 + $0xc] sm:$0xf]
          %v804 = vld [vmem:[#allocation14 + $0x1] sm:$0x1]
          %v805 = vlaneseq
          %v806 = vshrl.u32 %v805, 7
          %v807 = vsub.s32 0, %v806
          %v808 = vrot.slane %v804, %v807
          %v813 = vunpack.c.l.b16 %v800
          %v814 = vunpack.c.l.b16 %v801
          %v815 = vunpack.c.l.b16 %v802
          %v816 = vunpack.c.l.b16 %v803
          %v817 = vpack.c.b16 %v814, %v813
          %v818 = vpack.c.b16 %v816, %v815
          %v822 = vsel %vm655, %v798, 0
          %824 = vmatprep.subr.bf16.mxu0 0
          %825 = vmatpush1.bf16.msra.mxu0 0
          %826 = vmatprep.subr.bf16.mxu0 0
          %827 = vmatpush1.bf16.msra.mxu0 0
          %828 = vmatprep.subr.bf16.mxu0 0
          %829 = vmatpush1.bf16.msra.mxu0 0
          %830 = vmatprep.subr.bf16.mxu0 0
          %831 = vmatpush1.bf16.msra.mxu0 0
          %832 = vmatprep.subr.bf16.mxu0 0
          %833 = vmatpush1.bf16.msra.mxu0 0
          %834 = vmatprep.subr.bf16.mxu0 0
          %835 = vmatpush1.bf16.msra.mxu0 0
          %836 = vmatprep.subr.bf16.mxu0 0
          %837 = vmatpush1.bf16.msra.mxu0 %v818
          %838 = vmatprep.subr.bf16.mxu0 0
          %839 = vmatpush1.bf16.msra.mxu0 %v817
          %840 = vmatprep.subr.bf16.mxu0 0
          %841 = vmatpush2.bf16.msra.mxu0 0
          %842 = vmatprep.subr.bf16.mxu0 0
          %843 = vmatpush2.bf16.msra.mxu0 0
          %844 = vmatprep.subr.bf16.mxu0 0
          %845 = vmatpush2.bf16.msra.mxu0 0
          %846 = vmatprep.subr.bf16.mxu0 0
          %847 = vmatpush2.bf16.msra.mxu0 0
          %848 = vmatprep.subr.bf16.mxu0 0
          %849 = vmatpush2.bf16.msra.mxu0 0
          %850 = vmatprep.subr.bf16.mxu0 0
          %851 = vmatpush2.bf16.msra.mxu0 0
          %852 = vmatprep.subr.bf16.mxu0 0
          %853 = vmatpush2.bf16.msra.mxu0 0
          %854 = vmatprep.subr.bf16.mxu0 0
          %855 = vmatpush2.bf16.msra.mxu0 0
          %856 = vmatprep.mubr.bf16.mxu0 0
          %857 = vmatmul.mubr.bf16.gmra.mxu0 %v822
          %v858 = vpop.f32.mrf.mxu0
          %v859 = vadd.f32 %v808, %v858
          %v860 = vpop.f32.mrf.mxu0
          %v861 = vpop.f32.mrf.mxu0
          %v862 = vpop.f32.mrf.mxu0
          %863 = vdwg.mxu0
          %v864 = vpack.c.bf16 %v859, %v859
          %865 = vst.msk [vmem:[#allocation3] sm:$0xf] %vm731, %v864
          %s866 = scalar_lea.vmem [#allocation12], 32
          %v867 = vld [vmem:[%s866] sm:$0xf]
          %v868 = vld [vmem:[%s866 + $0x4] sm:$0xf]
          %v869 = vld [vmem:[%s866 + $0x8] sm:$0xf]
          %v870 = vld [vmem:[%s866 + $0xc] sm:$0xf]
          %v871 = vld [vmem:[#allocation14 + $0x2] sm:$0x1]
          %v872 = vlaneseq
          %v873 = vshrl.u32 %v872, 7
          %v874 = vsub.s32 0, %v873
          %v875 = vrot.slane %v871, %v874
          %v880 = vunpack.c.l.b16 %v867
          %v881 = vunpack.c.l.b16 %v868
          %v882 = vunpack.c.l.b16 %v869
          %v883 = vunpack.c.l.b16 %v870
          %v884 = vpack.c.b16 %v881, %v880
          %v885 = vpack.c.b16 %v883, %v882
          %888 = vmatprep.subr.bf16.mxu0 0
          %889 = vmatpush1.bf16.msra.mxu0 0
          %890 = vmatprep.subr.bf16.mxu0 0
          %891 = vmatpush1.bf16.msra.mxu0 0
          %892 = vmatprep.subr.bf16.mxu0 0
          %893 = vmatpush1.bf16.msra.mxu0 0
          %894 = vmatprep.subr.bf16.mxu0 0
          %895 = vmatpush1.bf16.msra.mxu0 0
          %896 = vmatprep.subr.bf16.mxu0 0
          %897 = vmatpush1.bf16.msra.mxu0 0
          %898 = vmatprep.subr.bf16.mxu0 0
          %899 = vmatpush1.bf16.msra.mxu0 0
          %900 = vmatprep.subr.bf16.mxu0 0
          %901 = vmatpush1.bf16.msra.mxu0 %v885
          %902 = vmatprep.subr.bf16.mxu0 0
          %903 = vmatpush1.bf16.msra.mxu0 %v884
          %904 = vmatprep.subr.bf16.mxu0 0
          %905 = vmatpush2.bf16.msra.mxu0 0
          %906 = vmatprep.subr.bf16.mxu0 0
          %907 = vmatpush2.bf16.msra.mxu0 0
          %908 = vmatprep.subr.bf16.mxu0 0
          %909 = vmatpush2.bf16.msra.mxu0 0
          %910 = vmatprep.subr.bf16.mxu0 0
          %911 = vmatpush2.bf16.msra.mxu0 0
          %912 = vmatprep.subr.bf16.mxu0 0
          %913 = vmatpush2.bf16.msra.mxu0 0
          %914 = vmatprep.subr.bf16.mxu0 0
          %915 = vmatpush2.bf16.msra.mxu0 0
          %916 = vmatprep.subr.bf16.mxu0 0
          %917 = vmatpush2.bf16.msra.mxu0 0
          %918 = vmatprep.subr.bf16.mxu0 0
          %919 = vmatpush2.bf16.msra.mxu0 0
          %920 = vmatprep.mubr.bf16.mxu0 0
          %921 = vmatmul.mubr.bf16.gmra.mxu0 %v822
          %v922 = vpop.f32.mrf.mxu0
          %v923 = vadd.f32 %v875, %v922
          %v924 = vpop.f32.mrf.mxu0
          %v925 = vpop.f32.mrf.mxu0
          %v926 = vpop.f32.mrf.mxu0
          %927 = vdwg.mxu0
          %v928 = vpack.c.bf16 %v923, %v923
          %s929 = scalar_lea.vmem [#allocation3], 4
          %930 = vst.msk [vmem:[%s929] sm:$0xf] %vm731, %v928
        $region108: #{tpu_custom_call.1} parent=75 // pred_fallthru
          _
        %v931 = vld [vmem:[%s639] sm:$0xff]
        %v932 = vmul.f32 %v931, %v931
        %vm933 = vcmask 261120
        %v934 = vsel %vm933, %v932, 0.0
        %935 = vadd.xlane.f32.xlu0 %v934
        %v936 = vpop.xlane.xlu0 %935
        %v937 = vstv %s645
        %v938 = vmul.f32 %v937, %v931
        %v939 = vmax.f32 %v936, 1e-10
        %v940 = vrsqrt.pop %v939
        %v941 = vmul.f32 %v938, %v940
        %v942 = vld [vmem:[#allocation11] sm:$0xf]
        %v943 = vld [vmem:[#allocation11 + $0x4] sm:$0xf]
        %v944 = vld [vmem:[#allocation11 + $0x8] sm:$0xf]
        %v945 = vld [vmem:[#allocation11 + $0xc] sm:$0xf]
        %v946 = vpack.c.bf16 %v941, %v941
        %v947 = vld [vmem:[%s6] sm:$0x1]
        %v948 = vlaneseq
        %v949 = vshrl.u32 %v948, 7
        %v950 = vsub.s32 0, %v949
        %v951 = vrot.slane %v947, %v950
        %v956 = vunpack.c.l.b16 %v942
        %v957 = vunpack.c.l.b16 %v943
        %v958 = vunpack.c.l.b16 %v944
        %v959 = vunpack.c.l.b16 %v945
        %v960 = vpack.c.b16 %v957, %v956
        %v961 = vpack.c.b16 %v959, %v958
        %v965 = vsel %vm933, %v946, 0
        %967 = vmatprep.subr.bf16.mxu0 0
        %968 = vmatpush1.bf16.msra.mxu0 0
        %969 = vmatprep.subr.bf16.mxu0 0
        %970 = vmatpush1.bf16.msra.mxu0 0
        %971 = vmatprep.subr.bf16.mxu0 0
        %972 = vmatpush1.bf16.msra.mxu0 0
        %973 = vmatprep.subr.bf16.mxu0 0
        %974 = vmatpush1.bf16.msra.mxu0 0
        %975 = vmatprep.subr.bf16.mxu0 0
        %976 = vmatpush1.bf16.msra.mxu0 0
        %977 = vmatprep.subr.bf16.mxu0 0
        %978 = vmatpush1.bf16.msra.mxu0 0
        %979 = vmatprep.subr.bf16.mxu0 0
        %980 = vmatpush1.bf16.msra.mxu0 %v961
        %981 = vmatprep.subr.bf16.mxu0 0
        %982 = vmatpush1.bf16.msra.mxu0 %v960
        %983 = vmatprep.subr.bf16.mxu0 0
        %984 = vmatpush2.bf16.msra.mxu0 0
        %985 = vmatprep.subr.bf16.mxu0 0
        %986 = vmatpush2.bf16.msra.mxu0 0
        %987 = vmatprep.subr.bf16.mxu0 0
        %988 = vmatpush2.bf16.msra.mxu0 0
        %989 = vmatprep.subr.bf16.mxu0 0
        %990 = vmatpush2.bf16.msra.mxu0 0
        %991 = vmatprep.subr.bf16.mxu0 0
        %992 = vmatpush2.bf16.msra.mxu0 0
        %993 = vmatprep.subr.bf16.mxu0 0
        %994 = vmatpush2.bf16.msra.mxu0 0
        %995 = vmatprep.subr.bf16.mxu0 0
        %996 = vmatpush2.bf16.msra.mxu0 0
        %997 = vmatprep.subr.bf16.mxu0 0
        %998 = vmatpush2.bf16.msra.mxu0 0
        %999 = vmatprep.mubr.bf16.mxu0 0
        %1000 = vmatmul.mubr.bf16.gmra.mxu0 %v965
        %v1001 = vpop.f32.mrf.mxu0
        %v1002 = vadd.f32 %v951, %v1001
        %v1003 = vpop.f32.mrf.mxu0
        %v1004 = vpop.f32.mrf.mxu0
        %v1005 = vpop.f32.mrf.mxu0
        %1006 = vdwg.mxu0
        %s1007 = scalar_lea.vmem [#allocation11], 48
        %v1008 = vld [vmem:[%s1007] sm:$0xf]
        %v1009 = vld [vmem:[%s1007 + $0x4] sm:$0xf]
        %v1010 = vld [vmem:[%s1007 + $0x8] sm:$0xf]
        %v1011 = vld [vmem:[%s1007 + $0xc] sm:$0xf]
        %v1012 = vld [vmem:[%s6 + $0x3] sm:$0x1]
        %v1013 = vld [vmem:[#allocation5] sm:$0xff]
        %v1014 = vmul.f32 %v1002, 0.35355338
        %v1015 = vpack.c.bf16 %v1014, %v1014
        %v1016 = vld [vmem:[#allocation2] sm:$0xf]
        %s1017 = scalar_lea.vmem [#allocation2], 4
        %v1018 = vld [vmem:[%s1017] sm:$0xf]
        %vm1019 = vcmask 64512
        %v1021 = vsel %vm1019, %v1015, 0
        %v1024 = vsel %vm1019, %v1016, 0
        %1026 = vmatprep.subr.bf16.mxu0 0
        %1027 = vmatpush1.bf16.xpose.msra.mxu0 0
        %1028 = vmatprep.subr.bf16.mxu0 0
        %1029 = vmatpush1.bf16.xpose.msra.mxu0 0
        %1030 = vmatprep.subr.bf16.mxu0 0
        %1031 = vmatpush1.bf16.xpose.msra.mxu0 0
        %1032 = vmatprep.subr.bf16.mxu0 0
        %1033 = vmatpush1.bf16.xpose.msra.mxu0 0
        %1034 = vmatprep.subr.bf16.mxu0 0
        %1035 = vmatpush1.bf16.xpose.msra.mxu0 0
        %1036 = vmatprep.subr.bf16.mxu0 0
        %1037 = vmatpush1.bf16.xpose.msra.mxu0 0
        %1038 = vmatprep.subr.bf16.mxu0 0
        %1039 = vmatpush1.bf16.xpose.msra.mxu0 0
        %1040 = vmatprep.subr.bf16.mxu0 0
        %1041 = vmatpush1.bf16.xpose.msra.mxu0 %v1024
        %1042 = vmatprep.subr.bf16.mxu0 0
        %1043 = vmatpush2.bf16.xpose.msra.mxu0 0
        %1044 = vmatprep.subr.bf16.mxu0 0
        %1045 = vmatpush2.bf16.xpose.msra.mxu0 0
        %1046 = vmatprep.subr.bf16.mxu0 0
        %1047 = vmatpush2.bf16.xpose.msra.mxu0 0
        %1048 = vmatprep.subr.bf16.mxu0 0
        %1049 = vmatpush2.bf16.xpose.msra.mxu0 0
        %1050 = vmatprep.subr.bf16.mxu0 0
        %1051 = vmatpush2.bf16.xpose.msra.mxu0 0
        %1052 = vmatprep.subr.bf16.mxu0 0
        %1053 = vmatpush2.bf16.xpose.msra.mxu0 0
        %1054 = vmatprep.subr.bf16.mxu0 0
        %1055 = vmatpush2.bf16.xpose.msra.mxu0 0
        %1056 = vmatprep.subr.bf16.mxu0 0
        %1057 = vmatpush2.bf16.xpose.msra.mxu0 0
        %1058 = vmatprep.mubr.bf16.mxu0 0
        %1059 = vmatmul.mubr.bf16.gmra.mxu0 %v1021
        %v1060 = vpop.f32.mrf.mxu0
        %v1061 = vadd.f32 %v1013, %v1060
        %v1062 = vpop.f32.mrf.mxu0
        %v1063 = vpop.f32.mrf.mxu0
        %v1064 = vpop.f32.mrf.mxu0
        %1065 = vdwg.mxu0
        %v1066 = vsel %vm1019, %v1061, -inf
        %1067 = vmax.xlane.f32.xlu0 %v1066
        %v1068 = vpop.xlane.xlu0 %1067
        %v1069 = vsub.f32 %v1061, %v1068
        %v1070 = vmul.f32 %v1069, 1.442695
        %v1071 = vpow.pop %v1070
        %v1072 = vsel %vm1019, %v1071, 0.0
        %1073 = vadd.xlane.f32.xlu0 %v1072
        %v1074 = vpop.xlane.xlu0 %1073
        %v1075 = vrcp.pop %v1074
        %v1076 = vmul.f32 %v1071, %v1075
        %v1077 = vpack.c.bf16 %v1076, %v1076
        %v1079 = vsel %vm1019, %v1077, 0
        %vm1081 = vcmask 1043456
        %v1083 = vsel %vm1081, %v1018, 0
        %1085 = vmatprep.subr.bf16.mxu0 0
        %1086 = vmatpush1.bf16.msra.mxu0 0
        %1087 = vmatprep.subr.bf16.mxu0 0
        %1088 = vmatpush1.bf16.msra.mxu0 0
        %1089 = vmatprep.subr.bf16.mxu0 0
        %1090 = vmatpush1.bf16.msra.mxu0 0
        %1091 = vmatprep.subr.bf16.mxu0 0
        %1092 = vmatpush1.bf16.msra.mxu0 0
        %1093 = vmatprep.subr.bf16.mxu0 0
        %1094 = vmatpush1.bf16.msra.mxu0 0
        %1095 = vmatprep.subr.bf16.mxu0 0
        %1096 = vmatpush1.bf16.msra.mxu0 0
        %1097 = vmatprep.subr.bf16.mxu0 0
        %1098 = vmatpush1.bf16.msra.mxu0 0
        %1099 = vmatprep.subr.bf16.mxu0 0
        %1100 = vmatpush1.bf16.msra.mxu0 %v1083
        %1101 = vmatprep.subr.bf16.mxu0 0
        %1102 = vmatpush2.bf16.msra.mxu0 0
        %1103 = vmatprep.subr.bf16.mxu0 0
        %1104 = vmatpush2.bf16.msra.mxu0 0
        %1105 = vmatprep.subr.bf16.mxu0 0
        %1106 = vmatpush2.bf16.msra.mxu0 0
        %1107 = vmatprep.subr.bf16.mxu0 0
        %1108 = vmatpush2.bf16.msra.mxu0 0
        %1109 = vmatprep.subr.bf16.mxu0 0
        %1110 = vmatpush2.bf16.msra.mxu0 0
        %1111 = vmatprep.subr.bf16.mxu0 0
        %1112 = vmatpush2.bf16.msra.mxu0 0
        %1113 = vmatprep.subr.bf16.mxu0 0
        %1114 = vmatpush2.bf16.msra.mxu0 0
        %1115 = vmatprep.subr.bf16.mxu0 0
        %1116 = vmatpush2.bf16.msra.mxu0 0
        %1117 = vmatprep.mubr.bf16.mxu0 0
        %1118 = vmatmul.mubr.bf16.gmra.mxu0 %v1079
        %v1119 = vpop.f32.mrf.mxu0
        %v1120 = vadd.f32 0.0, %v1119
        %v1121 = vpop.f32.mrf.mxu0
        %v1122 = vpop.f32.mrf.mxu0
        %v1123 = vpop.f32.mrf.mxu0
        %1124 = vdwg.mxu0
        %v1125 = vpack.c.bf16 %v1120, %v1120
        %vm1126 = vcmask 60416
        %1127 = vst.msk [vmem:[#allocation4] sm:$0xf] %vm1126, %v1125
        %1129 = vrot.lane.b32.xlu0 %v1015, 120
        %v1130 = vpop.permute.xlu0 %1129
        %v1132 = vunpack.c.l.b16 %v1016
        %v1133 = vpack.c.b16 %v1132, %v1132
        %1134 = vrot.lane.b32.xlu0 %v1133, 120
        %v1135 = vpop.permute.xlu0 %1134
        %v1137 = vsel %vm1019, %v1130, 0
        %v1140 = vsel %vm1019, %v1135, 0
        %1142 = vmatprep.subr.bf16.mxu0 0
        %1143 = vmatpush1.bf16.xpose.msra.mxu0 0
        %1144 = vmatprep.subr.bf16.mxu0 0
        %1145 = vmatpush1.bf16.xpose.msra.mxu0 0
        %1146 = vmatprep.subr.bf16.mxu0 0
        %1147 = vmatpush1.bf16.xpose.msra.mxu0 0
        %1148 = vmatprep.subr.bf16.mxu0 0
        %1149 = vmatpush1.bf16.xpose.msra.mxu0 0
        %1150 = vmatprep.subr.bf16.mxu0 0
        %1151 = vmatpush1.bf16.xpose.msra.mxu0 0
        %1152 = vmatprep.subr.bf16.mxu0 0
        %1153 = vmatpush1.bf16.xpose.msra.mxu0 0
        %1154 = vmatprep.subr.bf16.mxu0 0
        %1155 = vmatpush1.bf16.xpose.msra.mxu0 0
        %1156 = vmatprep.subr.bf16.mxu0 0
        %1157 = vmatpush1.bf16.xpose.msra.mxu0 %v1140
        %1158 = vmatprep.subr.bf16.mxu0 0
        %1159 = vmatpush2.bf16.xpose.msra.mxu0 0
        %1160 = vmatprep.subr.bf16.mxu0 0
        %1161 = vmatpush2.bf16.xpose.msra.mxu0 0
        %1162 = vmatprep.subr.bf16.mxu0 0
        %1163 = vmatpush2.bf16.xpose.msra.mxu0 0
        %1164 = vmatprep.subr.bf16.mxu0 0
        %1165 = vmatpush2.bf16.xpose.msra.mxu0 0
        %1166 = vmatprep.subr.bf16.mxu0 0
        %1167 = vmatpush2.bf16.xpose.msra.mxu0 0
        %1168 = vmatprep.subr.bf16.mxu0 0
        %1169 = vmatpush2.bf16.xpose.msra.mxu0 0
        %1170 = vmatprep.subr.bf16.mxu0 0
        %1171 = vmatpush2.bf16.xpose.msra.mxu0 0
        %1172 = vmatprep.subr.bf16.mxu0 0
        %1173 = vmatpush2.bf16.xpose.msra.mxu0 0
        %1174 = vmatprep.mubr.bf16.mxu0 0
        %1175 = vmatmul.mubr.bf16.gmra.mxu0 %v1137
        %v1176 = vpop.f32.mrf.mxu0
        %v1177 = vadd.f32 %v1013, %v1176
        %v1178 = vpop.f32.mrf.mxu0
        %v1179 = vpop.f32.mrf.mxu0
        %v1180 = vpop.f32.mrf.mxu0
        %1181 = vdwg.mxu0
        %v1182 = vsel %vm1019, %v1177, -inf
        %1183 = vmax.xlane.f32.xlu0 %v1182
        %v1184 = vpop.xlane.xlu0 %1183
        %v1185 = vsub.f32 %v1177, %v1184
        %v1186 = vmul.f32 %v1185, 1.442695
        %v1187 = vpow.pop %v1186
        %v1188 = vsel %vm1019, %v1187, 0.0
        %1189 = vadd.xlane.f32.xlu0 %v1188
        %v1190 = vpop.xlane.xlu0 %1189
        %v1191 = vrcp.pop %v1190
        %v1192 = vmul.f32 %v1187, %v1191
        %v1193 = vpack.c.bf16 %v1192, %v1192
        %v1195 = vunpack.c.l.b16 %v1018
        %v1196 = vpack.c.b16 %v1195, %v1195
        %1197 = vrot.lane.b32.xlu0 %v1196, 120
        %v1198 = vpop.permute.xlu0 %1197
        %v1200 = vsel %vm1019, %v1193, 0
        %v1203 = vsel %vm1081, %v1198, 0
        %1205 = vmatprep.subr.bf16.mxu0 0
        %1206 = vmatpush1.bf16.msra.mxu0 0
        %1207 = vmatprep.subr.bf16.mxu0 0
        %1208 = vmatpush1.bf16.msra.mxu0 0
        %1209 = vmatprep.subr.bf16.mxu0 0
        %1210 = vmatpush1.bf16.msra.mxu0 0
        %1211 = vmatprep.subr.bf16.mxu0 0
        %1212 = vmatpush1.bf16.msra.mxu0 0
        %1213 = vmatprep.subr.bf16.mxu0 0
        %1214 = vmatpush1.bf16.msra.mxu0 0
        %1215 = vmatprep.subr.bf16.mxu0 0
        %1216 = vmatpush1.bf16.msra.mxu0 0
        %1217 = vmatprep.subr.bf16.mxu0 0
        %1218 = vmatpush1.bf16.msra.mxu0 0
        %1219 = vmatprep.subr.bf16.mxu0 0
        %1220 = vmatpush1.bf16.msra.mxu0 %v1203
        %1221 = vmatprep.subr.bf16.mxu0 0
        %1222 = vmatpush2.bf16.msra.mxu0 0
        %1223 = vmatprep.subr.bf16.mxu0 0
        %1224 = vmatpush2.bf16.msra.mxu0 0
        %1225 = vmatprep.subr.bf16.mxu0 0
        %1226 = vmatpush2.bf16.msra.mxu0 0
        %1227 = vmatprep.subr.bf16.mxu0 0
        %1228 = vmatpush2.bf16.msra.mxu0 0
        %1229 = vmatprep.subr.bf16.mxu0 0
        %1230 = vmatpush2.bf16.msra.mxu0 0
        %1231 = vmatprep.subr.bf16.mxu0 0
        %1232 = vmatpush2.bf16.msra.mxu0 0
        %1233 = vmatprep.subr.bf16.mxu0 0
        %1234 = vmatpush2.bf16.msra.mxu0 0
        %1235 = vmatprep.subr.bf16.mxu0 0
        %1236 = vmatpush2.bf16.msra.mxu0 0
        %1237 = vmatprep.mubr.bf16.mxu0 0
        %1238 = vmatmul.mubr.bf16.gmra.mxu0 %v1200
        %v1239 = vpop.f32.mrf.mxu0
        %v1240 = vadd.f32 0.0, %v1239
        %v1241 = vpop.f32.mrf.mxu0
        %v1242 = vpop.f32.mrf.mxu0
        %v1243 = vpop.f32.mrf.mxu0
        %1244 = vdwg.mxu0
        %v1245 = vpack.c.bf16 %v1240, %v1240
        %v1247 = vunpack.c.l.b16 %v1245
        %v1248 = vpack.c.b16 %v1247, %v1247
        %1249 = vrot.lane.b32.xlu0 %v1248, 8
        %v1250 = vpop.permute.xlu0 %1249
        %vm1252 = vcmask 126016
        %1253 = vst.msk [vmem:[#allocation4] sm:$0xf] %vm1252, %v1250
        %1254 = vrot.lane.b32.xlu0 %v1015, 112
        %v1255 = vpop.permute.xlu0 %1254
        %1256 = vrot.lane.b32.xlu0 %v1133, 112
        %v1257 = vpop.permute.xlu0 %1256
        %v1259 = vsel %vm1019, %v1255, 0
        %v1262 = vsel %vm1019, %v1257, 0
        %1264 = vmatprep.subr.bf16.mxu0 0
        %1265 = vmatpush1.bf16.xpose.msra.mxu0 0
        %1266 = vmatprep.subr.bf16.mxu0 0
        %1267 = vmatpush1.bf16.xpose.msra.mxu0 0
        %1268 = vmatprep.subr.bf16.mxu0 0
        %1269 = vmatpush1.bf16.xpose.msra.mxu0 0
        %1270 = vmatprep.subr.bf16.mxu0 0
        %1271 = vmatpush1.bf16.xpose.msra.mxu0 0
        %1272 = vmatprep.subr.bf16.mxu0 0
        %1273 = vmatpush1.bf16.xpose.msra.mxu0 0
        %1274 = vmatprep.subr.bf16.mxu0 0
        %1275 = vmatpush1.bf16.xpose.msra.mxu0 0
        %1276 = vmatprep.subr.bf16.mxu0 0
        %1277 = vmatpush1.bf16.xpose.msra.mxu0 0
        %1278 = vmatprep.subr.bf16.mxu0 0
        %1279 = vmatpush1.bf16.xpose.msra.mxu0 %v1262
        %1280 = vmatprep.subr.bf16.mxu0 0
        %1281 = vmatpush2.bf16.xpose.msra.mxu0 0
        %1282 = vmatprep.subr.bf16.mxu0 0
        %1283 = vmatpush2.bf16.xpose.msra.mxu0 0
        %1284 = vmatprep.subr.bf16.mxu0 0
        %1285 = vmatpush2.bf16.xpose.msra.mxu0 0
        %1286 = vmatprep.subr.bf16.mxu0 0
        %1287 = vmatpush2.bf16.xpose.msra.mxu0 0
        %1288 = vmatprep.subr.bf16.mxu0 0
        %1289 = vmatpush2.bf16.xpose.msra.mxu0 0
        %1290 = vmatprep.subr.bf16.mxu0 0
        %1291 = vmatpush2.bf16.xpose.msra.mxu0 0
        %1292 = vmatprep.subr.bf16.mxu0 0
        %1293 = vmatpush2.bf16.xpose.msra.mxu0 0
        %1294 = vmatprep.subr.bf16.mxu0 0
        %1295 = vmatpush2.bf16.xpose.msra.mxu0 0
        %1296 = vmatprep.mubr.bf16.mxu0 0
        %1297 = vmatmul.mubr.bf16.gmra.mxu0 %v1259
        %v1298 = vpop.f32.mrf.mxu0
        %v1299 = vadd.f32 %v1013, %v1298
        %v1300 = vpop.f32.mrf.mxu0
        %v1301 = vpop.f32.mrf.mxu0
        %v1302 = vpop.f32.mrf.mxu0
        %1303 = vdwg.mxu0
        %v1304 = vsel %vm1019, %v1299, -inf
        %1305 = vmax.xlane.f32.xlu0 %v1304
        %v1306 = vpop.xlane.xlu0 %1305
        %v1307 = vsub.f32 %v1299, %v1306
        %v1308 = vmul.f32 %v1307, 1.442695
        %v1309 = vpow.pop %v1308
        %v1310 = vsel %vm1019, %v1309, 0.0
        %1311 = vadd.xlane.f32.xlu0 %v1310
        %v1312 = vpop.xlane.xlu0 %1311
        %v1313 = vrcp.pop %v1312
        %v1314 = vmul.f32 %v1309, %v1313
        %v1315 = vpack.c.bf16 %v1314, %v1314
        %1316 = vrot.lane.b32.xlu0 %v1196, 112
        %v1317 = vpop.permute.xlu0 %1316
        %v1319 = vsel %vm1019, %v1315, 0
        %v1322 = vsel %vm1081, %v1317, 0
        %1324 = vmatprep.subr.bf16.mxu0 0
        %1325 = vmatpush1.bf16.msra.mxu0 0
        %1326 = vmatprep.subr.bf16.mxu0 0
        %1327 = vmatpush1.bf16.msra.mxu0 0
        %1328 = vmatprep.subr.bf16.mxu0 0
        %1329 = vmatpush1.bf16.msra.mxu0 0
        %1330 = vmatprep.subr.bf16.mxu0 0
        %1331 = vmatpush1.bf16.msra.mxu0 0
        %1332 = vmatprep.subr.bf16.mxu0 0
        %1333 = vmatpush1.bf16.msra.mxu0 0
        %1334 = vmatprep.subr.bf16.mxu0 0
        %1335 = vmatpush1.bf16.msra.mxu0 0
        %1336 = vmatprep.subr.bf16.mxu0 0
        %1337 = vmatpush1.bf16.msra.mxu0 0
        %1338 = vmatprep.subr.bf16.mxu0 0
        %1339 = vmatpush1.bf16.msra.mxu0 %v1322
        %1340 = vmatprep.subr.bf16.mxu0 0
        %1341 = vmatpush2.bf16.msra.mxu0 0
        %1342 = vmatprep.subr.bf16.mxu0 0
        %1343 = vmatpush2.bf16.msra.mxu0 0
        %1344 = vmatprep.subr.bf16.mxu0 0
        %1345 = vmatpush2.bf16.msra.mxu0 0
        %1346 = vmatprep.subr.bf16.mxu0 0
        %1347 = vmatpush2.bf16.msra.mxu0 0
        %1348 = vmatprep.subr.bf16.mxu0 0
        %1349 = vmatpush2.bf16.msra.mxu0 0
        %1350 = vmatprep.subr.bf16.mxu0 0
        %1351 = vmatpush2.bf16.msra.mxu0 0
        %1352 = vmatprep.subr.bf16.mxu0 0
        %1353 = vmatpush2.bf16.msra.mxu0 0
        %1354 = vmatprep.subr.bf16.mxu0 0
        %1355 = vmatpush2.bf16.msra.mxu0 0
        %1356 = vmatprep.mubr.bf16.mxu0 0
        %1357 = vmatmul.mubr.bf16.gmra.mxu0 %v1319
        %v1358 = vpop.f32.mrf.mxu0
        %v1359 = vadd.f32 0.0, %v1358
        %v1360 = vpop.f32.mrf.mxu0
        %v1361 = vpop.f32.mrf.mxu0
        %v1362 = vpop.f32.mrf.mxu0
        %1363 = vdwg.mxu0
        %v1364 = vpack.c.bf16 %v1359, %v1359
        %v1366 = vunpack.c.l.b16 %v1364
        %v1367 = vpack.c.b16 %v1366, %v1366
        %1368 = vrot.lane.b32.xlu0 %v1367, 16
        %v1369 = vpop.permute.xlu0 %1368
        %vm1371 = vcmask 191616
        %1372 = vst.msk [vmem:[#allocation4] sm:$0xf] %vm1371, %v1369
        %1373 = vrot.lane.b32.xlu0 %v1015, 104
        %v1374 = vpop.permute.xlu0 %1373
        %1375 = vrot.lane.b32.xlu0 %v1133, 104
        %v1376 = vpop.permute.xlu0 %1375
        %v1378 = vsel %vm1019, %v1374, 0
        %v1381 = vsel %vm1019, %v1376, 0
        %1383 = vmatprep.subr.bf16.mxu0 0
        %1384 = vmatpush1.bf16.xpose.msra.mxu0 0
        %1385 = vmatprep.subr.bf16.mxu0 0
        %1386 = vmatpush1.bf16.xpose.msra.mxu0 0
        %1387 = vmatprep.subr.bf16.mxu0 0
        %1388 = vmatpush1.bf16.xpose.msra.mxu0 0
        %1389 = vmatprep.subr.bf16.mxu0 0
        %1390 = vmatpush1.bf16.xpose.msra.mxu0 0
        %1391 = vmatprep.subr.bf16.mxu0 0
        %1392 = vmatpush1.bf16.xpose.msra.mxu0 0
        %1393 = vmatprep.subr.bf16.mxu0 0
        %1394 = vmatpush1.bf16.xpose.msra.mxu0 0
        %1395 = vmatprep.subr.bf16.mxu0 0
        %1396 = vmatpush1.bf16.xpose.msra.mxu0 0
        %1397 = vmatprep.subr.bf16.mxu0 0
        %1398 = vmatpush1.bf16.xpose.msra.mxu0 %v1381
        %1399 = vmatprep.subr.bf16.mxu0 0
        %1400 = vmatpush2.bf16.xpose.msra.mxu0 0
        %1401 = vmatprep.subr.bf16.mxu0 0
        %1402 = vmatpush2.bf16.xpose.msra.mxu0 0
        %1403 = vmatprep.subr.bf16.mxu0 0
        %1404 = vmatpush2.bf16.xpose.msra.mxu0 0
        %1405 = vmatprep.subr.bf16.mxu0 0
        %1406 = vmatpush2.bf16.xpose.msra.mxu0 0
        %1407 = vmatprep.subr.bf16.mxu0 0
        %1408 = vmatpush2.bf16.xpose.msra.mxu0 0
        %1409 = vmatprep.subr.bf16.mxu0 0
        %1410 = vmatpush2.bf16.xpose.msra.mxu0 0
        %1411 = vmatprep.subr.bf16.mxu0 0
        %1412 = vmatpush2.bf16.xpose.msra.mxu0 0
        %1413 = vmatprep.subr.bf16.mxu0 0
        %1414 = vmatpush2.bf16.xpose.msra.mxu0 0
        %1415 = vmatprep.mubr.bf16.mxu0 0
        %1416 = vmatmul.mubr.bf16.gmra.mxu0 %v1378
        %v1417 = vpop.f32.mrf.mxu0
        %v1418 = vadd.f32 %v1013, %v1417
        %v1419 = vpop.f32.mrf.mxu0
        %v1420 = vpop.f32.mrf.mxu0
        %v1421 = vpop.f32.mrf.mxu0
        %1422 = vdwg.mxu0
        %v1423 = vsel %vm1019, %v1418, -inf
        %1424 = vmax.xlane.f32.xlu0 %v1423
        %v1425 = vpop.xlane.xlu0 %1424
        %v1426 = vsub.f32 %v1418, %v1425
        %v1427 = vmul.f32 %v1426, 1.442695
        %v1428 = vpow.pop %v1427
        %v1429 = vsel %vm1019, %v1428, 0.0
        %1430 = vadd.xlane.f32.xlu0 %v1429
        %v1431 = vpop.xlane.xlu0 %1430
        %v1432 = vrcp.pop %v1431
        %v1433 = vmul.f32 %v1428, %v1432
        %v1434 = vpack.c.bf16 %v1433, %v1433
        %1435 = vrot.lane.b32.xlu0 %v1196, 104
        %v1436 = vpop.permute.xlu0 %1435
        %v1438 = vsel %vm1019, %v1434, 0
        %v1441 = vsel %vm1081, %v1436, 0
        %1443 = vmatprep.subr.bf16.mxu0 0
        %1444 = vmatpush1.bf16.msra.mxu0 0
        %1445 = vmatprep.subr.bf16.mxu0 0
        %1446 = vmatpush1.bf16.msra.mxu0 0
        %1447 = vmatprep.subr.bf16.mxu0 0
        %1448 = vmatpush1.bf16.msra.mxu0 0
        %1449 = vmatprep.subr.bf16.mxu0 0
        %1450 = vmatpush1.bf16.msra.mxu0 0
        %1451 = vmatprep.subr.bf16.mxu0 0
        %1452 = vmatpush1.bf16.msra.mxu0 0
        %1453 = vmatprep.subr.bf16.mxu0 0
        %1454 = vmatpush1.bf16.msra.mxu0 0
        %1455 = vmatprep.subr.bf16.mxu0 0
        %1456 = vmatpush1.bf16.msra.mxu0 0
        %1457 = vmatprep.subr.bf16.mxu0 0
        %1458 = vmatpush1.bf16.msra.mxu0 %v1441
        %1459 = vmatprep.subr.bf16.mxu0 0
        %1460 = vmatpush2.bf16.msra.mxu0 0
        %1461 = vmatprep.subr.bf16.mxu0 0
        %1462 = vmatpush2.bf16.msra.mxu0 0
        %1463 = vmatprep.subr.bf16.mxu0 0
        %1464 = vmatpush2.bf16.msra.mxu0 0
        %1465 = vmatprep.subr.bf16.mxu0 0
        %1466 = vmatpush2.bf16.msra.mxu0 0
        %1467 = vmatprep.subr.bf16.mxu0 0
        %1468 = vmatpush2.bf16.msra.mxu0 0
        %1469 = vmatprep.subr.bf16.mxu0 0
        %1470 = vmatpush2.bf16.msra.mxu0 0
        %1471 = vmatprep.subr.bf16.mxu0 0
        %1472 = vmatpush2.bf16.msra.mxu0 0
        %1473 = vmatprep.subr.bf16.mxu0 0
        %1474 = vmatpush2.bf16.msra.mxu0 0
        %1475 = vmatprep.mubr.bf16.mxu0 0
        %1476 = vmatmul.mubr.bf16.gmra.mxu0 %v1438
        %v1477 = vpop.f32.mrf.mxu0
        %v1478 = vadd.f32 0.0, %v1477
        %v1479 = vpop.f32.mrf.mxu0
        %v1480 = vpop.f32.mrf.mxu0
        %v1481 = vpop.f32.mrf.mxu0
        %1482 = vdwg.mxu0
        %v1483 = vpack.c.bf16 %v1478, %v1478
        %v1485 = vunpack.c.l.b16 %v1483
        %v1486 = vpack.c.b16 %v1485, %v1485
        %1487 = vrot.lane.b32.xlu0 %v1486, 24
        %v1488 = vpop.permute.xlu0 %1487
        %vm1490 = vcmask 257216
        %1491 = vst.msk [vmem:[#allocation4] sm:$0xf] %vm1490, %v1488
        %v1492 = vld [vmem:[#allocation4] sm:$0xf]
        %v1493 = vlaneseq
        %v1494 = vshrl.u32 %v1493, 7
        %v1495 = vsub.s32 0, %v1494
        %v1496 = vrot.slane %v1012, %v1495
        %v1501 = vunpack.c.l.b16 %v1008
        %v1502 = vunpack.c.l.b16 %v1009
        %v1503 = vunpack.c.l.b16 %v1010
        %v1504 = vunpack.c.l.b16 %v1011
        %v1505 = vpack.c.b16 %v1502, %v1501
        %v1506 = vpack.c.b16 %v1504, %v1503
        %v1510 = vsel %vm933, %v1492, 0
        %1512 = vmatprep.subr.bf16.mxu0 0
        %1513 = vmatpush1.bf16.msra.mxu0 0
        %1514 = vmatprep.subr.bf16.mxu0 0
        %1515 = vmatpush1.bf16.msra.mxu0 0
        %1516 = vmatprep.subr.bf16.mxu0 0
        %1517 = vmatpush1.bf16.msra.mxu0 0
        %1518 = vmatprep.subr.bf16.mxu0 0
        %1519 = vmatpush1.bf16.msra.mxu0 0
        %1520 = vmatprep.subr.bf16.mxu0 0
        %1521 = vmatpush1.bf16.msra.mxu0 0
        %1522 = vmatprep.subr.bf16.mxu0 0
        %1523 = vmatpush1.bf16.msra.mxu0 0
        %1524 = vmatprep.subr.bf16.mxu0 0
        %1525 = vmatpush1.bf16.msra.mxu0 %v1506
        %1526 = vmatprep.subr.bf16.mxu0 0
        %1527 = vmatpush1.bf16.msra.mxu0 %v1505
        %1528 = vmatprep.subr.bf16.mxu0 0
        %1529 = vmatpush2.bf16.msra.mxu0 0
        %1530 = vmatprep.subr.bf16.mxu0 0
        %1531 = vmatpush2.bf16.msra.mxu0 0
        %1532 = vmatprep.subr.bf16.mxu0 0
        %1533 = vmatpush2.bf16.msra.mxu0 0
        %1534 = vmatprep.subr.bf16.mxu0 0
        %1535 = vmatpush2.bf16.msra.mxu0 0
        %1536 = vmatprep.subr.bf16.mxu0 0
        %1537 = vmatpush2.bf16.msra.mxu0 0
        %1538 = vmatprep.subr.bf16.mxu0 0
        %1539 = vmatpush2.bf16.msra.mxu0 0
        %1540 = vmatprep.subr.bf16.mxu0 0
        %1541 = vmatpush2.bf16.msra.mxu0 0
        %1542 = vmatprep.subr.bf16.mxu0 0
        %1543 = vmatpush2.bf16.msra.mxu0 0
        %1544 = vmatprep.mubr.bf16.mxu0 0
        %1545 = vmatmul.mubr.bf16.gmra.mxu0 %v1510
        %v1546 = vpop.f32.mrf.mxu0
        %v1547 = vadd.f32 %v1496, %v1546
        %v1548 = vpop.f32.mrf.mxu0
        %v1549 = vpop.f32.mrf.mxu0
        %v1550 = vpop.f32.mrf.mxu0
        %1551 = vdwg.mxu0
        %v1552 = vadd.f32 %v931, %v1547
        %v1553 = vmul.f32 %v1552, %v1552
        %v1554 = vsel %vm933, %v1553, 0.0
        %1555 = vadd.xlane.f32.xlu0 %v1554
        %v1556 = vpop.xlane.xlu0 %1555
        %v1557 = vstv %s646
        %v1558 = vmul.f32 %v1557, %v1552
        %v1559 = vmax.f32 %v1556, 1e-10
        %v1560 = vrsqrt.pop %v1559
        %v1561 = vmul.f32 %v1558, %v1560
        %v1562 = vld [vmem:[#allocation12] sm:$0xf]
        %v1563 = vld [vmem:[#allocation12 + $0x4] sm:$0xf]
        %v1564 = vld [vmem:[#allocation12 + $0x8] sm:$0xf]
        %v1565 = vld [vmem:[#allocation12 + $0xc] sm:$0xf]
        %v1566 = vpack.c.bf16 %v1561, %v1561
        %v1567 = vld [vmem:[#allocation14] sm:$0x1]
        %v1568 = vlaneseq
        %v1569 = vshrl.u32 %v1568, 7
        %v1570 = vsub.s32 0, %v1569
        %v1571 = vrot.slane %v1567, %v1570
        %v1576 = vunpack.c.l.b16 %v1562
        %v1577 = vunpack.c.l.b16 %v1563
        %v1578 = vunpack.c.l.b16 %v1564
        %v1579 = vunpack.c.l.b16 %v1565
        %v1580 = vpack.c.b16 %v1577, %v1576
        %v1581 = vpack.c.b16 %v1579, %v1578
        %v1585 = vsel %vm933, %v1566, 0
        %1587 = vmatprep.subr.bf16.mxu0 0
        %1588 = vmatpush1.bf16.msra.mxu0 0
        %1589 = vmatprep.subr.bf16.mxu0 0
        %1590 = vmatpush1.bf16.msra.mxu0 0
        %1591 = vmatprep.subr.bf16.mxu0 0
        %1592 = vmatpush1.bf16.msra.mxu0 0
        %1593 = vmatprep.subr.bf16.mxu0 0
        %1594 = vmatpush1.bf16.msra.mxu0 0
        %1595 = vmatprep.subr.bf16.mxu0 0
        %1596 = vmatpush1.bf16.msra.mxu0 0
        %1597 = vmatprep.subr.bf16.mxu0 0
        %1598 = vmatpush1.bf16.msra.mxu0 0
        %1599 = vmatprep.subr.bf16.mxu0 0
        %1600 = vmatpush1.bf16.msra.mxu0 %v1581
        %1601 = vmatprep.subr.bf16.mxu0 0
        %1602 = vmatpush1.bf16.msra.mxu0 %v1580
        %1603 = vmatprep.subr.bf16.mxu0 0
        %1604 = vmatpush2.bf16.msra.mxu0 0
        %1605 = vmatprep.subr.bf16.mxu0 0
        %1606 = vmatpush2.bf16.msra.mxu0 0
        %1607 = vmatprep.subr.bf16.mxu0 0
        %1608 = vmatpush2.bf16.msra.mxu0 0
        %1609 = vmatprep.subr.bf16.mxu0 0
        %1610 = vmatpush2.bf16.msra.mxu0 0
        %1611 = vmatprep.subr.bf16.mxu0 0
        %1612 = vmatpush2.bf16.msra.mxu0 0
        %1613 = vmatprep.subr.bf16.mxu0 0
        %1614 = vmatpush2.bf16.msra.mxu0 0
        %1615 = vmatprep.subr.bf16.mxu0 0
        %1616 = vmatpush2.bf16.msra.mxu0 0
        %1617 = vmatprep.subr.bf16.mxu0 0
        %1618 = vmatpush2.bf16.msra.mxu0 0
        %1619 = vmatprep.mubr.bf16.mxu0 0
        %1620 = vmatmul.mubr.bf16.gmra.mxu0 %v1585
        %v1621 = vpop.f32.mrf.mxu0
        %v1622 = vadd.f32 %v1571, %v1621
        %v1623 = vpop.f32.mrf.mxu0
        %v1624 = vpop.f32.mrf.mxu0
        %v1625 = vpop.f32.mrf.mxu0
        %1626 = vdwg.mxu0
        %s1627 = scalar_lea.vmem [#allocation12], 48
        %v1628 = vld [vmem:[%s1627] sm:$0xf]
        %v1629 = vld [vmem:[%s1627 + $0x4] sm:$0xf]
        %v1630 = vld [vmem:[%s1627 + $0x8] sm:$0xf]
        %v1631 = vld [vmem:[%s1627 + $0xc] sm:$0xf]
        %v1632 = vld [vmem:[#allocation14 + $0x3] sm:$0x1]
        %v1633 = vld [vmem:[%s549] sm:$0x1]
        %v1634 = vmul.f32 %v1622, 0.35355338
        %v1635 = vpack.c.bf16 %v1634, %v1634
        %v1636 = vld [vmem:[#allocation3] sm:$0xf]
        %s1637 = scalar_lea.vmem [#allocation3], 4
        %v1638 = vld [vmem:[%s1637] sm:$0xf]
        %v1640 = vlaneseq
        %v1641 = vshrl.u32 %v1640, 7
        %v1642 = vsub.s32 0, %v1641
        %v1643 = vrot.slane %v1633, %v1642
        %v1646 = vsel %vm1019, %v1635, 0
        %v1649 = vsel %vm1019, %v1636, 0
        %1651 = vmatprep.subr.bf16.mxu0 0
        %1652 = vmatpush1.bf16.xpose.msra.mxu0 0
        %1653 = vmatprep.subr.bf16.mxu0 0
        %1654 = vmatpush1.bf16.xpose.msra.mxu0 0
        %1655 = vmatprep.subr.bf16.mxu0 0
        %1656 = vmatpush1.bf16.xpose.msra.mxu0 0
        %1657 = vmatprep.subr.bf16.mxu0 0
        %1658 = vmatpush1.bf16.xpose.msra.mxu0 0
        %1659 = vmatprep.subr.bf16.mxu0 0
        %1660 = vmatpush1.bf16.xpose.msra.mxu0 0
        %1661 = vmatprep.subr.bf16.mxu0 0
        %1662 = vmatpush1.bf16.xpose.msra.mxu0 0
        %1663 = vmatprep.subr.bf16.mxu0 0
        %1664 = vmatpush1.bf16.xpose.msra.mxu0 0
        %1665 = vmatprep.subr.bf16.mxu0 0
        %1666 = vmatpush1.bf16.xpose.msra.mxu0 %v1649
        %1667 = vmatprep.subr.bf16.mxu0 0
        %1668 = vmatpush2.bf16.xpose.msra.mxu0 0
        %1669 = vmatprep.subr.bf16.mxu0 0
        %1670 = vmatpush2.bf16.xpose.msra.mxu0 0
        %1671 = vmatprep.subr.bf16.mxu0 0
        %1672 = vmatpush2.bf16.xpose.msra.mxu0 0
        %1673 = vmatprep.subr.bf16.mxu0 0
        %1674 = vmatpush2.bf16.xpose.msra.mxu0 0
        %1675 = vmatprep.subr.bf16.mxu0 0
        %1676 = vmatpush2.bf16.xpose.msra.mxu0 0
        %1677 = vmatprep.subr.bf16.mxu0 0
        %1678 = vmatpush2.bf16.xpose.msra.mxu0 0
        %1679 = vmatprep.subr.bf16.mxu0 0
        %1680 = vmatpush2.bf16.xpose.msra.mxu0 0
        %1681 = vmatprep.subr.bf16.mxu0 0
        %1682 = vmatpush2.bf16.xpose.msra.mxu0 0
        %1683 = vmatprep.mubr.bf16.mxu0 0
        %1684 = vmatmul.mubr.bf16.gmra.mxu0 %v1646
        %v1685 = vpop.f32.mrf.mxu0
        %v1686 = vadd.f32 %v1643, %v1685
        %v1687 = vpop.f32.mrf.mxu0
        %v1688 = vpop.f32.mrf.mxu0
        %v1689 = vpop.f32.mrf.mxu0
        %1690 = vdwg.mxu0
        %v1691 = vsel %vm1019, %v1686, -inf
        %1692 = vmax.xlane.f32.xlu0 %v1691
        %v1693 = vpop.xlane.xlu0 %1692
        %v1694 = vsub.f32 %v1686, %v1693
        %v1695 = vmul.f32 %v1694, 1.442695
        %v1696 = vpow.pop %v1695
        %v1697 = vsel %vm1019, %v1696, 0.0
        %1698 = vadd.xlane.f32.xlu0 %v1697
        %v1699 = vpop.xlane.xlu0 %1698
        %v1700 = vrcp.pop %v1699
        %v1701 = vmul.f32 %v1696, %v1700
        %v1702 = vpack.c.bf16 %v1701, %v1701
        %v1704 = vsel %vm1019, %v1702, 0
        %v1707 = vsel %vm1081, %v1638, 0
        %1709 = vmatprep.subr.bf16.mxu0 0
        %1710 = vmatpush1.bf16.msra.mxu0 0
        %1711 = vmatprep.subr.bf16.mxu0 0
        %1712 = vmatpush1.bf16.msra.mxu0 0
        %1713 = vmatprep.subr.bf16.mxu0 0
        %1714 = vmatpush1.bf16.msra.mxu0 0
        %1715 = vmatprep.subr.bf16.mxu0 0
        %1716 = vmatpush1.bf16.msra.mxu0 0
        %1717 = vmatprep.subr.bf16.mxu0 0
        %1718 = vmatpush1.bf16.msra.mxu0 0
        %1719 = vmatprep.subr.bf16.mxu0 0
        %1720 = vmatpush1.bf16.msra.mxu0 0
        %1721 = vmatprep.subr.bf16.mxu0 0
        %1722 = vmatpush1.bf16.msra.mxu0 0
        %1723 = vmatprep.subr.bf16.mxu0 0
        %1724 = vmatpush1.bf16.msra.mxu0 %v1707
        %1725 = vmatprep.subr.bf16.mxu0 0
        %1726 = vmatpush2.bf16.msra.mxu0 0
        %1727 = vmatprep.subr.bf16.mxu0 0
        %1728 = vmatpush2.bf16.msra.mxu0 0
        %1729 = vmatprep.subr.bf16.mxu0 0
        %1730 = vmatpush2.bf16.msra.mxu0 0
        %1731 = vmatprep.subr.bf16.mxu0 0
        %1732 = vmatpush2.bf16.msra.mxu0 0
        %1733 = vmatprep.subr.bf16.mxu0 0
        %1734 = vmatpush2.bf16.msra.mxu0 0
        %1735 = vmatprep.subr.bf16.mxu0 0
        %1736 = vmatpush2.bf16.msra.mxu0 0
        %1737 = vmatprep.subr.bf16.mxu0 0
        %1738 = vmatpush2.bf16.msra.mxu0 0
        %1739 = vmatprep.subr.bf16.mxu0 0
        %1740 = vmatpush2.bf16.msra.mxu0 0
        %1741 = vmatprep.mubr.bf16.mxu0 0
        %1742 = vmatmul.mubr.bf16.gmra.mxu0 %v1704
        %v1743 = vpop.f32.mrf.mxu0
        %v1744 = vadd.f32 0.0, %v1743
        %v1745 = vpop.f32.mrf.mxu0
        %v1746 = vpop.f32.mrf.mxu0
        %v1747 = vpop.f32.mrf.mxu0
        %1748 = vdwg.mxu0
        %v1749 = vpack.c.bf16 %v1744, %v1744
        %1750 = vst.msk [vmem:[#allocation4] sm:$0xf] %vm1126, %v1749
        %1752 = vrot.lane.b32.xlu0 %v1635, 120
        %v1753 = vpop.permute.xlu0 %1752
        %v1755 = vunpack.c.l.b16 %v1636
        %v1756 = vpack.c.b16 %v1755, %v1755
        %1757 = vrot.lane.b32.xlu0 %v1756, 120
        %v1758 = vpop.permute.xlu0 %1757
        %v1760 = vsel %vm1019, %v1753, 0
        %v1763 = vsel %vm1019, %v1758, 0
        %1765 = vmatprep.subr.bf16.mxu0 0
        %1766 = vmatpush1.bf16.xpose.msra.mxu0 0
        %1767 = vmatprep.subr.bf16.mxu0 0
        %1768 = vmatpush1.bf16.xpose.msra.mxu0 0
        %1769 = vmatprep.subr.bf16.mxu0 0
        %1770 = vmatpush1.bf16.xpose.msra.mxu0 0
        %1771 = vmatprep.subr.bf16.mxu0 0
        %1772 = vmatpush1.bf16.xpose.msra.mxu0 0
        %1773 = vmatprep.subr.bf16.mxu0 0
        %1774 = vmatpush1.bf16.xpose.msra.mxu0 0
        %1775 = vmatprep.subr.bf16.mxu0 0
        %1776 = vmatpush1.bf16.xpose.msra.mxu0 0
        %1777 = vmatprep.subr.bf16.mxu0 0
        %1778 = vmatpush1.bf16.xpose.msra.mxu0 0
        %1779 = vmatprep.subr.bf16.mxu0 0
        %1780 = vmatpush1.bf16.xpose.msra.mxu0 %v1763
        %1781 = vmatprep.subr.bf16.mxu0 0
        %1782 = vmatpush2.bf16.xpose.msra.mxu0 0
        %1783 = vmatprep.subr.bf16.mxu0 0
        %1784 = vmatpush2.bf16.xpose.msra.mxu0 0
        %1785 = vmatprep.subr.bf16.mxu0 0
        %1786 = vmatpush2.bf16.xpose.msra.mxu0 0
        %1787 = vmatprep.subr.bf16.mxu0 0
        %1788 = vmatpush2.bf16.xpose.msra.mxu0 0
        %1789 = vmatprep.subr.bf16.mxu0 0
        %1790 = vmatpush2.bf16.xpose.msra.mxu0 0
        %1791 = vmatprep.subr.bf16.mxu0 0
        %1792 = vmatpush2.bf16.xpose.msra.mxu0 0
        %1793 = vmatprep.subr.bf16.mxu0 0
        %1794 = vmatpush2.bf16.xpose.msra.mxu0 0
        %1795 = vmatprep.subr.bf16.mxu0 0
        %1796 = vmatpush2.bf16.xpose.msra.mxu0 0
        %1797 = vmatprep.mubr.bf16.mxu0 0
        %1798 = vmatmul.mubr.bf16.gmra.mxu0 %v1760
        %v1799 = vpop.f32.mrf.mxu0
        %v1800 = vadd.f32 %v1643, %v1799
        %v1801 = vpop.f32.mrf.mxu0
        %v1802 = vpop.f32.mrf.mxu0
        %v1803 = vpop.f32.mrf.mxu0
        %1804 = vdwg.mxu0
        %v1805 = vsel %vm1019, %v1800, -inf
        %1806 = vmax.xlane.f32.xlu0 %v1805
        %v1807 = vpop.xlane.xlu0 %1806
        %v1808 = vsub.f32 %v1800, %v1807
        %v1809 = vmul.f32 %v1808, 1.442695
        %v1810 = vpow.pop %v1809
        %v1811 = vsel %vm1019, %v1810, 0.0
        %1812 = vadd.xlane.f32.xlu0 %v1811
        %v1813 = vpop.xlane.xlu0 %1812
        %v1814 = vrcp.pop %v1813
        %v1815 = vmul.f32 %v1810, %v1814
        %v1816 = vpack.c.bf16 %v1815, %v1815
        %v1818 = vunpack.c.l.b16 %v1638
        %v1819 = vpack.c.b16 %v1818, %v1818
        %1820 = vrot.lane.b32.xlu0 %v1819, 120
        %v1821 = vpop.permute.xlu0 %1820
        %v1823 = vsel %vm1019, %v1816, 0
        %v1826 = vsel %vm1081, %v1821, 0
        %1828 = vmatprep.subr.bf16.mxu0 0
        %1829 = vmatpush1.bf16.msra.mxu0 0
        %1830 = vmatprep.subr.bf16.mxu0 0
        %1831 = vmatpush1.bf16.msra.mxu0 0
        %1832 = vmatprep.subr.bf16.mxu0 0
        %1833 = vmatpush1.bf16.msra.mxu0 0
        %1834 = vmatprep.subr.bf16.mxu0 0
        %1835 = vmatpush1.bf16.msra.mxu0 0
        %1836 = vmatprep.subr.bf16.mxu0 0
        %1837 = vmatpush1.bf16.msra.mxu0 0
        %1838 = vmatprep.subr.bf16.mxu0 0
        %1839 = vmatpush1.bf16.msra.mxu0 0
        %1840 = vmatprep.subr.bf16.mxu0 0
        %1841 = vmatpush1.bf16.msra.mxu0 0
        %1842 = vmatprep.subr.bf16.mxu0 0
        %1843 = vmatpush1.bf16.msra.mxu0 %v1826
        %1844 = vmatprep.subr.bf16.mxu0 0
        %1845 = vmatpush2.bf16.msra.mxu0 0
        %1846 = vmatprep.subr.bf16.mxu0 0
        %1847 = vmatpush2.bf16.msra.mxu0 0
        %1848 = vmatprep.subr.bf16.mxu0 0
        %1849 = vmatpush2.bf16.msra.mxu0 0
        %1850 = vmatprep.subr.bf16.mxu0 0
        %1851 = vmatpush2.bf16.msra.mxu0 0
        %1852 = vmatprep.subr.bf16.mxu0 0
        %1853 = vmatpush2.bf16.msra.mxu0 0
        %1854 = vmatprep.subr.bf16.mxu0 0
        %1855 = vmatpush2.bf16.msra.mxu0 0
        %1856 = vmatprep.subr.bf16.mxu0 0
        %1857 = vmatpush2.bf16.msra.mxu0 0
        %1858 = vmatprep.subr.bf16.mxu0 0
        %1859 = vmatpush2.bf16.msra.mxu0 0
        %1860 = vmatprep.mubr.bf16.mxu0 0
        %1861 = vmatmul.mubr.bf16.gmra.mxu0 %v1823
        %v1862 = vpop.f32.mrf.mxu0
        %v1863 = vadd.f32 0.0, %v1862
        %v1864 = vpop.f32.mrf.mxu0
        %v1865 = vpop.f32.mrf.mxu0
        %v1866 = vpop.f32.mrf.mxu0
        %1867 = vdwg.mxu0
        %v1868 = vpack.c.bf16 %v1863, %v1863
        %v1870 = vunpack.c.l.b16 %v1868
        %v1871 = vpack.c.b16 %v1870, %v1870
        %1872 = vrot.lane.b32.xlu0 %v1871, 8
        %v1873 = vpop.permute.xlu0 %1872
        %1875 = vst.msk [vmem:[#allocation4] sm:$0xf] %vm1252, %v1873
        %1876 = vrot.lane.b32.xlu0 %v1635, 112
        %v1877 = vpop.permute.xlu0 %1876
        %1878 = vrot.lane.b32.xlu0 %v1756, 112
        %v1879 = vpop.permute.xlu0 %1878
        %v1881 = vsel %vm1019, %v1877, 0
        %v1884 = vsel %vm1019, %v1879, 0
        %1886 = vmatprep.subr.bf16.mxu0 0
        %1887 = vmatpush1.bf16.xpose.msra.mxu0 0
        %1888 = vmatprep.subr.bf16.mxu0 0
        %1889 = vmatpush1.bf16.xpose.msra.mxu0 0
        %1890 = vmatprep.subr.bf16.mxu0 0
        %1891 = vmatpush1.bf16.xpose.msra.mxu0 0
        %1892 = vmatprep.subr.bf16.mxu0 0
        %1893 = vmatpush1.bf16.xpose.msra.mxu0 0
        %1894 = vmatprep.subr.bf16.mxu0 0
        %1895 = vmatpush1.bf16.xpose.msra.mxu0 0
        %1896 = vmatprep.subr.bf16.mxu0 0
        %1897 = vmatpush1.bf16.xpose.msra.mxu0 0
        %1898 = vmatprep.subr.bf16.mxu0 0
        %1899 = vmatpush1.bf16.xpose.msra.mxu0 0
        %1900 = vmatprep.subr.bf16.mxu0 0
        %1901 = vmatpush1.bf16.xpose.msra.mxu0 %v1884
        %1902 = vmatprep.subr.bf16.mxu0 0
        %1903 = vmatpush2.bf16.xpose.msra.mxu0 0
        %1904 = vmatprep.subr.bf16.mxu0 0
        %1905 = vmatpush2.bf16.xpose.msra.mxu0 0
        %1906 = vmatprep.subr.bf16.mxu0 0
        %1907 = vmatpush2.bf16.xpose.msra.mxu0 0
        %1908 = vmatprep.subr.bf16.mxu0 0
        %1909 = vmatpush2.bf16.xpose.msra.mxu0 0
        %1910 = vmatprep.subr.bf16.mxu0 0
        %1911 = vmatpush2.bf16.xpose.msra.mxu0 0
        %1912 = vmatprep.subr.bf16.mxu0 0
        %1913 = vmatpush2.bf16.xpose.msra.mxu0 0
        %1914 = vmatprep.subr.bf16.mxu0 0
        %1915 = vmatpush2.bf16.xpose.msra.mxu0 0
        %1916 = vmatprep.subr.bf16.mxu0 0
        %1917 = vmatpush2.bf16.xpose.msra.mxu0 0
        %1918 = vmatprep.mubr.bf16.mxu0 0
        %1919 = vmatmul.mubr.bf16.gmra.mxu0 %v1881
        %v1920 = vpop.f32.mrf.mxu0
        %v1921 = vadd.f32 %v1643, %v1920
        %v1922 = vpop.f32.mrf.mxu0
        %v1923 = vpop.f32.mrf.mxu0
        %v1924 = vpop.f32.mrf.mxu0
        %1925 = vdwg.mxu0
        %v1926 = vsel %vm1019, %v1921, -inf
        %1927 = vmax.xlane.f32.xlu0 %v1926
        %v1928 = vpop.xlane.xlu0 %1927
        %v1929 = vsub.f32 %v1921, %v1928
        %v1930 = vmul.f32 %v1929, 1.442695
        %v1931 = vpow.pop %v1930
        %v1932 = vsel %vm1019, %v1931, 0.0
        %1933 = vadd.xlane.f32.xlu0 %v1932
        %v1934 = vpop.xlane.xlu0 %1933
        %v1935 = vrcp.pop %v1934
        %v1936 = vmul.f32 %v1931, %v1935
        %v1937 = vpack.c.bf16 %v1936, %v1936
        %1938 = vrot.lane.b32.xlu0 %v1819, 112
        %v1939 = vpop.permute.xlu0 %1938
        %v1941 = vsel %vm1019, %v1937, 0
        %v1944 = vsel %vm1081, %v1939, 0
        %1946 = vmatprep.subr.bf16.mxu0 0
        %1947 = vmatpush1.bf16.msra.mxu0 0
        %1948 = vmatprep.subr.bf16.mxu0 0
        %1949 = vmatpush1.bf16.msra.mxu0 0
        %1950 = vmatprep.subr.bf16.mxu0 0
        %1951 = vmatpush1.bf16.msra.mxu0 0
        %1952 = vmatprep.subr.bf16.mxu0 0
        %1953 = vmatpush1.bf16.msra.mxu0 0
        %1954 = vmatprep.subr.bf16.mxu0 0
        %1955 = vmatpush1.bf16.msra.mxu0 0
        %1956 = vmatprep.subr.bf16.mxu0 0
        %1957 = vmatpush1.bf16.msra.mxu0 0
        %1958 = vmatprep.subr.bf16.mxu0 0
        %1959 = vmatpush1.bf16.msra.mxu0 0
        %1960 = vmatprep.subr.bf16.mxu0 0
        %1961 = vmatpush1.bf16.msra.mxu0 %v1944
        %1962 = vmatprep.subr.bf16.mxu0 0
        %1963 = vmatpush2.bf16.msra.mxu0 0
        %1964 = vmatprep.subr.bf16.mxu0 0
        %1965 = vmatpush2.bf16.msra.mxu0 0
        %1966 = vmatprep.subr.bf16.mxu0 0
        %1967 = vmatpush2.bf16.msra.mxu0 0
        %1968 = vmatprep.subr.bf16.mxu0 0
        %1969 = vmatpush2.bf16.msra.mxu0 0
        %1970 = vmatprep.subr.bf16.mxu0 0
        %1971 = vmatpush2.bf16.msra.mxu0 0
        %1972 = vmatprep.subr.bf16.mxu0 0
        %1973 = vmatpush2.bf16.msra.mxu0 0
        %1974 = vmatprep.subr.bf16.mxu0 0
        %1975 = vmatpush2.bf16.msra.mxu0 0
        %1976 = vmatprep.subr.bf16.mxu0 0
        %1977 = vmatpush2.bf16.msra.mxu0 0
        %1978 = vmatprep.mubr.bf16.mxu0 0
        %1979 = vmatmul.mubr.bf16.gmra.mxu0 %v1941
        %v1980 = vpop.f32.mrf.mxu0
        %v1981 = vadd.f32 0.0, %v1980
        %v1982 = vpop.f32.mrf.mxu0
        %v1983 = vpop.f32.mrf.mxu0
        %v1984 = vpop.f32.mrf.mxu0
        %1985 = vdwg.mxu0
        %v1986 = vpack.c.bf16 %v1981, %v1981
        %v1988 = vunpack.c.l.b16 %v1986
        %v1989 = vpack.c.b16 %v1988, %v1988
        %1990 = vrot.lane.b32.xlu0 %v1989, 16
        %v1991 = vpop.permute.xlu0 %1990
        %1993 = vst.msk [vmem:[#allocation4] sm:$0xf] %vm1371, %v1991
        %1994 = vrot.lane.b32.xlu0 %v1635, 104
        %v1995 = vpop.permute.xlu0 %1994
        %1996 = vrot.lane.b32.xlu0 %v1756, 104
        %v1997 = vpop.permute.xlu0 %1996
        %v1999 = vsel %vm1019, %v1995, 0
        %v2002 = vsel %vm1019, %v1997, 0
        %2004 = vmatprep.subr.bf16.mxu0 0
        %2005 = vmatpush1.bf16.xpose.msra.mxu0 0
        %2006 = vmatprep.subr.bf16.mxu0 0
        %2007 = vmatpush1.bf16.xpose.msra.mxu0 0
        %2008 = vmatprep.subr.bf16.mxu0 0
        %2009 = vmatpush1.bf16.xpose.msra.mxu0 0
        %2010 = vmatprep.subr.bf16.mxu0 0
        %2011 = vmatpush1.bf16.xpose.msra.mxu0 0
        %2012 = vmatprep.subr.bf16.mxu0 0
        %2013 = vmatpush1.bf16.xpose.msra.mxu0 0
        %2014 = vmatprep.subr.bf16.mxu0 0
        %2015 = vmatpush1.bf16.xpose.msra.mxu0 0
        %2016 = vmatprep.subr.bf16.mxu0 0
        %2017 = vmatpush1.bf16.xpose.msra.mxu0 0
        %2018 = vmatprep.subr.bf16.mxu0 0
        %2019 = vmatpush1.bf16.xpose.msra.mxu0 %v2002
        %2020 = vmatprep.subr.bf16.mxu0 0
        %2021 = vmatpush2.bf16.xpose.msra.mxu0 0
        %2022 = vmatprep.subr.bf16.mxu0 0
        %2023 = vmatpush2.bf16.xpose.msra.mxu0 0
        %2024 = vmatprep.subr.bf16.mxu0 0
        %2025 = vmatpush2.bf16.xpose.msra.mxu0 0
        %2026 = vmatprep.subr.bf16.mxu0 0
        %2027 = vmatpush2.bf16.xpose.msra.mxu0 0
        %2028 = vmatprep.subr.bf16.mxu0 0
        %2029 = vmatpush2.bf16.xpose.msra.mxu0 0
        %2030 = vmatprep.subr.bf16.mxu0 0
        %2031 = vmatpush2.bf16.xpose.msra.mxu0 0
        %2032 = vmatprep.subr.bf16.mxu0 0
        %2033 = vmatpush2.bf16.xpose.msra.mxu0 0
        %2034 = vmatprep.subr.bf16.mxu0 0
        %2035 = vmatpush2.bf16.xpose.msra.mxu0 0
        %2036 = vmatprep.mubr.bf16.mxu0 0
        %2037 = vmatmul.mubr.bf16.gmra.mxu0 %v1999
        %v2038 = vpop.f32.mrf.mxu0
        %v2039 = vadd.f32 %v1643, %v2038
        %v2040 = vpop.f32.mrf.mxu0
        %v2041 = vpop.f32.mrf.mxu0
        %v2042 = vpop.f32.mrf.mxu0
        %2043 = vdwg.mxu0
        %v2044 = vsel %vm1019, %v2039, -inf
        %2045 = vmax.xlane.f32.xlu0 %v2044
        %v2046 = vpop.xlane.xlu0 %2045
        %v2047 = vsub.f32 %v2039, %v2046
        %v2048 = vmul.f32 %v2047, 1.442695
        %v2049 = vpow.pop %v2048
        %v2050 = vsel %vm1019, %v2049, 0.0
        %2051 = vadd.xlane.f32.xlu0 %v2050
        %v2052 = vpop.xlane.xlu0 %2051
        %v2053 = vrcp.pop %v2052
        %v2054 = vmul.f32 %v2049, %v2053
        %v2055 = vpack.c.bf16 %v2054, %v2054
        %2056 = vrot.lane.b32.xlu0 %v1819, 104
        %v2057 = vpop.permute.xlu0 %2056
        %v2059 = vsel %vm1019, %v2055, 0
        %v2062 = vsel %vm1081, %v2057, 0
        %2064 = vmatprep.subr.bf16.mxu0 0
        %2065 = vmatpush1.bf16.msra.mxu0 0
        %2066 = vmatprep.subr.bf16.mxu0 0
        %2067 = vmatpush1.bf16.msra.mxu0 0
        %2068 = vmatprep.subr.bf16.mxu0 0
        %2069 = vmatpush1.bf16.msra.mxu0 0
        %2070 = vmatprep.subr.bf16.mxu0 0
        %2071 = vmatpush1.bf16.msra.mxu0 0
        %2072 = vmatprep.subr.bf16.mxu0 0
        %2073 = vmatpush1.bf16.msra.mxu0 0
        %2074 = vmatprep.subr.bf16.mxu0 0
        %2075 = vmatpush1.bf16.msra.mxu0 0
        %2076 = vmatprep.subr.bf16.mxu0 0
        %2077 = vmatpush1.bf16.msra.mxu0 0
        %2078 = vmatprep.subr.bf16.mxu0 0
        %2079 = vmatpush1.bf16.msra.mxu0 %v2062
        %2080 = vmatprep.subr.bf16.mxu0 0
        %2081 = vmatpush2.bf16.msra.mxu0 0
        %2082 = vmatprep.subr.bf16.mxu0 0
        %2083 = vmatpush2.bf16.msra.mxu0 0
        %2084 = vmatprep.subr.bf16.mxu0 0
        %2085 = vmatpush2.bf16.msra.mxu0 0
        %2086 = vmatprep.subr.bf16.mxu0 0
        %2087 = vmatpush2.bf16.msra.mxu0 0
        %2088 = vmatprep.subr.bf16.mxu0 0
        %2089 = vmatpush2.bf16.msra.mxu0 0
        %2090 = vmatprep.subr.bf16.mxu0 0
        %2091 = vmatpush2.bf16.msra.mxu0 0
        %2092 = vmatprep.subr.bf16.mxu0 0
        %2093 = vmatpush2.bf16.msra.mxu0 0
        %2094 = vmatprep.subr.bf16.mxu0 0
        %2095 = vmatpush2.bf16.msra.mxu0 0
        %2096 = vmatprep.mubr.bf16.mxu0 0
        %2097 = vmatmul.mubr.bf16.gmra.mxu0 %v2059
        %v2098 = vpop.f32.mrf.mxu0
        %v2099 = vadd.f32 0.0, %v2098
        %v2100 = vpop.f32.mrf.mxu0
        %v2101 = vpop.f32.mrf.mxu0
        %v2102 = vpop.f32.mrf.mxu0
        %2103 = vdwg.mxu0
        %v2104 = vpack.c.bf16 %v2099, %v2099
        %v2106 = vunpack.c.l.b16 %v2104
        %v2107 = vpack.c.b16 %v2106, %v2106
        %2108 = vrot.lane.b32.xlu0 %v2107, 24
        %v2109 = vpop.permute.xlu0 %2108
        %2111 = vst.msk [vmem:[#allocation4] sm:$0xf] %vm1490, %v2109
        %v2112 = vld [vmem:[#allocation4] sm:$0xf]
        %v2113 = vlaneseq
        %v2114 = vshrl.u32 %v2113, 7
        %v2115 = vsub.s32 0, %v2114
        %v2116 = vrot.slane %v1632, %v2115
        %v2121 = vunpack.c.l.b16 %v1628
        %v2122 = vunpack.c.l.b16 %v1629
        %v2123 = vunpack.c.l.b16 %v1630
        %v2124 = vunpack.c.l.b16 %v1631
        %v2125 = vpack.c.b16 %v2122, %v2121
        %v2126 = vpack.c.b16 %v2124, %v2123
        %v2130 = vsel %vm933, %v2112, 0
        %2132 = vmatprep.subr.bf16.mxu0 0
        %2133 = vmatpush1.bf16.msra.mxu0 0
        %2134 = vmatprep.subr.bf16.mxu0 0
        %2135 = vmatpush1.bf16.msra.mxu0 0
        %2136 = vmatprep.subr.bf16.mxu0 0
        %2137 = vmatpush1.bf16.msra.mxu0 0
        %2138 = vmatprep.subr.bf16.mxu0 0
        %2139 = vmatpush1.bf16.msra.mxu0 0
        %2140 = vmatprep.subr.bf16.mxu0 0
        %2141 = vmatpush1.bf16.msra.mxu0 0
        %2142 = vmatprep.subr.bf16.mxu0 0
        %2143 = vmatpush1.bf16.msra.mxu0 0
        %2144 = vmatprep.subr.bf16.mxu0 0
        %2145 = vmatpush1.bf16.msra.mxu0 %v2126
        %2146 = vmatprep.subr.bf16.mxu0 0
        %2147 = vmatpush1.bf16.msra.mxu0 %v2125
        %2148 = vmatprep.subr.bf16.mxu0 0
        %2149 = vmatpush2.bf16.msra.mxu0 0
        %2150 = vmatprep.subr.bf16.mxu0 0
        %2151 = vmatpush2.bf16.msra.mxu0 0
        %2152 = vmatprep.subr.bf16.mxu0 0
        %2153 = vmatpush2.bf16.msra.mxu0 0
        %2154 = vmatprep.subr.bf16.mxu0 0
        %2155 = vmatpush2.bf16.msra.mxu0 0
        %2156 = vmatprep.subr.bf16.mxu0 0
        %2157 = vmatpush2.bf16.msra.mxu0 0
        %2158 = vmatprep.subr.bf16.mxu0 0
        %2159 = vmatpush2.bf16.msra.mxu0 0
        %2160 = vmatprep.subr.bf16.mxu0 0
        %2161 = vmatpush2.bf16.msra.mxu0 0
        %2162 = vmatprep.subr.bf16.mxu0 0
        %2163 = vmatpush2.bf16.msra.mxu0 0
        %2164 = vmatprep.mubr.bf16.mxu0 0
        %2165 = vmatmul.mubr.bf16.gmra.mxu0 %v2130
        %v2166 = vpop.f32.mrf.mxu0
        %v2167 = vadd.f32 %v2116, %v2166
        %v2168 = vpop.f32.mrf.mxu0
        %v2169 = vpop.f32.mrf.mxu0
        %v2170 = vpop.f32.mrf.mxu0
        %2171 = vdwg.mxu0
        %v2172 = vadd.f32 %v1552, %v2167
        %v2173 = vmul.f32 %v2172, %v2172
        %v2174 = vsel %vm933, %v2173, 0.0
        %2175 = vadd.xlane.f32.xlu0 %v2174
        %v2176 = vpop.xlane.xlu0 %2175
        %v2177 = vstv %s647
        %v2178 = vmul.f32 %v2177, %v2172
        %v2179 = vmax.f32 %v2176, 1e-10
        %v2180 = vrsqrt.pop %v2179
        %v2181 = vmul.f32 %v2178, %v2180
        %v2182 = vpack.c.bf16 %v2181, %v2181
        %v2183 = vld [vmem:[%s9] sm:$0xf]
        %v2184 = vld [vmem:[%s9 + $0x4] sm:$0xf]
        %v2185 = vld [vmem:[%s9 + $0x8] sm:$0xf]
        %v2186 = vld [vmem:[%s9 + $0xc] sm:$0xf]
        %v2187 = vld [vmem:[#allocation15] sm:$0x1]
        %v2189 = vlaneseq
        %v2190 = vshrl.u32 %v2189, 7
        %v2191 = vsub.s32 0, %v2190
        %v2192 = vrot.slane %v2187, %v2191
        %v2198 = vunpack.c.l.b16 %v2183
        %v2199 = vunpack.c.l.b16 %v2184
        %v2200 = vunpack.c.l.b16 %v2185
        %v2201 = vunpack.c.l.b16 %v2186
        %v2202 = vpack.c.b16 %v2199, %v2198
        %v2203 = vpack.c.b16 %v2201, %v2200
        %v2207 = vsel %vm933, %v2182, 0
        %2209 = vmatprep.subr.bf16.mxu0 0
        %2210 = vmatpush1.bf16.msra.mxu0 0
        %2211 = vmatprep.subr.bf16.mxu0 0
        %2212 = vmatpush1.bf16.msra.mxu0 0
        %2213 = vmatprep.subr.bf16.mxu0 0
        %2214 = vmatpush1.bf16.msra.mxu0 0
        %2215 = vmatprep.subr.bf16.mxu0 0
        %2216 = vmatpush1.bf16.msra.mxu0 0
        %2217 = vmatprep.subr.bf16.mxu0 0
        %2218 = vmatpush1.bf16.msra.mxu0 0
        %2219 = vmatprep.subr.bf16.mxu0 0
        %2220 = vmatpush1.bf16.msra.mxu0 0
        %2221 = vmatprep.subr.bf16.mxu0 0
        %2222 = vmatpush1.bf16.msra.mxu0 %v2203
        %2223 = vmatprep.subr.bf16.mxu0 0
        %2224 = vmatpush1.bf16.msra.mxu0 %v2202
        %2225 = vmatprep.subr.bf16.mxu0 0
        %2226 = vmatpush2.bf16.msra.mxu0 0
        %2227 = vmatprep.subr.bf16.mxu0 0
        %2228 = vmatpush2.bf16.msra.mxu0 0
        %2229 = vmatprep.subr.bf16.mxu0 0
        %2230 = vmatpush2.bf16.msra.mxu0 0
        %2231 = vmatprep.subr.bf16.mxu0 0
        %2232 = vmatpush2.bf16.msra.mxu0 0
        %2233 = vmatprep.subr.bf16.mxu0 0
        %2234 = vmatpush2.bf16.msra.mxu0 0
        %2235 = vmatprep.subr.bf16.mxu0 0
        %2236 = vmatpush2.bf16.msra.mxu0 0
        %2237 = vmatprep.subr.bf16.mxu0 0
        %2238 = vmatpush2.bf16.msra.mxu0 0
        %2239 = vmatprep.subr.bf16.mxu0 0
        %2240 = vmatpush2.bf16.msra.mxu0 0
        %2241 = vmatprep.mubr.bf16.mxu0 0
        %2242 = vmatmul.mubr.bf16.gmra.mxu0 %v2207
        %v2243 = vpop.f32.mrf.mxu0
        %v2244 = vadd.f32 %v2192, %v2243
        %v2245 = vpop.f32.mrf.mxu0
        %v2246 = vpop.f32.mrf.mxu0
        %v2247 = vpop.f32.mrf.mxu0
        %2248 = vdwg.mxu0
        %v2249 = vmax.f32 %v2244, 0.0
        %v2250 = vld [vmem:[%s11] sm:$0xf]
        %v2251 = vld [vmem:[%s11 + $0x4] sm:$0xf]
        %v2252 = vld [vmem:[%s11 + $0x8] sm:$0xf]
        %v2253 = vld [vmem:[%s11 + $0xc] sm:$0xf]
        %v2254 = vld [vmem:[%s11 + $0x10] sm:$0xf]
        %v2255 = vld [vmem:[%s11 + $0x14] sm:$0xf]
        %v2256 = vld [vmem:[%s11 + $0x18] sm:$0xf]
        %v2257 = vld [vmem:[%s11 + $0x1c] sm:$0xf]
        %v2258 = vpack.c.bf16 %v2249, %v2249
        %v2267 = vunpack.c.l.b16 %v2250
        %v2268 = vunpack.c.l.b16 %v2251
        %v2269 = vunpack.c.l.b16 %v2252
        %v2270 = vunpack.c.l.b16 %v2253
        %v2271 = vunpack.c.l.b16 %v2254
        %v2272 = vunpack.c.l.b16 %v2255
        %v2273 = vunpack.c.l.b16 %v2256
        %v2274 = vunpack.c.l.b16 %v2257
        %v2275 = vpack.c.b16 %v2268, %v2267
        %v2276 = vpack.c.b16 %v2270, %v2269
        %v2277 = vpack.c.b16 %v2272, %v2271
        %v2278 = vpack.c.b16 %v2274, %v2273
        %vm2283 = vcmask 523264
        %v2285 = vsel %vm2283, %v2258, 0
        %2287 = vmatprep.subr.bf16.mxu0 0
        %2288 = vmatpush1.bf16.msra.mxu0 0
        %2289 = vmatprep.subr.bf16.mxu0 0
        %2290 = vmatpush1.bf16.msra.mxu0 0
        %2291 = vmatprep.subr.bf16.mxu0 0
        %2292 = vmatpush1.bf16.msra.mxu0 0
        %2293 = vmatprep.subr.bf16.mxu0 0
        %2294 = vmatpush1.bf16.msra.mxu0 0
        %2295 = vmatprep.subr.bf16.mxu0 0
        %2296 = vmatpush1.bf16.msra.mxu0 %v2278
        %2297 = vmatprep.subr.bf16.mxu0 0
        %2298 = vmatpush1.bf16.msra.mxu0 %v2277
        %2299 = vmatprep.subr.bf16.mxu0 0
        %2300 = vmatpush1.bf16.msra.mxu0 %v2276
        %2301 = vmatprep.subr.bf16.mxu0 0
        %2302 = vmatpush1.bf16.msra.mxu0 %v2275
        %2303 = vmatprep.subr.bf16.mxu0 0
        %2304 = vmatpush2.bf16.msra.mxu0 0
        %2305 = vmatprep.subr.bf16.mxu0 0
        %2306 = vmatpush2.bf16.msra.mxu0 0
        %2307 = vmatprep.subr.bf16.mxu0 0
        %2308 = vmatpush2.bf16.msra.mxu0 0
        %2309 = vmatprep.subr.bf16.mxu0 0
        %2310 = vmatpush2.bf16.msra.mxu0 0
        %2311 = vmatprep.subr.bf16.mxu0 0
        %2312 = vmatpush2.bf16.msra.mxu0 0
        %2313 = vmatprep.subr.bf16.mxu0 0
        %2314 = vmatpush2.bf16.msra.mxu0 0
        %2315 = vmatprep.subr.bf16.mxu0 0
        %2316 = vmatpush2.bf16.msra.mxu0 0
        %2317 = vmatprep.subr.bf16.mxu0 0
        %2318 = vmatpush2.bf16.msra.mxu0 0
        %2319 = vmatprep.mubr.bf16.mxu0 0
        %2320 = vmatmul.mubr.bf16.gmra.mxu0 %v2285
        %v2321 = vpop.f32.mrf.mxu0
        %v2322 = vadd.f32 0.0, %v2321
        %v2323 = vpop.f32.mrf.mxu0
        %v2324 = vpop.f32.mrf.mxu0
        %v2325 = vpop.f32.mrf.mxu0
        %2326 = vdwg.mxu0
        %v2327 = vadd.f32 %v2172, %v2322
        %v2328 = vld [vmem:[%s12] sm:$0x1]
        %v2330 = vlaneseq
        %v2331 = vshrl.u32 %v2330, 7
        %v2332 = vsub.s32 0, %v2331
        %v2333 = vrot.slane %v2328, %v2332
        %v2335 = vadd.f32 %v2327, %v2333
        %2336 = vst.msk [vmem:[%s628] sm:$0xff] %vm933, %v2335
        %s2337 = sand.u32 %s378, 1
        %s2338 = scalar_lea.sflag [#allocation7], %s2337
        %s2339 = sand.u32 %s378, 1
        %s2340 = smul.addr %s2339, 8
        %s2341 = scalar_lea.vmem [#allocation18], %s2340
        // Predicated region
        $region109: #{tpu_custom_call.1} parent=75 // pred_check
          %p2342 = pneg %p388
        $region110: #{tpu_custom_call.1} parent=75 // pred_check_branch
          %2344 = sbr.rel (%p2342) target = $region112
        $region111: #{tpu_custom_call.1} parent=75 // pred_region
          %s2346 = ssub.s32 128, 128
          %2347 = vsyncadd %s2338, %s2346
          %s2348 = sadd.s32 %s40, %s39
          %s2349 = smul.addr %s2348, 128
          %s2350 = scalar_lea.hbm %s14, %s2349
          %s2352 = sshll.u32 %s2341, 4
          %s2353 = int_to_ptr.vmem [resolvable:$true] %s2352
          %2355 = dma.vmem_to_hbm [thread:$0]  %s2353, 128, %s2350, %s2338
        $region112: #{tpu_custom_call.1} parent=75 // pred_fallthru
          _
      $region76: #{tpu_custom_call.1} parent=5 // pred_fallthru
        _
      %p2356 = scmp.le.s32.totalorder 2, %s30
      // Predicated region
      $region113: #{tpu_custom_call.1} parent=5 // pred_check
        %p2357 = pneg %p2356
      $region114: #{tpu_custom_call.1} parent=5 // pred_check_branch
        %2359 = sbr.rel (%p2357) target = $region116
      $region115: #{tpu_custom_call.1} parent=5 // pred_region
        %s2360 = ssub.s32 %s30, 2
        // Predicated region
        $region117: #{tpu_custom_call.1} parent=115 // pred_check
          %p2361 = pneg %p394
        $region118: #{tpu_custom_call.1} parent=115 // pred_check_branch
          %2363 = sbr.rel (%p2361) target = $region120
        $region119: #{tpu_custom_call.1} parent=115 // pred_region
          %s2364 = sand.u32 %s379, 1
          %s2365 = scalar_lea.sflag [#allocation7], %s2364
          %s2366 = sand.u32 %s379, 1
          %s2367 = smul.addr %s2366, 8
          %s2368 = scalar_lea.vmem [#allocation18], %s2367
          %2369 = dma.done %s2365, 128
        $region120: #{tpu_custom_call.1} parent=115 // pred_fallthru
          _
      $region116: #{tpu_custom_call.1} parent=5 // pred_fallthru
        _
    $region6: #{tpu_custom_call.1} parent=1 // loop_footer
      %s34 = sadd.s32 1, %s30
    $region7: #{tpu_custom_call.1} parent=1 // loop_footer_branch
      %29 = sbr.rel target = $region3
    $region8: #{tpu_custom_call.1} parent=1 // loop_exit
      _
    %2370 = vsyncpa [#allocation6], 1
    %s2371 = scalar_lea.sflag [#allocation6], 1
    %2372 = vsyncpa %s2371, 1
    %2373 = vsyncpa [#allocation10], 1
    %s2374 = scalar_lea.sflag [#allocation10], 1
    %2375 = vsyncpa %s2374, 1
    %2376 = vsyncpa [#allocation13], 1
    %2377 = vsyncpa [#allocation16], 1
    %2378 = vsyncpa [#allocation7], 1
    %s2379 = scalar_lea.sflag [#allocation7], 1
    %2380 = vsyncpa %s2379, 1
    %2381 = vsyncpa [#allocation8], 1
    %s2382 = scalar_lea.sflag [#allocation8], 1
    %2383 = vsyncpa %s2382, 1

</llo_original>
